<compile_context>
chip_gen: v7x
topology: tpu7x:2x2x1
jax: 0.10.0
libtpu: 0.0.40
codegen_flags: <defaults>
</compile_context>

<pallas_src>
import functools

import jax
import jax.numpy as jnp
from jax.experimental import pallas as pl
from jax.experimental.pallas import tpu as pltpu

_BN_EPS = 1e-5
_H1_PAD = 64
_LANE = 128

_ARG_ORDER = ("w1", "b1", "w2", "b2", "gamma", "beta", "w3", "b3",
              "q4", "s4", "b4", "q5", "s5", "b5", "qo", "so", "bo")


def _mlp_kernel(x_ref,
                w1_ref, b1_ref,
                w2_ref, b2_ref,
                g_ref, bt_ref,
                w3_ref, b3_ref,
                q4_ref, s4_ref, b4_ref,
                q5_ref, s5_ref, b5_ref,
                qo_ref, so_ref, bo_ref,
                out_ref):
    bf16 = jnp.bfloat16

    def deq(q_ref):
        # int8 codes -> bf16 (exact: |q| <= 127).  Cast via f32 for a safe
        # Mosaic lowering; the scale is applied to the f32 accumulator below.
        return q_ref[...].astype(jnp.float32).astype(bf16)

    # hl1 + relu
    h = jnp.dot(x_ref[...].astype(bf16), w1_ref[...],
                preferred_element_type=jnp.float32) + b1_ref[...]
    h = jnp.maximum(h, 0.0)

    # hl2 + relu
    h = jnp.dot(h.astype(bf16), w2_ref[...],
                preferred_element_type=jnp.float32) + b2_ref[...]
    h = jnp.maximum(h, 0.0)

    # BatchNorm1d(128), training mode: batch stats, biased variance, eps=1e-5
    mean = jnp.mean(h, axis=0, keepdims=True)
    var = jnp.mean((h - mean) * (h - mean), axis=0, keepdims=True)
    h = (h - mean) * jax.lax.rsqrt(var + _BN_EPS)
    h = h * g_ref[...] + bt_ref[...]

    # hl3 + relu (bf16 weights)
    h = jnp.dot(h.astype(bf16), w3_ref[...],
                preferred_element_type=jnp.float32) + b3_ref[...]
    h = jnp.maximum(h, 0.0)

    # hl4 + relu (int8 weight-only, per-output-channel scale folded into acc)
    h = jnp.dot(h.astype(bf16), deq(q4_ref),
                preferred_element_type=jnp.float32) * s4_ref[...] + b4_ref[...]
    h = jnp.maximum(h, 0.0)

    # hl5 + relu (int8 weight-only)
    h = jnp.dot(h.astype(bf16), deq(q5_ref),
                preferred_element_type=jnp.float32) * s5_ref[...] + b5_ref[...]
    h = jnp.maximum(h, 0.0)

    # output layer + tanh (int8 weight-only, lane-dense padded width; the
    # padded columns have q=0 and bias=0, so they come out as tanh(0)=0)
    out = jnp.dot(h.astype(bf16), deq(qo_ref),
                  preferred_element_type=jnp.float32) * so_ref[...] + bo_ref[...]
    out_ref[...] = jnp.tanh(out)


def _quantize_int8(w):
    """Per-output-channel symmetric int8 weight quantization.  w: [in, out] f32."""
    amax = jnp.max(jnp.abs(w), axis=0, keepdims=True)          # [1, out]
    scale = jnp.maximum(amax, 1e-12) / 127.0
    q = jnp.clip(jnp.round(w / scale), -127.0, 127.0).astype(jnp.int8)
    return q, scale.astype(jnp.float32)


def pack_params(params):
    """ONE-TIME packing of the f32 master weights for the kernel.

    Do this once (at init / checkpoint-load time) and reuse the result for
    every forward call: pads hl1 (48->64) and the output layer (->multiple of
    128) for lane-dense layout, casts the small weights to bf16, and
    quantizes the three large weights (w4, w5, wo) to int8 with
    per-output-channel scales.  Biases / BN affine params stay f32, [1, out].
    """
    n_output = params["wo"].shape[1]
    n_out_padded = max(_LANE, pl.cdiv(n_output, _LANE) * _LANE)

    pad1 = _H1_PAD - params["w1"].shape[1]
    w1p = jnp.pad(params["w1"], ((0, 0), (0, pad1)))
    b1p = jnp.pad(params["b1"], ((0, 0), (0, pad1)))
    w2p = jnp.pad(params["w2"], ((0, pad1), (0, 0)))

    pado = n_out_padded - n_output
    wop = jnp.pad(params["wo"], ((0, 0), (0, pado)))
    bop = jnp.pad(params["bo"], ((0, 0), (0, pado)))

    q4, s4 = _quantize_int8(params["w4"])
    q5, s5 = _quantize_int8(params["w5"])
    qo, so = _quantize_int8(wop)

    bf = lambda a: a.astype(jnp.bfloat16)
    return {
        "w1": bf(w1p), "b1": b1p,
        "w2": bf(w2p), "b2": params["b2"],
        "gamma": params["gamma"], "beta": params["beta"],
        "w3": bf(params["w3"]), "b3": params["b3"],
        "q4": q4, "s4": s4, "b4": params["b4"],
        "q5": q5, "s5": s5, "b5": params["b5"],
        "qo": qo, "so": so, "bo": bop,
    }


@functools.partial(jax.jit, static_argnames=("n_output",))
def binary2latent_forward(features, packed, n_output=100):
    """features: [B, N_combinations] f32.  packed: output of pack_params()."""
    B = features.shape[0]
    args = [packed[k] for k in _ARG_ORDER]
    n_out_padded = packed["bo"].shape[1]

    # Advisory cost estimate: the kernel is weight-DMA bound (~3.2 MB packed).
    weight_keys = ("w1", "w2", "w3", "q4", "q5", "qo")
    flops = 2 * B * sum(packed[k].shape[0] * packed[k].shape[1]
                        for k in weight_keys)
    bytes_accessed = (features.size * features.dtype.itemsize
                      + sum(a.size * a.dtype.itemsize for a in args)
                      + B * n_out_padded * 4)
    cost = pl.CostEstimate(flops=int(flops),
                           transcendentals=int(B * n_out_padded + 128),
                           bytes_accessed=int(bytes_accessed))

    vmem_spec = pl.BlockSpec(memory_space=pltpu.MemorySpace.VMEM)

    out = pl.pallas_call(
        _mlp_kernel,
        out_shape=jax.ShapeDtypeStruct((B, n_out_padded), jnp.float32),
        in_specs=[vmem_spec] * (1 + len(args)),
        out_specs=vmem_spec,
        compiler_params=pltpu.CompilerParams(vmem_limit_bytes=32 << 20),
        cost_estimate=cost,
    )(features, *args)

    return out[:, :n_output]


def init_params(key, n_combinations=10, n_output=100):
    """Deterministic init mimicking torch.nn.Linear defaults (uniform +-1/sqrt(fan_in)).

    Linear weights are stored pre-transposed as [in, out], f32 masters.
    """
    dims = [(n_combinations, 48), (48, 128), (128, 512),
            (512, 1024), (1024, 2048), (2048, n_output)]
    names = ["1", "2", "3", "4", "5", "o"]
    params = {}
    for (fan_in, fan_out), name in zip(dims, names):
        key, kw, kb = jax.random.split(key, 3)
        bound = 1.0 / jnp.sqrt(fan_in)
        params[f"w{name}"] = jax.random.uniform(
            kw, (fan_in, fan_out), jnp.float32, -bound, bound)
        params[f"b{name}"] = jax.random.uniform(
            kb, (1, fan_out), jnp.float32, -bound, bound)
    # BatchNorm1d(128) affine params: gamma=1, beta=0 (torch default init)
    params["gamma"] = jnp.ones((1, 128), jnp.float32)
    params["beta"] = jnp.zeros((1, 128), jnp.float32)
    return params


def _reference_forward(features, packed, n_output):
    """Pure-JAX reference mirroring the kernel numerics exactly."""
    bf16 = jnp.bfloat16

    def mm_bf16(x, w, b):
        return jnp.dot(x.astype(bf16), w,
                       preferred_element_type=jnp.float32) + b

    def mm_int8(x, q, s, b):
        qw = q.astype(jnp.float32).astype(bf16)
        return jnp.dot(x.astype(bf16), qw,
                       preferred_element_type=jnp.float32) * s + b

    h = jnp.maximum(mm_bf16(features, packed["w1"], packed["b1"]), 0.0)
    h = jnp.maximum(mm_bf16(h, packed["w2"], packed["b2"]), 0.0)
    mean = jnp.mean(h, axis=0, keepdims=True)
    var = jnp.mean((h - mean) ** 2, axis=0, keepdims=True)
    h = (h - mean) * jax.lax.rsqrt(var + _BN_EPS)
    h = h * packed["gamma"] + packed["beta"]
    h = jnp.maximum(mm_bf16(h, packed["w3"], packed["b3"]), 0.0)
    h = jnp.maximum(mm_int8(h, packed["q4"], packed["s4"], packed["b4"]), 0.0)
    h = jnp.maximum(mm_int8(h, packed["q5"], packed["s5"], packed["b5"]), 0.0)
    out = jnp.tanh(mm_int8(h, packed["qo"], packed["so"], packed["bo"]))
    return out[:, :n_output]


if __name__ == "__main__":
    key = jax.random.PRNGKey(0)
    key, k_feat = jax.random.split(key)

    B, N_COMB, N_OUT = 8, 10, 100
    features = jax.random.normal(k_feat, (B, N_COMB), jnp.float32)
    params = init_params(key, N_COMB, N_OUT)

    # One-time weight packing (pad + bf16 cast + int8 quant), OUTSIDE the
    # per-call jitted forward path.
    packed = jax.block_until_ready(pack_params(params))

    out = jax.block_until_ready(
        binary2latent_forward(features, packed, n_output=N_OUT))
    ref = jax.block_until_ready(_reference_forward(features, packed, N_OUT))

    assert out.shape == (B, N_OUT)
    assert jnp.allclose(out, ref, atol=2e-2, rtol=2e-2), "mismatch vs reference"
    print("KERNEL_OK")
</pallas_src>

<mosaic_0001>
module attributes {stable_mosaic.version = 11 : i64} {
  func.func @_mlp_kernel(%arg0: memref<8x10xf32, #tpu.memory_space<vmem>>, %arg1: memref<10x64xbf16, #tpu.memory_space<vmem>>, %arg2: memref<1x64xf32, #tpu.memory_space<vmem>>, %arg3: memref<64x128xbf16, #tpu.memory_space<vmem>>, %arg4: memref<1x128xf32, #tpu.memory_space<vmem>>, %arg5: memref<1x128xf32, #tpu.memory_space<vmem>>, %arg6: memref<1x128xf32, #tpu.memory_space<vmem>>, %arg7: memref<128x512xbf16, #tpu.memory_space<vmem>>, %arg8: memref<1x512xf32, #tpu.memory_space<vmem>>, %arg9: memref<512x1024xi8, #tpu.memory_space<vmem>>, %arg10: memref<1x1024xf32, #tpu.memory_space<vmem>>, %arg11: memref<1x1024xf32, #tpu.memory_space<vmem>>, %arg12: memref<1024x2048xi8, #tpu.memory_space<vmem>>, %arg13: memref<1x2048xf32, #tpu.memory_space<vmem>>, %arg14: memref<1x2048xf32, #tpu.memory_space<vmem>>, %arg15: memref<2048x128xi8, #tpu.memory_space<vmem>>, %arg16: memref<1x128xf32, #tpu.memory_space<vmem>>, %arg17: memref<1x128xf32, #tpu.memory_space<vmem>>, %arg18: memref<8x128xf32, #tpu.memory_space<vmem>>) attributes {dimension_semantics = [], scalar_prefetch = 0 : i64, scratch_operands = 0 : i64, tpu.core_type = #tpu.core_type<tc>} {
    %c0 = arith.constant 0 : index
    %c0_0 = arith.constant 0 : index
    %0 = vector.load %arg0[%c0, %c0_0] : memref<8x10xf32, #tpu.memory_space<vmem>>, vector<8x10xf32>
    %1 = arith.truncf %0 : vector<8x10xf32> to vector<8x10xbf16>
    %c0_1 = arith.constant 0 : index
    %c0_2 = arith.constant 0 : index
    %2 = vector.load %arg1[%c0_1, %c0_2] : memref<10x64xbf16, #tpu.memory_space<vmem>>, vector<10x64xbf16>
    %cst = arith.constant dense<0.000000e+00> : vector<8x64xf32>
    %3 = tpu.matmul %1, %2, %cst {dimension_numbers = #tpu.dot_dimension_numbers<[1], [0], [0], [1], [0, 0, 1, 1], [], []>} : vector<8x10xbf16>, vector<10x64xbf16>, vector<8x64xf32> -> vector<8x64xf32>
    %c0_3 = arith.constant 0 : index
    %c0_4 = arith.constant 0 : index
    %4 = vector.load %arg2[%c0_3, %c0_4] : memref<1x64xf32, #tpu.memory_space<vmem>>, vector<1x64xf32>
    %5 = vector.broadcast %4 : vector<1x64xf32> to vector<8x64xf32>
    %6 = arith.addf %3, %5 : vector<8x64xf32>
    %cst_5 = arith.constant 0.000000e+00 : f32
    %7 = vector.broadcast %cst_5 : f32 to vector<8x64xf32>
    %8 = arith.maximumf %6, %7 : vector<8x64xf32>
    %9 = arith.truncf %8 : vector<8x64xf32> to vector<8x64xbf16>
    %c0_6 = arith.constant 0 : index
    %c0_7 = arith.constant 0 : index
    %10 = vector.load %arg3[%c0_6, %c0_7] : memref<64x128xbf16, #tpu.memory_space<vmem>>, vector<64x128xbf16>
    %cst_8 = arith.constant dense<0.000000e+00> : vector<8x128xf32>
    %11 = tpu.matmul %9, %10, %cst_8 {dimension_numbers = #tpu.dot_dimension_numbers<[1], [0], [0], [1], [0, 0, 1, 1], [], []>} : vector<8x64xbf16>, vector<64x128xbf16>, vector<8x128xf32> -> vector<8x128xf32>
    %c0_9 = arith.constant 0 : index
    %c0_10 = arith.constant 0 : index
    %12 = vector.load %arg4[%c0_9, %c0_10] : memref<1x128xf32, #tpu.memory_space<vmem>>, vector<1x128xf32>
    %13 = vector.broadcast %12 : vector<1x128xf32> to vector<8x128xf32>
    %14 = arith.addf %11, %13 : vector<8x128xf32>
    %cst_11 = arith.constant 0.000000e+00 : f32
    %15 = vector.broadcast %cst_11 : f32 to vector<8x128xf32>
    %16 = arith.maximumf %14, %15 : vector<8x128xf32>
    %cst_12 = arith.constant dense<0.000000e+00> : vector<128xf32>
    %17 = vector.multi_reduction <add>, %16, %cst_12 [0] : vector<8x128xf32> to vector<128xf32>
    %18 = vector.shape_cast %17 : vector<128xf32> to vector<1x128xf32>
    %cst_13 = arith.constant 8.000000e+00 : f32
    %19 = vector.broadcast %cst_13 : f32 to vector<1x128xf32>
    %20 = arith.divf %18, %19 : vector<1x128xf32>
    %21 = vector.broadcast %20 : vector<1x128xf32> to vector<8x128xf32>
    %22 = arith.subf %16, %21 : vector<8x128xf32>
    %23 = vector.broadcast %20 : vector<1x128xf32> to vector<8x128xf32>
    %24 = arith.subf %16, %23 : vector<8x128xf32>
    %25 = arith.mulf %22, %24 : vector<8x128xf32>
    %cst_14 = arith.constant dense<0.000000e+00> : vector<128xf32>
    %26 = vector.multi_reduction <add>, %25, %cst_14 [0] : vector<8x128xf32> to vector<128xf32>
    %27 = vector.shape_cast %26 : vector<128xf32> to vector<1x128xf32>
    %cst_15 = arith.constant 8.000000e+00 : f32
    %28 = vector.broadcast %cst_15 : f32 to vector<1x128xf32>
    %29 = arith.divf %27, %28 : vector<1x128xf32>
    %30 = vector.broadcast %20 : vector<1x128xf32> to vector<8x128xf32>
    %31 = arith.subf %16, %30 : vector<8x128xf32>
    %cst_16 = arith.constant 9.99999974E-6 : f32
    %32 = vector.broadcast %cst_16 : f32 to vector<1x128xf32>
    %33 = arith.addf %29, %32 : vector<1x128xf32>
    %34 = math.rsqrt %33 : vector<1x128xf32>
    %35 = vector.broadcast %34 : vector<1x128xf32> to vector<8x128xf32>
    %36 = arith.mulf %31, %35 : vector<8x128xf32>
    %c0_17 = arith.constant 0 : index
    %c0_18 = arith.constant 0 : index
    %37 = vector.load %arg5[%c0_17, %c0_18] : memref<1x128xf32, #tpu.memory_space<vmem>>, vector<1x128xf32>
    %38 = vector.broadcast %37 : vector<1x128xf32> to vector<8x128xf32>
    %39 = arith.mulf %36, %38 : vector<8x128xf32>
    %c0_19 = arith.constant 0 : index
    %c0_20 = arith.constant 0 : index
    %40 = vector.load %arg6[%c0_19, %c0_20] : memref<1x128xf32, #tpu.memory_space<vmem>>, vector<1x128xf32>
    %41 = vector.broadcast %40 : vector<1x128xf32> to vector<8x128xf32>
    %42 = arith.addf %39, %41 : vector<8x128xf32>
    %43 = arith.truncf %42 : vector<8x128xf32> to vector<8x128xbf16>
    %c0_21 = arith.constant 0 : index
    %c0_22 = arith.constant 0 : index
    %44 = vector.load %arg7[%c0_21, %c0_22] : memref<128x512xbf16, #tpu.memory_space<vmem>>, vector<128x512xbf16>
    %cst_23 = arith.constant dense<0.000000e+00> : vector<8x512xf32>
    %45 = tpu.matmul %43, %44, %cst_23 {dimension_numbers = #tpu.dot_dimension_numbers<[1], [0], [0], [1], [0, 0, 1, 1], [], []>} : vector<8x128xbf16>, vector<128x512xbf16>, vector<8x512xf32> -> vector<8x512xf32>
    %c0_24 = arith.constant 0 : index
    %c0_25 = arith.constant 0 : index
    %46 = vector.load %arg8[%c0_24, %c0_25] : memref<1x512xf32, #tpu.memory_space<vmem>>, vector<1x512xf32>
    %47 = vector.broadcast %46 : vector<1x512xf32> to vector<8x512xf32>
    %48 = arith.addf %45, %47 : vector<8x512xf32>
    %cst_26 = arith.constant 0.000000e+00 : f32
    %49 = vector.broadcast %cst_26 : f32 to vector<8x512xf32>
    %50 = arith.maximumf %48, %49 : vector<8x512xf32>
    %51 = arith.truncf %50 : vector<8x512xf32> to vector<8x512xbf16>
    %c0_27 = arith.constant 0 : index
    %c0_28 = arith.constant 0 : index
    %52 = vector.load %arg9[%c0_27, %c0_28] : memref<512x1024xi8, #tpu.memory_space<vmem>>, vector<512x1024xi8>
    %53 = arith.sitofp %52 : vector<512x1024xi8> to vector<512x1024xf32>
    %54 = arith.truncf %53 : vector<512x1024xf32> to vector<512x1024xbf16>
    %cst_29 = arith.constant dense<0.000000e+00> : vector<8x1024xf32>
    %55 = tpu.matmul %51, %54, %cst_29 {dimension_numbers = #tpu.dot_dimension_numbers<[1], [0], [0], [1], [0, 0, 1, 1], [], []>} : vector<8x512xbf16>, vector<512x1024xbf16>, vector<8x1024xf32> -> vector<8x1024xf32>
    %c0_30 = arith.constant 0 : index
    %c0_31 = arith.constant 0 : index
    %56 = vector.load %arg10[%c0_30, %c0_31] : memref<1x1024xf32, #tpu.memory_space<vmem>>, vector<1x1024xf32>
    %57 = vector.broadcast %56 : vector<1x1024xf32> to vector<8x1024xf32>
    %58 = arith.mulf %55, %57 : vector<8x1024xf32>
    %c0_32 = arith.constant 0 : index
    %c0_33 = arith.constant 0 : index
    %59 = vector.load %arg11[%c0_32, %c0_33] : memref<1x1024xf32, #tpu.memory_space<vmem>>, vector<1x1024xf32>
    %60 = vector.broadcast %59 : vector<1x1024xf32> to vector<8x1024xf32>
    %61 = arith.addf %58, %60 : vector<8x1024xf32>
    %cst_34 = arith.constant 0.000000e+00 : f32
    %62 = vector.broadcast %cst_34 : f32 to vector<8x1024xf32>
    %63 = arith.maximumf %61, %62 : vector<8x1024xf32>
    %64 = arith.truncf %63 : vector<8x1024xf32> to vector<8x1024xbf16>
    %c0_35 = arith.constant 0 : index
    %c0_36 = arith.constant 0 : index
    %65 = vector.load %arg12[%c0_35, %c0_36] : memref<1024x2048xi8, #tpu.memory_space<vmem>>, vector<1024x2048xi8>
    %66 = arith.sitofp %65 : vector<1024x2048xi8> to vector<1024x2048xf32>
    %67 = arith.truncf %66 : vector<1024x2048xf32> to vector<1024x2048xbf16>
    %cst_37 = arith.constant dense<0.000000e+00> : vector<8x2048xf32>
    %68 = tpu.matmul %64, %67, %cst_37 {dimension_numbers = #tpu.dot_dimension_numbers<[1], [0], [0], [1], [0, 0, 1, 1], [], []>} : vector<8x1024xbf16>, vector<1024x2048xbf16>, vector<8x2048xf32> -> vector<8x2048xf32>
    %c0_38 = arith.constant 0 : index
    %c0_39 = arith.constant 0 : index
    %69 = vector.load %arg13[%c0_38, %c0_39] : memref<1x2048xf32, #tpu.memory_space<vmem>>, vector<1x2048xf32>
    %70 = vector.broadcast %69 : vector<1x2048xf32> to vector<8x2048xf32>
    %71 = arith.mulf %68, %70 : vector<8x2048xf32>
    %c0_40 = arith.constant 0 : index
    %c0_41 = arith.constant 0 : index
    %72 = vector.load %arg14[%c0_40, %c0_41] : memref<1x2048xf32, #tpu.memory_space<vmem>>, vector<1x2048xf32>
    %73 = vector.broadcast %72 : vector<1x2048xf32> to vector<8x2048xf32>
    %74 = arith.addf %71, %73 : vector<8x2048xf32>
    %cst_42 = arith.constant 0.000000e+00 : f32
    %75 = vector.broadcast %cst_42 : f32 to vector<8x2048xf32>
    %76 = arith.maximumf %74, %75 : vector<8x2048xf32>
    %77 = arith.truncf %76 : vector<8x2048xf32> to vector<8x2048xbf16>
    %c0_43 = arith.constant 0 : index
    %c0_44 = arith.constant 0 : index
    %78 = vector.load %arg15[%c0_43, %c0_44] : memref<2048x128xi8, #tpu.memory_space<vmem>>, vector<2048x128xi8>
    %79 = arith.sitofp %78 : vector<2048x128xi8> to vector<2048x128xf32>
    %80 = arith.truncf %79 : vector<2048x128xf32> to vector<2048x128xbf16>
    %cst_45 = arith.constant dense<0.000000e+00> : vector<8x128xf32>
    %81 = tpu.matmul %77, %80, %cst_45 {dimension_numbers = #tpu.dot_dimension_numbers<[1], [0], [0], [1], [0, 0, 1, 1], [], []>} : vector<8x2048xbf16>, vector<2048x128xbf16>, vector<8x128xf32> -> vector<8x128xf32>
    %c0_46 = arith.constant 0 : index
    %c0_47 = arith.constant 0 : index
    %82 = vector.load %arg16[%c0_46, %c0_47] : memref<1x128xf32, #tpu.memory_space<vmem>>, vector<1x128xf32>
    %83 = vector.broadcast %82 : vector<1x128xf32> to vector<8x128xf32>
    %84 = arith.mulf %81, %83 : vector<8x128xf32>
    %c0_48 = arith.constant 0 : index
    %c0_49 = arith.constant 0 : index
    %85 = vector.load %arg17[%c0_48, %c0_49] : memref<1x128xf32, #tpu.memory_space<vmem>>, vector<1x128xf32>
    %86 = vector.broadcast %85 : vector<1x128xf32> to vector<8x128xf32>
    %87 = arith.addf %84, %86 : vector<8x128xf32>
    %88 = math.tanh %87 : vector<8x128xf32>
    %c0_50 = arith.constant 0 : index
    %c0_51 = arith.constant 0 : index
    %89 = vector.load %arg18[%c0_50, %c0_51] : memref<8x128xf32, #tpu.memory_space<vmem>>, vector<8x128xf32>
    tpu.vector_store %arg18[%c0_50, %c0_51], %88 {strides = array<i32>} : memref<8x128xf32, #tpu.memory_space<vmem>>, vector<8x128xf32>,
    return
  }
}

</mosaic_0001>

<llo_original>
// kernel: binary2latent_forward.1
$region0: #{binary2latent_forward.1}
  #allocation0 [shape = 'u32[]', space=smem, size = 0x4, offset = 0x4, fixed_abs, tag = 'smem constant byte address 0x4 - core index']
  #allocation1 [shape = 'u32[144,128]{1,0:T(1,128)}', space=vmem, size = 0x12000, scoped, tag = 'internal scratch']
  %s0 = inlined_call_operand.hbm [shape: f32[8,10], index: 0, kind: input, shape index: {}]
  %s1 = inlined_call_operand.hbm [shape: bf16[10,64], index: 1, kind: input, shape index: {}]
  %s2 = inlined_call_operand.hbm [shape: f32[1,64], index: 2, kind: input, shape index: {}]
  %s3 = inlined_call_operand.hbm [shape: bf16[64,128], index: 3, kind: input, shape index: {}]
  %s4 = inlined_call_operand.hbm [shape: f32[1,128], index: 4, kind: input, shape index: {}]
  %s5 = inlined_call_operand.hbm [shape: f32[1,128], index: 5, kind: input, shape index: {}]
  %s6 = inlined_call_operand.hbm [shape: f32[1,128], index: 6, kind: input, shape index: {}]
  %s7 = inlined_call_operand.hbm [shape: bf16[128,512], index: 7, kind: input, shape index: {}]
  %s8 = inlined_call_operand.hbm [shape: f32[1,512], index: 8, kind: input, shape index: {}]
  %s9 = inlined_call_operand.hbm [shape: s8[512,1024], index: 9, kind: input, shape index: {}]
  %s10 = inlined_call_operand.hbm [shape: f32[1,1024], index: 10, kind: input, shape index: {}]
  %s11 = inlined_call_operand.hbm [shape: f32[1,1024], index: 11, kind: input, shape index: {}]
  %s12 = inlined_call_operand.hbm [shape: s8[1024,2048], index: 12, kind: input, shape index: {}]
  %s13 = inlined_call_operand.hbm [shape: f32[1,2048], index: 13, kind: input, shape index: {}]
  %s14 = inlined_call_operand.hbm [shape: f32[1,2048], index: 14, kind: input, shape index: {}]
  %s15 = inlined_call_operand.hbm [shape: s8[2048,128], index: 15, kind: input, shape index: {}]
  %s16 = inlined_call_operand.hbm [shape: f32[1,128], index: 16, kind: input, shape index: {}]
  %s17 = inlined_call_operand.hbm [shape: f32[1,128], index: 17, kind: input, shape index: {}]
  %s18 = inlined_call_operand.hbm [shape: f32[8,128], index: 18, kind: output, shape index: {}]
  %s19 = sld [smem:[#allocation0]]
  $region154: #{binary2latent_forward.1} parent=0
    _
  %s21 = ssub.s32 1, %s19
  %s22 = scalar_select 0, %s21, %s19
  $region1: #{binary2latent_forward.1} parent=0
    #allocation2 [shape = 'u8[4096]{0}', space=vmem, size = 0x1000, scoped, tag = 'input window, operand 0, single buffered']
    #allocation3 [shape = 's32[1]{0}', space=sflag, size = 0x4, scoped, tag = 'scoped memory for binary2latent_forward.1']
    #allocation4 [shape = 's32[1]{0}', space=sflag, size = 0x4, scoped, tag = 'scoped memory for binary2latent_forward.1']
    #allocation5 [shape = 'u8[4096]{0}', space=vmem, size = 0x1000, scoped, tag = 'input window, operand 1, single buffered']
    #allocation6 [shape = 's32[1]{0}', space=sflag, size = 0x4, scoped, tag = 'scoped memory for binary2latent_forward.1']
    #allocation7 [shape = 'u8[512]{0}', space=vmem, size = 0x400, scoped, tag = 'input window, operand 2, single buffered']
    #allocation8 [shape = 'u8[16384]{0}', space=vmem, size = 0x4000, scoped, tag = 'input window, operand 3, single buffered']
    #allocation9 [shape = 's32[1]{0}', space=sflag, size = 0x4, scoped, tag = 'scoped memory for binary2latent_forward.1']
    #allocation10 [shape = 'u8[512]{0}', space=vmem, size = 0x400, scoped, tag = 'input window, operand 4, single buffered']
    #allocation11 [shape = 'u8[512]{0}', space=vmem, size = 0x400, scoped, tag = 'input window, operand 5, single buffered']
    #allocation12 [shape = 's32[1]{0}', space=sflag, size = 0x4, scoped, tag = 'scoped memory for binary2latent_forward.1']
    #allocation13 [shape = 'u8[512]{0}', space=vmem, size = 0x400, scoped, tag = 'input window, operand 6, single buffered']
    #allocation14 [shape = 'u8[131072]{0}', space=vmem, size = 0x20000, scoped, tag = 'input window, operand 7, single buffered']
    #allocation15 [shape = 's32[1]{0}', space=sflag, size = 0x4, scoped, tag = 'scoped memory for binary2latent_forward.1']
    #allocation16 [shape = 'u8[2048]{0}', space=vmem, size = 0x800, scoped, tag = 'input window, operand 8, single buffered']
    #allocation17 [shape = 'u8[524288]{0}', space=vmem, size = 0x80000, scoped, tag = 'input window, operand 9, single buffered']
    #allocation18 [shape = 's32[1]{0}', space=sflag, size = 0x4, scoped, tag = 'scoped memory for binary2latent_forward.1']
    #allocation19 [shape = 'u8[4096]{0}', space=vmem, size = 0x1000, scoped, tag = 'input window, operand 10, single buffered']
    #allocation20 [shape = 'u8[4096]{0}', space=vmem, size = 0x1000, scoped, tag = 'input window, operand 11, single buffered']
    #allocation21 [shape = 's32[1]{0}', space=sflag, size = 0x4, scoped, tag = 'scoped memory for binary2latent_forward.1']
    #allocation22 [shape = 'u8[2097152]{0}', space=vmem, size = 0x200000, scoped, tag = 'input window, operand 12, single buffered']
    #allocation23 [shape = 'u8[8192]{0}', space=vmem, size = 0x2000, scoped, tag = 'input window, operand 13, single buffered']
    #allocation24 [shape = 's32[1]{0}', space=sflag, size = 0x4, scoped, tag = 'scoped memory for binary2latent_forward.1']
    #allocation25 [shape = 'u8[8192]{0}', space=vmem, size = 0x2000, scoped, tag = 'input window, operand 14, single buffered']
    #allocation26 [shape = 'u8[262144]{0}', space=vmem, size = 0x40000, scoped, tag = 'input window, operand 15, single buffered']
    #allocation27 [shape = 's32[1]{0}', space=sflag, size = 0x4, scoped, tag = 'scoped memory for binary2latent_forward.1']
    #allocation28 [shape = 'u8[512]{0}', space=vmem, size = 0x400, scoped, tag = 'input window, operand 16, single buffered']
    #allocation29 [shape = 'u8[512]{0}', space=vmem, size = 0x400, scoped, tag = 'input window, operand 17, single buffered']
    #allocation30 [shape = 's32[1]{0}', space=sflag, size = 0x4, scoped, tag = 'scoped memory for binary2latent_forward.1']
    #allocation31 [shape = 'u8[4096]{0}', space=vmem, size = 0x1000, scoped, tag = 'output window, operand 0, single buffered']
    %23 = vsyncpa [#allocation3], 0
    %24 = vsyncpa [#allocation6], 0
    %25 = vsyncpa [#allocation9], 0
    %26 = vsyncpa [#allocation12], 0
    %27 = vsyncpa [#allocation15], 0
    %28 = vsyncpa [#allocation18], 0
    %29 = vsyncpa [#allocation21], 0
    %30 = vsyncpa [#allocation24], 0
    %31 = vsyncpa [#allocation27], 0
    %32 = vsyncpa [#allocation30], 0
    %33 = vsyncpa [#allocation4], 0
    // Predicated region
    $region2: #{binary2latent_forward.1} parent=1 // pred_check
      _
    $region3: #{binary2latent_forward.1} parent=1 // pred_check_branch
      %35 = sbr.rel (0) target = $region5
    $region4: #{binary2latent_forward.1} parent=1 // pred_region
      %s37 = ssub.s32 128, 128
      %38 = vsyncadd [#allocation3], %s37
      %s40 = sshll.u32 [#allocation2], 4
      %s41 = int_to_ptr.vmem [resolvable:$true] %s40
      %43 = dma.hbm_to_vmem [thread:$0]  %s0, 128, %s41, [#allocation3]
    $region5: #{binary2latent_forward.1} parent=1 // pred_fallthru
      _
    // Predicated region
    $region6: #{binary2latent_forward.1} parent=1 // pred_check
      _
    $region7: #{binary2latent_forward.1} parent=1 // pred_check_branch
      %45 = sbr.rel (0) target = $region9
    $region8: #{binary2latent_forward.1} parent=1 // pred_region
      %s47 = ssub.s32 128, 128
      %48 = vsyncadd [#allocation6], %s47
      %s49 = sshll.u32 [#allocation5], 4
      %s50 = int_to_ptr.vmem [resolvable:$true] %s49
      %55 = dma.hbm_to_vmem [thread:$0]  %s1, 128, %s50, [#allocation6], 64, 64, 4
    $region9: #{binary2latent_forward.1} parent=1 // pred_fallthru
      _
    // Predicated region
    $region10: #{binary2latent_forward.1} parent=1 // pred_check
      _
    $region11: #{binary2latent_forward.1} parent=1 // pred_check_branch
      %57 = sbr.rel (0) target = $region13
    $region12: #{binary2latent_forward.1} parent=1 // pred_region
      %s59 = ssub.s32 16, 16
      %60 = vsyncadd [#allocation6], %s59
      %s62 = sshll.u32 [#allocation7], 4
      %s63 = int_to_ptr.vmem [resolvable:$true] %s62
      %65 = dma.hbm_to_vmem [thread:$0]  %s2, 16, %s63, [#allocation6]
    $region13: #{binary2latent_forward.1} parent=1 // pred_fallthru
      _
    // Predicated region
    $region14: #{binary2latent_forward.1} parent=1 // pred_check
      _
    $region15: #{binary2latent_forward.1} parent=1 // pred_check_branch
      %67 = sbr.rel (0) target = $region17
    $region16: #{binary2latent_forward.1} parent=1 // pred_region
      %s69 = ssub.s32 512, 512
      %70 = vsyncadd [#allocation9], %s69
      %s71 = sshll.u32 [#allocation8], 4
      %s72 = int_to_ptr.vmem [resolvable:$true] %s71
      %77 = dma.hbm_to_vmem [thread:$0]  %s3, 512, %s72, [#allocation9], 64, 64, 4
    $region17: #{binary2latent_forward.1} parent=1 // pred_fallthru
      _
    // Predicated region
    $region18: #{binary2latent_forward.1} parent=1 // pred_check
      _
    $region19: #{binary2latent_forward.1} parent=1 // pred_check_branch
      %79 = sbr.rel (0) target = $region21
    $region20: #{binary2latent_forward.1} parent=1 // pred_region
      %s81 = ssub.s32 16, 16
      %82 = vsyncadd [#allocation9], %s81
      %s84 = sshll.u32 [#allocation10], 4
      %s85 = int_to_ptr.vmem [resolvable:$true] %s84
      %87 = dma.hbm_to_vmem [thread:$0]  %s4, 16, %s85, [#allocation9]
    $region21: #{binary2latent_forward.1} parent=1 // pred_fallthru
      _
    // Predicated region
    $region22: #{binary2latent_forward.1} parent=1 // pred_check
      _
    $region23: #{binary2latent_forward.1} parent=1 // pred_check_branch
      %89 = sbr.rel (0) target = $region25
    $region24: #{binary2latent_forward.1} parent=1 // pred_region
      %s91 = ssub.s32 16, 16
      %92 = vsyncadd [#allocation12], %s91
      %s94 = sshll.u32 [#allocation11], 4
      %s95 = int_to_ptr.vmem [resolvable:$true] %s94
      %97 = dma.hbm_to_vmem [thread:$0]  %s5, 16, %s95, [#allocation12]
    $region25: #{binary2latent_forward.1} parent=1 // pred_fallthru
      _
    // Predicated region
    $region26: #{binary2latent_forward.1} parent=1 // pred_check
      _
    $region27: #{binary2latent_forward.1} parent=1 // pred_check_branch
      %99 = sbr.rel (0) target = $region29
    $region28: #{binary2latent_forward.1} parent=1 // pred_region
      %s101 = ssub.s32 16, 16
      %102 = vsyncadd [#allocation12], %s101
      %s104 = sshll.u32 [#allocation13], 4
      %s105 = int_to_ptr.vmem [resolvable:$true] %s104
      %107 = dma.hbm_to_vmem [thread:$0]  %s6, 16, %s105, [#allocation12]
    $region29: #{binary2latent_forward.1} parent=1 // pred_fallthru
      _
    // Predicated region
    $region30: #{binary2latent_forward.1} parent=1 // pred_check
      _
    $region31: #{binary2latent_forward.1} parent=1 // pred_check_branch
      %109 = sbr.rel (0) target = $region33
    $region32: #{binary2latent_forward.1} parent=1 // pred_region
      %s111 = ssub.s32 4096, 4096
      %112 = vsyncadd [#allocation15], %s111
      %s113 = sshll.u32 [#allocation14], 4
      %s114 = int_to_ptr.vmem [resolvable:$true] %s113
      %119 = dma.hbm_to_vmem [thread:$0]  %s7, 4096, %s114, [#allocation15], 256, 256, 16
    $region33: #{binary2latent_forward.1} parent=1 // pred_fallthru
      _
    // Predicated region
    $region34: #{binary2latent_forward.1} parent=1 // pred_check
      _
    $region35: #{binary2latent_forward.1} parent=1 // pred_check_branch
      %121 = sbr.rel (0) target = $region37
    $region36: #{binary2latent_forward.1} parent=1 // pred_region
      %s123 = ssub.s32 64, 64
      %124 = vsyncadd [#allocation15], %s123
      %s126 = sshll.u32 [#allocation16], 4
      %s127 = int_to_ptr.vmem [resolvable:$true] %s126
      %129 = dma.hbm_to_vmem [thread:$0]  %s8, 64, %s127, [#allocation15]
    $region37: #{binary2latent_forward.1} parent=1 // pred_fallthru
      _
    // Predicated region
    $region38: #{binary2latent_forward.1} parent=1 // pred_check
      _
    $region39: #{binary2latent_forward.1} parent=1 // pred_check_branch
      %131 = sbr.rel (0) target = $region41
    $region40: #{binary2latent_forward.1} parent=1 // pred_region
      %s133 = ssub.s32 16384, 16384
      %134 = vsyncadd [#allocation18], %s133
      %s135 = sshll.u32 [#allocation17], 4
      %s136 = int_to_ptr.vmem [resolvable:$true] %s135
      %141 = dma.hbm_to_vmem [thread:$0]  %s9, 16384, %s136, [#allocation18], 1024, 1024, 64
    $region41: #{binary2latent_forward.1} parent=1 // pred_fallthru
      _
    // Predicated region
    $region42: #{binary2latent_forward.1} parent=1 // pred_check
      _
    $region43: #{binary2latent_forward.1} parent=1 // pred_check_branch
      %143 = sbr.rel (0) target = $region45
    $region44: #{binary2latent_forward.1} parent=1 // pred_region
      %s145 = ssub.s32 128, 128
      %146 = vsyncadd [#allocation18], %s145
      %s148 = sshll.u32 [#allocation19], 4
      %s149 = int_to_ptr.vmem [resolvable:$true] %s148
      %151 = dma.hbm_to_vmem [thread:$0]  %s10, 128, %s149, [#allocation18]
    $region45: #{binary2latent_forward.1} parent=1 // pred_fallthru
      _
    // Predicated region
    $region46: #{binary2latent_forward.1} parent=1 // pred_check
      _
    $region47: #{binary2latent_forward.1} parent=1 // pred_check_branch
      %153 = sbr.rel (0) target = $region49
    $region48: #{binary2latent_forward.1} parent=1 // pred_region
      %s155 = ssub.s32 128, 128
      %156 = vsyncadd [#allocation21], %s155
      %s158 = sshll.u32 [#allocation20], 4
      %s159 = int_to_ptr.vmem [resolvable:$true] %s158
      %161 = dma.hbm_to_vmem [thread:$0]  %s11, 128, %s159, [#allocation21]
    $region49: #{binary2latent_forward.1} parent=1 // pred_fallthru
      _
    // Predicated region
    $region50: #{binary2latent_forward.1} parent=1 // pred_check
      _
    $region51: #{binary2latent_forward.1} parent=1 // pred_check_branch
      %163 = sbr.rel (0) target = $region53
    $region52: #{binary2latent_forward.1} parent=1 // pred_region
      %s165 = ssub.s32 65536, 65536
      %166 = vsyncadd [#allocation21], %s165
      %s167 = sshll.u32 [#allocation22], 4
      %s168 = int_to_ptr.vmem [resolvable:$true] %s167
      %173 = dma.hbm_to_vmem [thread:$0]  %s12, 65536, %s168, [#allocation21], 2048, 2048, 128
    $region53: #{binary2latent_forward.1} parent=1 // pred_fallthru
      _
    // Predicated region
    $region54: #{binary2latent_forward.1} parent=1 // pred_check
      _
    $region55: #{binary2latent_forward.1} parent=1 // pred_check_branch
      %175 = sbr.rel (0) target = $region57
    $region56: #{binary2latent_forward.1} parent=1 // pred_region
      %s177 = ssub.s32 256, 256
      %178 = vsyncadd [#allocation24], %s177
      %s180 = sshll.u32 [#allocation23], 4
      %s181 = int_to_ptr.vmem [resolvable:$true] %s180
      %183 = dma.hbm_to_vmem [thread:$0]  %s13, 256, %s181, [#allocation24]
    $region57: #{binary2latent_forward.1} parent=1 // pred_fallthru
      _
    // Predicated region
    $region58: #{binary2latent_forward.1} parent=1 // pred_check
      _
    $region59: #{binary2latent_forward.1} parent=1 // pred_check_branch
      %185 = sbr.rel (0) target = $region61
    $region60: #{binary2latent_forward.1} parent=1 // pred_region
      %s187 = ssub.s32 256, 256
      %188 = vsyncadd [#allocation24], %s187
      %s190 = sshll.u32 [#allocation25], 4
      %s191 = int_to_ptr.vmem [resolvable:$true] %s190
      %193 = dma.hbm_to_vmem [thread:$0]  %s14, 256, %s191, [#allocation24]
    $region61: #{binary2latent_forward.1} parent=1 // pred_fallthru
      _
    // Predicated region
    $region62: #{binary2latent_forward.1} parent=1 // pred_check
      _
    $region63: #{binary2latent_forward.1} parent=1 // pred_check_branch
      %195 = sbr.rel (0) target = $region65
    $region64: #{binary2latent_forward.1} parent=1 // pred_region
      %s197 = ssub.s32 8192, 8192
      %198 = vsyncadd [#allocation27], %s197
      %s199 = sshll.u32 [#allocation26], 4
      %s200 = int_to_ptr.vmem [resolvable:$true] %s199
      %205 = dma.hbm_to_vmem [thread:$0]  %s15, 8192, %s200, [#allocation27], 128, 128, 8
    $region65: #{binary2latent_forward.1} parent=1 // pred_fallthru
      _
    // Predicated region
    $region66: #{binary2latent_forward.1} parent=1 // pred_check
      _
    $region67: #{binary2latent_forward.1} parent=1 // pred_check_branch
      %207 = sbr.rel (0) target = $region69
    $region68: #{binary2latent_forward.1} parent=1 // pred_region
      %s209 = ssub.s32 16, 16
      %210 = vsyncadd [#allocation27], %s209
      %s212 = sshll.u32 [#allocation28], 4
      %s213 = int_to_ptr.vmem [resolvable:$true] %s212
      %215 = dma.hbm_to_vmem [thread:$0]  %s16, 16, %s213, [#allocation27]
    $region69: #{binary2latent_forward.1} parent=1 // pred_fallthru
      _
    // Predicated region
    $region70: #{binary2latent_forward.1} parent=1 // pred_check
      _
    $region71: #{binary2latent_forward.1} parent=1 // pred_check_branch
      %217 = sbr.rel (0) target = $region73
    $region72: #{binary2latent_forward.1} parent=1 // pred_region
      %s219 = ssub.s32 16, 16
      %220 = vsyncadd [#allocation30], %s219
      %s222 = sshll.u32 [#allocation29], 4
      %s223 = int_to_ptr.vmem [resolvable:$true] %s222
      %225 = dma.hbm_to_vmem [thread:$0]  %s17, 16, %s223, [#allocation30]
    $region73: #{binary2latent_forward.1} parent=1 // pred_fallthru
      _
    // Predicated region
    $region74: #{binary2latent_forward.1} parent=1 // pred_check
      _
    $region75: #{binary2latent_forward.1} parent=1 // pred_check_branch
      %227 = sbr.rel (0) target = $region77
    $region76: #{binary2latent_forward.1} parent=1 // pred_region
      %228 = dma.done [#allocation3], 128
    $region77: #{binary2latent_forward.1} parent=1 // pred_fallthru
      _
    // Predicated region
    $region78: #{binary2latent_forward.1} parent=1 // pred_check
      _
    $region79: #{binary2latent_forward.1} parent=1 // pred_check_branch
      %230 = sbr.rel (0) target = $region81
    $region80: #{binary2latent_forward.1} parent=1 // pred_region
      %231 = dma.done [#allocation6], 128
    $region81: #{binary2latent_forward.1} parent=1 // pred_fallthru
      _
    // Predicated region
    $region82: #{binary2latent_forward.1} parent=1 // pred_check
      _
    $region83: #{binary2latent_forward.1} parent=1 // pred_check_branch
      %233 = sbr.rel (0) target = $region85
    $region84: #{binary2latent_forward.1} parent=1 // pred_region
      %234 = dma.done [#allocation6], 16
    $region85: #{binary2latent_forward.1} parent=1 // pred_fallthru
      _
    // Predicated region
    $region86: #{binary2latent_forward.1} parent=1 // pred_check
      _
    $region87: #{binary2latent_forward.1} parent=1 // pred_check_branch
      %236 = sbr.rel (0) target = $region89
    $region88: #{binary2latent_forward.1} parent=1 // pred_region
      %237 = dma.done [#allocation9], 512
    $region89: #{binary2latent_forward.1} parent=1 // pred_fallthru
      _
    // Predicated region
    $region90: #{binary2latent_forward.1} parent=1 // pred_check
      _
    $region91: #{binary2latent_forward.1} parent=1 // pred_check_branch
      %239 = sbr.rel (0) target = $region93
    $region92: #{binary2latent_forward.1} parent=1 // pred_region
      %240 = dma.done [#allocation9], 16
    $region93: #{binary2latent_forward.1} parent=1 // pred_fallthru
      _
    // Predicated region
    $region94: #{binary2latent_forward.1} parent=1 // pred_check
      _
    $region95: #{binary2latent_forward.1} parent=1 // pred_check_branch
      %242 = sbr.rel (0) target = $region97
    $region96: #{binary2latent_forward.1} parent=1 // pred_region
      %243 = dma.done [#allocation12], 16
    $region97: #{binary2latent_forward.1} parent=1 // pred_fallthru
      _
    // Predicated region
    $region98: #{binary2latent_forward.1} parent=1 // pred_check
      _
    $region99: #{binary2latent_forward.1} parent=1 // pred_check_branch
      %245 = sbr.rel (0) target = $region101
    $region100: #{binary2latent_forward.1} parent=1 // pred_region
      %246 = dma.done [#allocation12], 16
    $region101: #{binary2latent_forward.1} parent=1 // pred_fallthru
      _
    // Predicated region
    $region102: #{binary2latent_forward.1} parent=1 // pred_check
      _
    $region103: #{binary2latent_forward.1} parent=1 // pred_check_branch
      %248 = sbr.rel (0) target = $region105
    $region104: #{binary2latent_forward.1} parent=1 // pred_region
      %249 = dma.done [#allocation15], 4096
    $region105: #{binary2latent_forward.1} parent=1 // pred_fallthru
      _
    // Predicated region
    $region106: #{binary2latent_forward.1} parent=1 // pred_check
      _
    $region107: #{binary2latent_forward.1} parent=1 // pred_check_branch
      %251 = sbr.rel (0) target = $region109
    $region108: #{binary2latent_forward.1} parent=1 // pred_region
      %252 = dma.done [#allocation15], 64
    $region109: #{binary2latent_forward.1} parent=1 // pred_fallthru
      _
    // Predicated region
    $region110: #{binary2latent_forward.1} parent=1 // pred_check
      _
    $region111: #{binary2latent_forward.1} parent=1 // pred_check_branch
      %254 = sbr.rel (0) target = $region113
    $region112: #{binary2latent_forward.1} parent=1 // pred_region
      %255 = dma.done [#allocation18], 16384
    $region113: #{binary2latent_forward.1} parent=1 // pred_fallthru
      _
    // Predicated region
    $region114: #{binary2latent_forward.1} parent=1 // pred_check
      _
    $region115: #{binary2latent_forward.1} parent=1 // pred_check_branch
      %257 = sbr.rel (0) target = $region117
    $region116: #{binary2latent_forward.1} parent=1 // pred_region
      %258 = dma.done [#allocation18], 128
    $region117: #{binary2latent_forward.1} parent=1 // pred_fallthru
      _
    // Predicated region
    $region118: #{binary2latent_forward.1} parent=1 // pred_check
      _
    $region119: #{binary2latent_forward.1} parent=1 // pred_check_branch
      %260 = sbr.rel (0) target = $region121
    $region120: #{binary2latent_forward.1} parent=1 // pred_region
      %261 = dma.done [#allocation21], 128
    $region121: #{binary2latent_forward.1} parent=1 // pred_fallthru
      _
    // Predicated region
    $region122: #{binary2latent_forward.1} parent=1 // pred_check
      _
    $region123: #{binary2latent_forward.1} parent=1 // pred_check_branch
      %263 = sbr.rel (0) target = $region125
    $region124: #{binary2latent_forward.1} parent=1 // pred_region
      %264 = dma.done [#allocation21], 65536
    $region125: #{binary2latent_forward.1} parent=1 // pred_fallthru
      _
    // Predicated region
    $region126: #{binary2latent_forward.1} parent=1 // pred_check
      _
    $region127: #{binary2latent_forward.1} parent=1 // pred_check_branch
      %266 = sbr.rel (0) target = $region129
    $region128: #{binary2latent_forward.1} parent=1 // pred_region
      %267 = dma.done [#allocation24], 256
    $region129: #{binary2latent_forward.1} parent=1 // pred_fallthru
      _
    // Predicated region
    $region130: #{binary2latent_forward.1} parent=1 // pred_check
      _
    $region131: #{binary2latent_forward.1} parent=1 // pred_check_branch
      %269 = sbr.rel (0) target = $region133
    $region132: #{binary2latent_forward.1} parent=1 // pred_region
      %270 = dma.done [#allocation24], 256
    $region133: #{binary2latent_forward.1} parent=1 // pred_fallthru
      _
    // Predicated region
    $region134: #{binary2latent_forward.1} parent=1 // pred_check
      _
    $region135: #{binary2latent_forward.1} parent=1 // pred_check_branch
      %272 = sbr.rel (0) target = $region137
    $region136: #{binary2latent_forward.1} parent=1 // pred_region
      %273 = dma.done [#allocation27], 8192
    $region137: #{binary2latent_forward.1} parent=1 // pred_fallthru
      _
    // Predicated region
    $region138: #{binary2latent_forward.1} parent=1 // pred_check
      _
    $region139: #{binary2latent_forward.1} parent=1 // pred_check_branch
      %275 = sbr.rel (0) target = $region141
    $region140: #{binary2latent_forward.1} parent=1 // pred_region
      %276 = dma.done [#allocation27], 16
    $region141: #{binary2latent_forward.1} parent=1 // pred_fallthru
      _
    // Predicated region
    $region142: #{binary2latent_forward.1} parent=1 // pred_check
      _
    $region143: #{binary2latent_forward.1} parent=1 // pred_check_branch
      %278 = sbr.rel (0) target = $region145
    $region144: #{binary2latent_forward.1} parent=1 // pred_region
      %279 = dma.done [#allocation30], 16
    $region145: #{binary2latent_forward.1} parent=1 // pred_fallthru
      _
    %v281 = vld [vmem:[#allocation2] sm:$0xff]
    %v282 = vpack.c.bf16 %v281, %v281
    %v283 = vld [vmem:[#allocation5] sm:$0xf]
    %v284 = vld [vmem:[#allocation5 + $0x4] sm:$0x1]
    %v285 = vld [vmem:[#allocation7] sm:$0x1]
    %v287 = vlaneseq
    %v288 = vshrl.u32 %v287, 7
    %v289 = vsub.s32 0, %v288
    %v290 = vrot.slane %v285, %v289
    %v294 = vunpack.c.l.b16 %v283
    %v295 = vunpack.c.l.b16 %v284
    %v296 = vpack.c.b16 %v295, %v294
    %vm297 = vcmask 80896
    %v299 = vsel %vm297, %v282, 0
    %vm301 = vcmask 1044480
    %v303 = vsel %vm301, %v296, 0
    %305 = vmatprep.subr.bf16.mxu0 0
    %306 = vmatpush1.bf16.msra.mxu0 %v303
    %307 = vmatprep.subr.bf16.mxu0 0
    %308 = vmatpush1.bf16.msra.mxu0 0
    %309 = vmatprep.subr.bf16.mxu0 0
    %310 = vmatpush1.bf16.msra.mxu0 0
    %311 = vmatprep.subr.bf16.mxu0 0
    %312 = vmatpush1.bf16.msra.mxu0 0
    %313 = vmatprep.subr.bf16.mxu0 0
    %314 = vmatpush1.bf16.msra.mxu0 0
    %315 = vmatprep.subr.bf16.mxu0 0
    %316 = vmatpush1.bf16.msra.mxu0 0
    %317 = vmatprep.subr.bf16.mxu0 0
    %318 = vmatpush1.bf16.msra.mxu0 0
    %319 = vmatprep.subr.bf16.mxu0 0
    %320 = vmatpush1.bf16.msra.mxu0 0
    %321 = vmatprep.subr.bf16.mxu0 0
    %322 = vmatpush1.bf16.msra.mxu0 0
    %323 = vmatprep.subr.bf16.mxu0 0
    %324 = vmatpush1.bf16.msra.mxu0 0
    %325 = vmatprep.subr.bf16.mxu0 0
    %326 = vmatpush1.bf16.msra.mxu0 0
    %327 = vmatprep.subr.bf16.mxu0 0
    %328 = vmatpush1.bf16.msra.mxu0 0
    %329 = vmatprep.subr.bf16.mxu0 0
    %330 = vmatpush1.bf16.msra.mxu0 0
    %331 = vmatprep.subr.bf16.mxu0 0
    %332 = vmatpush1.bf16.msra.mxu0 0
    %333 = vmatprep.subr.bf16.mxu0 0
    %334 = vmatpush1.bf16.msra.mxu0 0
    %335 = vmatprep.subr.bf16.mxu0 0
    %336 = vmatpush1.bf16.msra.mxu0 0
    %337 = vmatprep.mubr.bf16.mxu0 0
    %338 = vmatmul.mubr.bf16.gmra.mrb[0].mxu0 %v299
    %v339 = vpop.f32.mrb[0].mxu0
    %v340 = vadd.f32 %v290, %v339
    %v341 = vpop.f32.mrb[0].mxu0
    %v342 = vpop.f32.mrb[0].mxu0
    %v343 = vpop.f32.mrb[0].mxu0
    %344 = vdwg.mxu0
    %v345 = vmax.f32 %v340, 0.0
    %v346 = vpack.c.bf16 %v345, %v345
    %v347 = vld [vmem:[#allocation8] sm:$0xf]
    %v348 = vld [vmem:[#allocation8 + $0x4] sm:$0xf]
    %v349 = vld [vmem:[#allocation8 + $0x8] sm:$0xf]
    %v350 = vld [vmem:[#allocation8 + $0xc] sm:$0xf]
    %v351 = vld [vmem:[#allocation8 + $0x10] sm:$0xf]
    %v352 = vld [vmem:[#allocation8 + $0x14] sm:$0xf]
    %v353 = vld [vmem:[#allocation8 + $0x18] sm:$0xf]
    %v354 = vld [vmem:[#allocation8 + $0x1c] sm:$0xf]
    %v355 = vld [vmem:[#allocation10] sm:$0x1]
    %v357 = vlaneseq
    %v358 = vshrl.u32 %v357, 7
    %v359 = vsub.s32 0, %v358
    %v360 = vrot.slane %v355, %v359
    %v370 = vunpack.c.l.b16 %v347
    %v371 = vunpack.c.l.b16 %v348
    %v372 = vunpack.c.l.b16 %v349
    %v373 = vunpack.c.l.b16 %v350
    %v374 = vunpack.c.l.b16 %v351
    %v375 = vunpack.c.l.b16 %v352
    %v376 = vunpack.c.l.b16 %v353
    %v377 = vunpack.c.l.b16 %v354
    %v378 = vpack.c.b16 %v371, %v370
    %v379 = vpack.c.b16 %v373, %v372
    %v380 = vpack.c.b16 %v375, %v374
    %v381 = vpack.c.b16 %v377, %v376
    %vm386 = vcmask 523264
    %v388 = vsel %vm386, %v346, 0
    %390 = vmatprep.subr.bf16.mxu0 0
    %391 = vmatpush1.bf16.msra.mxu0 %v378
    %392 = vmatprep.subr.bf16.mxu0 0
    %393 = vmatpush1.bf16.msra.mxu0 %v379
    %394 = vmatprep.subr.bf16.mxu0 0
    %395 = vmatpush1.bf16.msra.mxu0 %v380
    %396 = vmatprep.subr.bf16.mxu0 0
    %397 = vmatpush1.bf16.msra.mxu0 %v381
    %398 = vmatprep.subr.bf16.mxu0 0
    %399 = vmatpush1.bf16.msra.mxu0 0
    %400 = vmatprep.subr.bf16.mxu0 0
    %401 = vmatpush1.bf16.msra.mxu0 0
    %402 = vmatprep.subr.bf16.mxu0 0
    %403 = vmatpush1.bf16.msra.mxu0 0
    %404 = vmatprep.subr.bf16.mxu0 0
    %405 = vmatpush1.bf16.msra.mxu0 0
    %406 = vmatprep.subr.bf16.mxu0 0
    %407 = vmatpush1.bf16.msra.mxu0 0
    %408 = vmatprep.subr.bf16.mxu0 0
    %409 = vmatpush1.bf16.msra.mxu0 0
    %410 = vmatprep.subr.bf16.mxu0 0
    %411 = vmatpush1.bf16.msra.mxu0 0
    %412 = vmatprep.subr.bf16.mxu0 0
    %413 = vmatpush1.bf16.msra.mxu0 0
    %414 = vmatprep.subr.bf16.mxu0 0
    %415 = vmatpush1.bf16.msra.mxu0 0
    %416 = vmatprep.subr.bf16.mxu0 0
    %417 = vmatpush1.bf16.msra.mxu0 0
    %418 = vmatprep.subr.bf16.mxu0 0
    %419 = vmatpush1.bf16.msra.mxu0 0
    %420 = vmatprep.subr.bf16.mxu0 0
    %421 = vmatpush1.bf16.msra.mxu0 0
    %422 = vmatprep.mubr.bf16.mxu0 0
    %423 = vmatmul.mubr.bf16.gmra.mrb[0].mxu0 %v388
    %v424 = vpop.f32.mrb[0].mxu0
    %v425 = vadd.f32 %v360, %v424
    %v426 = vpop.f32.mrb[0].mxu0
    %v427 = vpop.f32.mrb[0].mxu0
    %v428 = vpop.f32.mrb[0].mxu0
    %429 = vdwg.mxu0
    %v430 = vmax.f32 %v425, 0.0
    %v431 = vrot.slane %v430, 4
    %v432 = vadd.f32 %v430, %v431
    %v433 = vrot.slane %v432, 2
    %v434 = vadd.f32 %v432, %v433
    %v435 = vrot.slane %v434, 1
    %v436 = vadd.f32 %v434, %v435
    %v437 = vrcp.pop 8.0
    %v438 = vmul.f32 %v436, %v437
    %v439 = vsub.f32 %v430, %v438
    %v440 = vmul.f32 %v439, %v439
    %v441 = vrot.slane %v440, 4
    %v442 = vadd.f32 %v440, %v441
    %v443 = vrot.slane %v442, 2
    %v444 = vadd.f32 %v442, %v443
    %v445 = vrot.slane %v444, 1
    %v446 = vadd.f32 %v444, %v445
    %v447 = vmul.f32 %v446, %v437
    %v448 = vadd.f32 %v447, 1e-05
    %v449 = vrsqrt.pop %v448
    %v450 = vmul.f32 %v439, %v449
    %v451 = vld [vmem:[#allocation11] sm:$0x1]
    %v453 = vlaneseq
    %v454 = vshrl.u32 %v453, 7
    %v455 = vsub.s32 0, %v454
    %v456 = vrot.slane %v451, %v455
    %v458 = vmul.f32 %v450, %v456
    %v459 = vld [vmem:[#allocation13] sm:$0x1]
    %v461 = vlaneseq
    %v462 = vshrl.u32 %v461, 7
    %v463 = vsub.s32 0, %v462
    %v464 = vrot.slane %v459, %v463
    %v466 = vadd.f32 %v458, %v464
    %v467 = vpack.c.bf16 %v466, %v466
    %v468 = vld [vmem:[#allocation14] sm:$0xff]
    %v469 = vld [vmem:[#allocation14 + $0x8] sm:$0xff]
    %v470 = vld [vmem:[#allocation14 + $0x10] sm:$0xff]
    %v471 = vld [vmem:[#allocation14 + $0x18] sm:$0xff]
    %v472 = vld [vmem:[#allocation14 + $0x20] sm:$0xff]
    %v473 = vld [vmem:[#allocation14 + $0x28] sm:$0xff]
    %v474 = vld [vmem:[#allocation14 + $0x30] sm:$0xff]
    %v475 = vld [vmem:[#allocation14 + $0x38] sm:$0xff]
    %v476 = vld [vmem:[#allocation14 + $0x40] sm:$0xff]
    %v477 = vld [vmem:[#allocation14 + $0x48] sm:$0xff]
    %v478 = vld [vmem:[#allocation14 + $0x50] sm:$0xff]
    %v479 = vld [vmem:[#allocation14 + $0x58] sm:$0xff]
    %v480 = vld [vmem:[#allocation14 + $0x60] sm:$0xff]
    %v481 = vld [vmem:[#allocation14 + $0x68] sm:$0xff]
    %v482 = vld [vmem:[#allocation14 + $0x70] sm:$0xff]
    %v483 = vld [vmem:[#allocation14 + $0x78] sm:$0xff]
    %v484 = vld [vmem:[#allocation14 + $0x80] sm:$0xff]
    %v485 = vld [vmem:[#allocation14 + $0x88] sm:$0xff]
    %v486 = vld [vmem:[#allocation14 + $0x90] sm:$0xff]
    %v487 = vld [vmem:[#allocation14 + $0x98] sm:$0xff]
    %v488 = vld [vmem:[#allocation14 + $0xa0] sm:$0xff]
    %v489 = vld [vmem:[#allocation14 + $0xa8] sm:$0xff]
    %v490 = vld [vmem:[#allocation14 + $0xb0] sm:$0xff]
    %v491 = vld [vmem:[#allocation14 + $0xb8] sm:$0xff]
    %v492 = vld [vmem:[#allocation14 + $0xc0] sm:$0xff]
    %v493 = vld [vmem:[#allocation14 + $0xc8] sm:$0xff]
    %v494 = vld [vmem:[#allocation14 + $0xd0] sm:$0xff]
    %v495 = vld [vmem:[#allocation14 + $0xd8] sm:$0xff]
    %v496 = vld [vmem:[#allocation14 + $0xe0] sm:$0xff]
    %v497 = vld [vmem:[#allocation14 + $0xe8] sm:$0xff]
    %v498 = vld [vmem:[#allocation14 + $0xf0] sm:$0xff]
    %v499 = vld [vmem:[#allocation14 + $0xf8] sm:$0xff]
    %v500 = vld [vmem:[#allocation16] sm:$0xf]
    %v502 = vlaneseq
    %v503 = vshrl.u32 %v502, 7
    %v504 = vsub.s32 0, %v503
    %v505 = vrot.slane %v500, %v504
    %v506 = vlaneseq
    %v507 = vshrl.u32 %v506, 7
    %v508 = vsub.s32 1, %v507
    %v509 = vrot.slane %v500, %v508
    %v510 = vlaneseq
    %v511 = vshrl.u32 %v510, 7
    %v512 = vsub.s32 2, %v511
    %v513 = vrot.slane %v500, %v512
    %v514 = vlaneseq
    %v515 = vshrl.u32 %v514, 7
    %v516 = vsub.s32 3, %v515
    %v517 = vrot.slane %v500, %v516
    %v554 = vunpack.c.l.b16 %v468
    %v555 = vunpack.c.h.b16 %v468
    %v556 = vunpack.c.l.b16 %v469
    %v557 = vunpack.c.h.b16 %v469
    %v558 = vunpack.c.l.b16 %v470
    %v559 = vunpack.c.h.b16 %v470
    %v560 = vunpack.c.l.b16 %v471
    %v561 = vunpack.c.h.b16 %v471
    %v562 = vunpack.c.l.b16 %v472
    %v563 = vunpack.c.h.b16 %v472
    %v564 = vunpack.c.l.b16 %v473
    %v565 = vunpack.c.h.b16 %v473
    %v566 = vunpack.c.l.b16 %v474
    %v567 = vunpack.c.h.b16 %v474
    %v568 = vunpack.c.l.b16 %v475
    %v569 = vunpack.c.h.b16 %v475
    %v570 = vunpack.c.l.b16 %v476
    %v571 = vunpack.c.h.b16 %v476
    %v572 = vunpack.c.l.b16 %v477
    %v573 = vunpack.c.h.b16 %v477
    %v574 = vunpack.c.l.b16 %v478
    %v575 = vunpack.c.h.b16 %v478
    %v576 = vunpack.c.l.b16 %v479
    %v577 = vunpack.c.h.b16 %v479
    %v578 = vunpack.c.l.b16 %v480
    %v579 = vunpack.c.h.b16 %v480
    %v580 = vunpack.c.l.b16 %v481
    %v581 = vunpack.c.h.b16 %v481
    %v582 = vunpack.c.l.b16 %v482
    %v583 = vunpack.c.h.b16 %v482
    %v584 = vunpack.c.l.b16 %v483
    %v585 = vunpack.c.h.b16 %v483
    %v586 = vunpack.c.l.b16 %v484
    %v587 = vunpack.c.h.b16 %v484
    %v588 = vunpack.c.l.b16 %v485
    %v589 = vunpack.c.h.b16 %v485
    %v590 = vunpack.c.l.b16 %v486
    %v591 = vunpack.c.h.b16 %v486
    %v592 = vunpack.c.l.b16 %v487
    %v593 = vunpack.c.h.b16 %v487
    %v594 = vunpack.c.l.b16 %v488
    %v595 = vunpack.c.h.b16 %v488
    %v596 = vunpack.c.l.b16 %v489
    %v597 = vunpack.c.h.b16 %v489
    %v598 = vunpack.c.l.b16 %v490
    %v599 = vunpack.c.h.b16 %v490
    %v600 = vunpack.c.l.b16 %v491
    %v601 = vunpack.c.h.b16 %v491
    %v602 = vunpack.c.l.b16 %v492
    %v603 = vunpack.c.h.b16 %v492
    %v604 = vunpack.c.l.b16 %v493
    %v605 = vunpack.c.h.b16 %v493
    %v606 = vunpack.c.l.b16 %v494
    %v607 = vunpack.c.h.b16 %v494
    %v608 = vunpack.c.l.b16 %v495
    %v609 = vunpack.c.h.b16 %v495
    %v610 = vunpack.c.l.b16 %v496
    %v611 = vunpack.c.h.b16 %v496
    %v612 = vunpack.c.l.b16 %v497
    %v613 = vunpack.c.h.b16 %v497
    %v614 = vunpack.c.l.b16 %v498
    %v615 = vunpack.c.h.b16 %v498
    %v616 = vunpack.c.l.b16 %v499
    %v617 = vunpack.c.h.b16 %v499
    %v618 = vpack.c.b16 %v558, %v554
    %v619 = vpack.c.b16 %v559, %v555
    %v620 = vpack.c.b16 %v560, %v556
    %v621 = vpack.c.b16 %v561, %v557
    %v622 = vpack.c.b16 %v566, %v562
    %v623 = vpack.c.b16 %v567, %v563
    %v624 = vpack.c.b16 %v568, %v564
    %v625 = vpack.c.b16 %v569, %v565
    %v626 = vpack.c.b16 %v574, %v570
    %v627 = vpack.c.b16 %v575, %v571
    %v628 = vpack.c.b16 %v576, %v572
    %v629 = vpack.c.b16 %v577, %v573
    %v630 = vpack.c.b16 %v582, %v578
    %v631 = vpack.c.b16 %v583, %v579
    %v632 = vpack.c.b16 %v584, %v580
    %v633 = vpack.c.b16 %v585, %v581
    %v634 = vpack.c.b16 %v590, %v586
    %v635 = vpack.c.b16 %v591, %v587
    %v636 = vpack.c.b16 %v592, %v588
    %v637 = vpack.c.b16 %v593, %v589
    %v638 = vpack.c.b16 %v598, %v594
    %v639 = vpack.c.b16 %v599, %v595
    %v640 = vpack.c.b16 %v600, %v596
    %v641 = vpack.c.b16 %v601, %v597
    %v642 = vpack.c.b16 %v606, %v602
    %v643 = vpack.c.b16 %v607, %v603
    %v644 = vpack.c.b16 %v608, %v604
    %v645 = vpack.c.b16 %v609, %v605
    %v646 = vpack.c.b16 %v614, %v610
    %v647 = vpack.c.b16 %v615, %v611
    %v648 = vpack.c.b16 %v616, %v612
    %v649 = vpack.c.b16 %v617, %v613
    %682 = vmatprep.subr.bf16.mxu0 %v619
    %683 = vmatpush1.bf16.msra.mxu0 %v618
    %684 = vmatprep.subr.bf16.mxu0 %v623
    %685 = vmatpush1.bf16.msra.mxu0 %v622
    %686 = vmatprep.subr.bf16.mxu0 %v627
    %687 = vmatpush1.bf16.msra.mxu0 %v626
    %688 = vmatprep.subr.bf16.mxu0 %v631
    %689 = vmatpush1.bf16.msra.mxu0 %v630
    %690 = vmatprep.subr.bf16.mxu0 %v635
    %691 = vmatpush1.bf16.msra.mxu0 %v634
    %692 = vmatprep.subr.bf16.mxu0 %v639
    %693 = vmatpush1.bf16.msra.mxu0 %v638
    %694 = vmatprep.subr.bf16.mxu0 %v643
    %695 = vmatpush1.bf16.msra.mxu0 %v642
    %696 = vmatprep.subr.bf16.mxu0 %v647
    %697 = vmatpush1.bf16.msra.mxu0 %v646
    %698 = vmatprep.subr.bf16.mxu0 0
    %699 = vmatpush1.bf16.msra.mxu0 0
    %700 = vmatprep.subr.bf16.mxu0 0
    %701 = vmatpush1.bf16.msra.mxu0 0
    %702 = vmatprep.subr.bf16.mxu0 0
    %703 = vmatpush1.bf16.msra.mxu0 0
    %704 = vmatprep.subr.bf16.mxu0 0
    %705 = vmatpush1.bf16.msra.mxu0 0
    %706 = vmatprep.subr.bf16.mxu0 0
    %707 = vmatpush1.bf16.msra.mxu0 0
    %708 = vmatprep.subr.bf16.mxu0 0
    %709 = vmatpush1.bf16.msra.mxu0 0
    %710 = vmatprep.subr.bf16.mxu0 0
    %711 = vmatpush1.bf16.msra.mxu0 0
    %712 = vmatprep.subr.bf16.mxu0 0
    %713 = vmatpush1.bf16.msra.mxu0 0
    %714 = vmatprep.mubr.bf16.mxu0 0
    %715 = vmatmul.mubr.bf16.gmra.mrb[0].mxu0 %v467
    %v716 = vpop.f32.mrb[0].mxu0
    %v717 = vadd.f32 %v505, %v716
    %v718 = vpop.f32.mrb[0].mxu0
    %v719 = vadd.f32 %v509, %v718
    %v720 = vpop.f32.mrb[0].mxu0
    %v721 = vpop.f32.mrb[0].mxu0
    %722 = vdwg.mxu0
    %723 = vmatprep.subr.bf16.mxu0 %v621
    %724 = vmatpush1.bf16.msra.mxu0 %v620
    %725 = vmatprep.subr.bf16.mxu0 %v625
    %726 = vmatpush1.bf16.msra.mxu0 %v624
    %727 = vmatprep.subr.bf16.mxu0 %v629
    %728 = vmatpush1.bf16.msra.mxu0 %v628
    %729 = vmatprep.subr.bf16.mxu0 %v633
    %730 = vmatpush1.bf16.msra.mxu0 %v632
    %731 = vmatprep.subr.bf16.mxu0 %v637
    %732 = vmatpush1.bf16.msra.mxu0 %v636
    %733 = vmatprep.subr.bf16.mxu0 %v641
    %734 = vmatpush1.bf16.msra.mxu0 %v640
    %735 = vmatprep.subr.bf16.mxu0 %v645
    %736 = vmatpush1.bf16.msra.mxu0 %v644
    %737 = vmatprep.subr.bf16.mxu0 %v649
    %738 = vmatpush1.bf16.msra.mxu0 %v648
    %739 = vmatprep.subr.bf16.mxu0 0
    %740 = vmatpush1.bf16.msra.mxu0 0
    %741 = vmatprep.subr.bf16.mxu0 0
    %742 = vmatpush1.bf16.msra.mxu0 0
    %743 = vmatprep.subr.bf16.mxu0 0
    %744 = vmatpush1.bf16.msra.mxu0 0
    %745 = vmatprep.subr.bf16.mxu0 0
    %746 = vmatpush1.bf16.msra.mxu0 0
    %747 = vmatprep.subr.bf16.mxu0 0
    %748 = vmatpush1.bf16.msra.mxu0 0
    %749 = vmatprep.subr.bf16.mxu0 0
    %750 = vmatpush1.bf16.msra.mxu0 0
    %751 = vmatprep.subr.bf16.mxu0 0
    %752 = vmatpush1.bf16.msra.mxu0 0
    %753 = vmatprep.subr.bf16.mxu0 0
    %754 = vmatpush1.bf16.msra.mxu0 0
    %755 = vmatprep.mubr.bf16.mxu0 0
    %756 = vmatmul.mubr.bf16.gmra.mrb[0].mxu0 %v467
    %v757 = vpop.f32.mrb[0].mxu0
    %v758 = vadd.f32 %v513, %v757
    %v759 = vpop.f32.mrb[0].mxu0
    %v760 = vadd.f32 %v517, %v759
    %v761 = vpop.f32.mrb[0].mxu0
    %v762 = vpop.f32.mrb[0].mxu0
    %763 = vdwg.mxu0
    %v764 = vmax.f32 %v717, 0.0
    %v765 = vmax.f32 %v719, 0.0
    %v766 = vmax.f32 %v758, 0.0
    %v767 = vmax.f32 %v760, 0.0
    %v768 = vpack.c.bf16 %v764, %v764
    %v769 = vpack.c.bf16 %v765, %v765
    %v770 = vpack.c.bf16 %v766, %v766
    %v771 = vpack.c.bf16 %v767, %v767
    %v772 = vld [vmem:[#allocation17] sm:$0xff]
    %v773 = vld [vmem:[#allocation17 + $0x8] sm:$0xff]
    %v774 = vld [vmem:[#allocation17 + $0x10] sm:$0xff]
    %v775 = vld [vmem:[#allocation17 + $0x18] sm:$0xff]
    %v776 = vld [vmem:[#allocation17 + $0x20] sm:$0xff]
    %v777 = vld [vmem:[#allocation17 + $0x28] sm:$0xff]
    %v778 = vld [vmem:[#allocation17 + $0x30] sm:$0xff]
    %v779 = vld [vmem:[#allocation17 + $0x38] sm:$0xff]
    %v780 = vld [vmem:[#allocation17 + $0x40] sm:$0xff]
    %v781 = vld [vmem:[#allocation17 + $0x48] sm:$0xff]
    %v782 = vld [vmem:[#allocation17 + $0x50] sm:$0xff]
    %v783 = vld [vmem:[#allocation17 + $0x58] sm:$0xff]
    %v784 = vld [vmem:[#allocation17 + $0x60] sm:$0xff]
    %v785 = vld [vmem:[#allocation17 + $0x68] sm:$0xff]
    %v786 = vld [vmem:[#allocation17 + $0x70] sm:$0xff]
    %v787 = vld [vmem:[#allocation17 + $0x78] sm:$0xff]
    %v788 = vld [vmem:[#allocation17 + $0x80] sm:$0xff]
    %v789 = vld [vmem:[#allocation17 + $0x88] sm:$0xff]
    %v790 = vld [vmem:[#allocation17 + $0x90] sm:$0xff]
    %v791 = vld [vmem:[#allocation17 + $0x98] sm:$0xff]
    %v792 = vld [vmem:[#allocation17 + $0xa0] sm:$0xff]
    %v793 = vld [vmem:[#allocation17 + $0xa8] sm:$0xff]
    %v794 = vld [vmem:[#allocation17 + $0xb0] sm:$0xff]
    %v795 = vld [vmem:[#allocation17 + $0xb8] sm:$0xff]
    %v796 = vld [vmem:[#allocation17 + $0xc0] sm:$0xff]
    %v797 = vld [vmem:[#allocation17 + $0xc8] sm:$0xff]
    %v798 = vld [vmem:[#allocation17 + $0xd0] sm:$0xff]
    %v799 = vld [vmem:[#allocation17 + $0xd8] sm:$0xff]
    %v800 = vld [vmem:[#allocation17 + $0xe0] sm:$0xff]
    %v801 = vld [vmem:[#allocation17 + $0xe8] sm:$0xff]
    %v802 = vld [vmem:[#allocation17 + $0xf0] sm:$0xff]
    %v803 = vld [vmem:[#allocation17 + $0xf8] sm:$0xff]
    %v804 = vld [vmem:[#allocation17 + $0x100] sm:$0xff]
    %v805 = vld [vmem:[#allocation17 + $0x108] sm:$0xff]
    %v806 = vld [vmem:[#allocation17 + $0x110] sm:$0xff]
    %v807 = vld [vmem:[#allocation17 + $0x118] sm:$0xff]
    %v808 = vld [vmem:[#allocation17 + $0x120] sm:$0xff]
    %v809 = vld [vmem:[#allocation17 + $0x128] sm:$0xff]
    %v810 = vld [vmem:[#allocation17 + $0x130] sm:$0xff]
    %v811 = vld [vmem:[#allocation17 + $0x138] sm:$0xff]
    %v812 = vld [vmem:[#allocation17 + $0x140] sm:$0xff]
    %v813 = vld [vmem:[#allocation17 + $0x148] sm:$0xff]
    %v814 = vld [vmem:[#allocation17 + $0x150] sm:$0xff]
    %v815 = vld [vmem:[#allocation17 + $0x158] sm:$0xff]
    %v816 = vld [vmem:[#allocation17 + $0x160] sm:$0xff]
    %v817 = vld [vmem:[#allocation17 + $0x168] sm:$0xff]
    %v818 = vld [vmem:[#allocation17 + $0x170] sm:$0xff]
    %v819 = vld [vmem:[#allocation17 + $0x178] sm:$0xff]
    %v820 = vld [vmem:[#allocation17 + $0x180] sm:$0xff]
    %v821 = vld [vmem:[#allocation17 + $0x188] sm:$0xff]
    %v822 = vld [vmem:[#allocation17 + $0x190] sm:$0xff]
    %v823 = vld [vmem:[#allocation17 + $0x198] sm:$0xff]
    %v824 = vld [vmem:[#allocation17 + $0x1a0] sm:$0xff]
    %v825 = vld [vmem:[#allocation17 + $0x1a8] sm:$0xff]
    %v826 = vld [vmem:[#allocation17 + $0x1b0] sm:$0xff]
    %v827 = vld [vmem:[#allocation17 + $0x1b8] sm:$0xff]
    %v828 = vld [vmem:[#allocation17 + $0x1c0] sm:$0xff]
    %v829 = vld [vmem:[#allocation17 + $0x1c8] sm:$0xff]
    %v830 = vld [vmem:[#allocation17 + $0x1d0] sm:$0xff]
    %v831 = vld [vmem:[#allocation17 + $0x1d8] sm:$0xff]
    %v832 = vld [vmem:[#allocation17 + $0x1e0] sm:$0xff]
    %v833 = vld [vmem:[#allocation17 + $0x1e8] sm:$0xff]
    %v834 = vld [vmem:[#allocation17 + $0x1f0] sm:$0xff]
    %v835 = vld [vmem:[#allocation17 + $0x1f8] sm:$0xff]
    %v836 = vld [vmem:[#allocation17 + $0x200] sm:$0xff]
    %v837 = vld [vmem:[#allocation17 + $0x208] sm:$0xff]
    %v838 = vld [vmem:[#allocation17 + $0x210] sm:$0xff]
    %v839 = vld [vmem:[#allocation17 + $0x218] sm:$0xff]
    %v840 = vld [vmem:[#allocation17 + $0x220] sm:$0xff]
    %v841 = vld [vmem:[#allocation17 + $0x228] sm:$0xff]
    %v842 = vld [vmem:[#allocation17 + $0x230] sm:$0xff]
    %v843 = vld [vmem:[#allocation17 + $0x238] sm:$0xff]
    %v844 = vld [vmem:[#allocation17 + $0x240] sm:$0xff]
    %v845 = vld [vmem:[#allocation17 + $0x248] sm:$0xff]
    %v846 = vld [vmem:[#allocation17 + $0x250] sm:$0xff]
    %v847 = vld [vmem:[#allocation17 + $0x258] sm:$0xff]
    %v848 = vld [vmem:[#allocation17 + $0x260] sm:$0xff]
    %v849 = vld [vmem:[#allocation17 + $0x268] sm:$0xff]
    %v850 = vld [vmem:[#allocation17 + $0x270] sm:$0xff]
    %v851 = vld [vmem:[#allocation17 + $0x278] sm:$0xff]
    %v852 = vld [vmem:[#allocation17 + $0x280] sm:$0xff]
    %v853 = vld [vmem:[#allocation17 + $0x288] sm:$0xff]
    %v854 = vld [vmem:[#allocation17 + $0x290] sm:$0xff]
    %v855 = vld [vmem:[#allocation17 + $0x298] sm:$0xff]
    %v856 = vld [vmem:[#allocation17 + $0x2a0] sm:$0xff]
    %v857 = vld [vmem:[#allocation17 + $0x2a8] sm:$0xff]
    %v858 = vld [vmem:[#allocation17 + $0x2b0] sm:$0xff]
    %v859 = vld [vmem:[#allocation17 + $0x2b8] sm:$0xff]
    %v860 = vld [vmem:[#allocation17 + $0x2c0] sm:$0xff]
    %v861 = vld [vmem:[#allocation17 + $0x2c8] sm:$0xff]
    %v862 = vld [vmem:[#allocation17 + $0x2d0] sm:$0xff]
    %v863 = vld [vmem:[#allocation17 + $0x2d8] sm:$0xff]
    %v864 = vld [vmem:[#allocation17 + $0x2e0] sm:$0xff]
    %v865 = vld [vmem:[#allocation17 + $0x2e8] sm:$0xff]
    %v866 = vld [vmem:[#allocation17 + $0x2f0] sm:$0xff]
    %v867 = vld [vmem:[#allocation17 + $0x2f8] sm:$0xff]
    %v868 = vld [vmem:[#allocation17 + $0x300] sm:$0xff]
    %v869 = vld [vmem:[#allocation17 + $0x308] sm:$0xff]
    %v870 = vld [vmem:[#allocation17 + $0x310] sm:$0xff]
    %v871 = vld [vmem:[#allocation17 + $0x318] sm:$0xff]
    %v872 = vld [vmem:[#allocation17 + $0x320] sm:$0xff]
    %v873 = vld [vmem:[#allocation17 + $0x328] sm:$0xff]
    %v874 = vld [vmem:[#allocation17 + $0x330] sm:$0xff]
    %v875 = vld [vmem:[#allocation17 + $0x338] sm:$0xff]
    %v876 = vld [vmem:[#allocation17 + $0x340] sm:$0xff]
    %v877 = vld [vmem:[#allocation17 + $0x348] sm:$0xff]
    %v878 = vld [vmem:[#allocation17 + $0x350] sm:$0xff]
    %v879 = vld [vmem:[#allocation17 + $0x358] sm:$0xff]
    %v880 = vld [vmem:[#allocation17 + $0x360] sm:$0xff]
    %v881 = vld [vmem:[#allocation17 + $0x368] sm:$0xff]
    %v882 = vld [vmem:[#allocation17 + $0x370] sm:$0xff]
    %v883 = vld [vmem:[#allocation17 + $0x378] sm:$0xff]
    %v884 = vld [vmem:[#allocation17 + $0x380] sm:$0xff]
    %v885 = vld [vmem:[#allocation17 + $0x388] sm:$0xff]
    %v886 = vld [vmem:[#allocation17 + $0x390] sm:$0xff]
    %v887 = vld [vmem:[#allocation17 + $0x398] sm:$0xff]
    %v888 = vld [vmem:[#allocation17 + $0x3a0] sm:$0xff]
    %v889 = vld [vmem:[#allocation17 + $0x3a8] sm:$0xff]
    %v890 = vld [vmem:[#allocation17 + $0x3b0] sm:$0xff]
    %v891 = vld [vmem:[#allocation17 + $0x3b8] sm:$0xff]
    %v892 = vld [vmem:[#allocation17 + $0x3c0] sm:$0xff]
    %v893 = vld [vmem:[#allocation17 + $0x3c8] sm:$0xff]
    %v894 = vld [vmem:[#allocation17 + $0x3d0] sm:$0xff]
    %v895 = vld [vmem:[#allocation17 + $0x3d8] sm:$0xff]
    %v896 = vld [vmem:[#allocation17 + $0x3e0] sm:$0xff]
    %v897 = vld [vmem:[#allocation17 + $0x3e8] sm:$0xff]
    %v898 = vld [vmem:[#allocation17 + $0x3f0] sm:$0xff]
    %v899 = vld [vmem:[#allocation17 + $0x3f8] sm:$0xff]
    %v900 = vunpack.c.l.s8.bf16 %v772
    %v901 = vunpack.c.l.s8.bf16 %v773
    %v902 = vunpack.c.l.s8.bf16 %v774
    %v903 = vunpack.c.l.s8.bf16 %v775
    %v904 = vunpack.c.l.s8.bf16 %v776
    %v905 = vunpack.c.l.s8.bf16 %v777
    %v906 = vunpack.c.l.s8.bf16 %v778
    %v907 = vunpack.c.l.s8.bf16 %v779
    %v908 = vunpack.c.h.s8.bf16 %v772
    %v909 = vunpack.c.h.s8.bf16 %v773
    %v910 = vunpack.c.h.s8.bf16 %v774
    %v911 = vunpack.c.h.s8.bf16 %v775
    %v912 = vunpack.c.h.s8.bf16 %v776
    %v913 = vunpack.c.h.s8.bf16 %v777
    %v914 = vunpack.c.h.s8.bf16 %v778
    %v915 = vunpack.c.h.s8.bf16 %v779
    %v916 = vunpack.c.l.s8.bf16 %v780
    %v917 = vunpack.c.l.s8.bf16 %v781
    %v918 = vunpack.c.l.s8.bf16 %v782
    %v919 = vunpack.c.l.s8.bf16 %v783
    %v920 = vunpack.c.l.s8.bf16 %v784
    %v921 = vunpack.c.l.s8.bf16 %v785
    %v922 = vunpack.c.l.s8.bf16 %v786
    %v923 = vunpack.c.l.s8.bf16 %v787
    %v924 = vunpack.c.h.s8.bf16 %v780
    %v925 = vunpack.c.h.s8.bf16 %v781
    %v926 = vunpack.c.h.s8.bf16 %v782
    %v927 = vunpack.c.h.s8.bf16 %v783
    %v928 = vunpack.c.h.s8.bf16 %v784
    %v929 = vunpack.c.h.s8.bf16 %v785
    %v930 = vunpack.c.h.s8.bf16 %v786
    %v931 = vunpack.c.h.s8.bf16 %v787
    %v932 = vunpack.c.l.s8.bf16 %v788
    %v933 = vunpack.c.l.s8.bf16 %v789
    %v934 = vunpack.c.l.s8.bf16 %v790
    %v935 = vunpack.c.l.s8.bf16 %v791
    %v936 = vunpack.c.l.s8.bf16 %v792
    %v937 = vunpack.c.l.s8.bf16 %v793
    %v938 = vunpack.c.l.s8.bf16 %v794
    %v939 = vunpack.c.l.s8.bf16 %v795
    %v940 = vunpack.c.h.s8.bf16 %v788
    %v941 = vunpack.c.h.s8.bf16 %v789
    %v942 = vunpack.c.h.s8.bf16 %v790
    %v943 = vunpack.c.h.s8.bf16 %v791
    %v944 = vunpack.c.h.s8.bf16 %v792
    %v945 = vunpack.c.h.s8.bf16 %v793
    %v946 = vunpack.c.h.s8.bf16 %v794
    %v947 = vunpack.c.h.s8.bf16 %v795
    %v948 = vunpack.c.l.s8.bf16 %v796
    %v949 = vunpack.c.l.s8.bf16 %v797
    %v950 = vunpack.c.l.s8.bf16 %v798
    %v951 = vunpack.c.l.s8.bf16 %v799
    %v952 = vunpack.c.l.s8.bf16 %v800
    %v953 = vunpack.c.l.s8.bf16 %v801
    %v954 = vunpack.c.l.s8.bf16 %v802
    %v955 = vunpack.c.l.s8.bf16 %v803
    %v956 = vunpack.c.h.s8.bf16 %v796
    %v957 = vunpack.c.h.s8.bf16 %v797
    %v958 = vunpack.c.h.s8.bf16 %v798
    %v959 = vunpack.c.h.s8.bf16 %v799
    %v960 = vunpack.c.h.s8.bf16 %v800
    %v961 = vunpack.c.h.s8.bf16 %v801
    %v962 = vunpack.c.h.s8.bf16 %v802
    %v963 = vunpack.c.h.s8.bf16 %v803
    %v964 = vunpack.c.l.s8.bf16 %v804
    %v965 = vunpack.c.l.s8.bf16 %v805
    %v966 = vunpack.c.l.s8.bf16 %v806
    %v967 = vunpack.c.l.s8.bf16 %v807
    %v968 = vunpack.c.l.s8.bf16 %v808
    %v969 = vunpack.c.l.s8.bf16 %v809
    %v970 = vunpack.c.l.s8.bf16 %v810
    %v971 = vunpack.c.l.s8.bf16 %v811
    %v972 = vunpack.c.h.s8.bf16 %v804
    %v973 = vunpack.c.h.s8.bf16 %v805
    %v974 = vunpack.c.h.s8.bf16 %v806
    %v975 = vunpack.c.h.s8.bf16 %v807
    %v976 = vunpack.c.h.s8.bf16 %v808
    %v977 = vunpack.c.h.s8.bf16 %v809
    %v978 = vunpack.c.h.s8.bf16 %v810
    %v979 = vunpack.c.h.s8.bf16 %v811
    %v980 = vunpack.c.l.s8.bf16 %v812
    %v981 = vunpack.c.l.s8.bf16 %v813
    %v982 = vunpack.c.l.s8.bf16 %v814
    %v983 = vunpack.c.l.s8.bf16 %v815
    %v984 = vunpack.c.l.s8.bf16 %v816
    %v985 = vunpack.c.l.s8.bf16 %v817
    %v986 = vunpack.c.l.s8.bf16 %v818
    %v987 = vunpack.c.l.s8.bf16 %v819
    %v988 = vunpack.c.h.s8.bf16 %v812
    %v989 = vunpack.c.h.s8.bf16 %v813
    %v990 = vunpack.c.h.s8.bf16 %v814
    %v991 = vunpack.c.h.s8.bf16 %v815
    %v992 = vunpack.c.h.s8.bf16 %v816
    %v993 = vunpack.c.h.s8.bf16 %v817
    %v994 = vunpack.c.h.s8.bf16 %v818
    %v995 = vunpack.c.h.s8.bf16 %v819
    %v996 = vunpack.c.l.s8.bf16 %v820
    %v997 = vunpack.c.l.s8.bf16 %v821
    %v998 = vunpack.c.l.s8.bf16 %v822
    %v999 = vunpack.c.l.s8.bf16 %v823
    %v1000 = vunpack.c.l.s8.bf16 %v824
    %v1001 = vunpack.c.l.s8.bf16 %v825
    %v1002 = vunpack.c.l.s8.bf16 %v826
    %v1003 = vunpack.c.l.s8.bf16 %v827
    %v1004 = vunpack.c.h.s8.bf16 %v820
    %v1005 = vunpack.c.h.s8.bf16 %v821
    %v1006 = vunpack.c.h.s8.bf16 %v822
    %v1007 = vunpack.c.h.s8.bf16 %v823
    %v1008 = vunpack.c.h.s8.bf16 %v824
    %v1009 = vunpack.c.h.s8.bf16 %v825
    %v1010 = vunpack.c.h.s8.bf16 %v826
    %v1011 = vunpack.c.h.s8.bf16 %v827
    %v1012 = vunpack.c.l.s8.bf16 %v828
    %v1013 = vunpack.c.l.s8.bf16 %v829
    %v1014 = vunpack.c.l.s8.bf16 %v830
    %v1015 = vunpack.c.l.s8.bf16 %v831
    %v1016 = vunpack.c.l.s8.bf16 %v832
    %v1017 = vunpack.c.l.s8.bf16 %v833
    %v1018 = vunpack.c.l.s8.bf16 %v834
    %v1019 = vunpack.c.l.s8.bf16 %v835
    %v1020 = vunpack.c.h.s8.bf16 %v828
    %v1021 = vunpack.c.h.s8.bf16 %v829
    %v1022 = vunpack.c.h.s8.bf16 %v830
    %v1023 = vunpack.c.h.s8.bf16 %v831
    %v1024 = vunpack.c.h.s8.bf16 %v832
    %v1025 = vunpack.c.h.s8.bf16 %v833
    %v1026 = vunpack.c.h.s8.bf16 %v834
    %v1027 = vunpack.c.h.s8.bf16 %v835
    %v1028 = vunpack.c.l.s8.bf16 %v836
    %v1029 = vunpack.c.l.s8.bf16 %v837
    %v1030 = vunpack.c.l.s8.bf16 %v838
    %v1031 = vunpack.c.l.s8.bf16 %v839
    %v1032 = vunpack.c.l.s8.bf16 %v840
    %v1033 = vunpack.c.l.s8.bf16 %v841
    %v1034 = vunpack.c.l.s8.bf16 %v842
    %v1035 = vunpack.c.l.s8.bf16 %v843
    %v1036 = vunpack.c.h.s8.bf16 %v836
    %v1037 = vunpack.c.h.s8.bf16 %v837
    %v1038 = vunpack.c.h.s8.bf16 %v838
    %v1039 = vunpack.c.h.s8.bf16 %v839
    %v1040 = vunpack.c.h.s8.bf16 %v840
    %v1041 = vunpack.c.h.s8.bf16 %v841
    %v1042 = vunpack.c.h.s8.bf16 %v842
    %v1043 = vunpack.c.h.s8.bf16 %v843
    %v1044 = vunpack.c.l.s8.bf16 %v844
    %v1045 = vunpack.c.l.s8.bf16 %v845
    %v1046 = vunpack.c.l.s8.bf16 %v846
    %v1047 = vunpack.c.l.s8.bf16 %v847
    %v1048 = vunpack.c.l.s8.bf16 %v848
    %v1049 = vunpack.c.l.s8.bf16 %v849
    %v1050 = vunpack.c.l.s8.bf16 %v850
    %v1051 = vunpack.c.l.s8.bf16 %v851
    %v1052 = vunpack.c.h.s8.bf16 %v844
    %v1053 = vunpack.c.h.s8.bf16 %v845
    %v1054 = vunpack.c.h.s8.bf16 %v846
    %v1055 = vunpack.c.h.s8.bf16 %v847
    %v1056 = vunpack.c.h.s8.bf16 %v848
    %v1057 = vunpack.c.h.s8.bf16 %v849
    %v1058 = vunpack.c.h.s8.bf16 %v850
    %v1059 = vunpack.c.h.s8.bf16 %v851
    %v1060 = vunpack.c.l.s8.bf16 %v852
    %v1061 = vunpack.c.l.s8.bf16 %v853
    %v1062 = vunpack.c.l.s8.bf16 %v854
    %v1063 = vunpack.c.l.s8.bf16 %v855
    %v1064 = vunpack.c.l.s8.bf16 %v856
    %v1065 = vunpack.c.l.s8.bf16 %v857
    %v1066 = vunpack.c.l.s8.bf16 %v858
    %v1067 = vunpack.c.l.s8.bf16 %v859
    %v1068 = vunpack.c.h.s8.bf16 %v852
    %v1069 = vunpack.c.h.s8.bf16 %v853
    %v1070 = vunpack.c.h.s8.bf16 %v854
    %v1071 = vunpack.c.h.s8.bf16 %v855
    %v1072 = vunpack.c.h.s8.bf16 %v856
    %v1073 = vunpack.c.h.s8.bf16 %v857
    %v1074 = vunpack.c.h.s8.bf16 %v858
    %v1075 = vunpack.c.h.s8.bf16 %v859
    %v1076 = vunpack.c.l.s8.bf16 %v860
    %v1077 = vunpack.c.l.s8.bf16 %v861
    %v1078 = vunpack.c.l.s8.bf16 %v862
    %v1079 = vunpack.c.l.s8.bf16 %v863
    %v1080 = vunpack.c.l.s8.bf16 %v864
    %v1081 = vunpack.c.l.s8.bf16 %v865
    %v1082 = vunpack.c.l.s8.bf16 %v866
    %v1083 = vunpack.c.l.s8.bf16 %v867
    %v1084 = vunpack.c.h.s8.bf16 %v860
    %v1085 = vunpack.c.h.s8.bf16 %v861
    %v1086 = vunpack.c.h.s8.bf16 %v862
    %v1087 = vunpack.c.h.s8.bf16 %v863
    %v1088 = vunpack.c.h.s8.bf16 %v864
    %v1089 = vunpack.c.h.s8.bf16 %v865
    %v1090 = vunpack.c.h.s8.bf16 %v866
    %v1091 = vunpack.c.h.s8.bf16 %v867
    %v1092 = vunpack.c.l.s8.bf16 %v868
    %v1093 = vunpack.c.l.s8.bf16 %v869
    %v1094 = vunpack.c.l.s8.bf16 %v870
    %v1095 = vunpack.c.l.s8.bf16 %v871
    %v1096 = vunpack.c.l.s8.bf16 %v872
    %v1097 = vunpack.c.l.s8.bf16 %v873
    %v1098 = vunpack.c.l.s8.bf16 %v874
    %v1099 = vunpack.c.l.s8.bf16 %v875
    %v1100 = vunpack.c.h.s8.bf16 %v868
    %v1101 = vunpack.c.h.s8.bf16 %v869
    %v1102 = vunpack.c.h.s8.bf16 %v870
    %v1103 = vunpack.c.h.s8.bf16 %v871
    %v1104 = vunpack.c.h.s8.bf16 %v872
    %v1105 = vunpack.c.h.s8.bf16 %v873
    %v1106 = vunpack.c.h.s8.bf16 %v874
    %v1107 = vunpack.c.h.s8.bf16 %v875
    %v1108 = vunpack.c.l.s8.bf16 %v876
    %v1109 = vunpack.c.l.s8.bf16 %v877
    %v1110 = vunpack.c.l.s8.bf16 %v878
    %v1111 = vunpack.c.l.s8.bf16 %v879
    %v1112 = vunpack.c.l.s8.bf16 %v880
    %v1113 = vunpack.c.l.s8.bf16 %v881
    %v1114 = vunpack.c.l.s8.bf16 %v882
    %v1115 = vunpack.c.l.s8.bf16 %v883
    %v1116 = vunpack.c.h.s8.bf16 %v876
    %v1117 = vunpack.c.h.s8.bf16 %v877
    %v1118 = vunpack.c.h.s8.bf16 %v878
    %v1119 = vunpack.c.h.s8.bf16 %v879
    %v1120 = vunpack.c.h.s8.bf16 %v880
    %v1121 = vunpack.c.h.s8.bf16 %v881
    %v1122 = vunpack.c.h.s8.bf16 %v882
    %v1123 = vunpack.c.h.s8.bf16 %v883
    %v1124 = vunpack.c.l.s8.bf16 %v884
    %v1125 = vunpack.c.l.s8.bf16 %v885
    %v1126 = vunpack.c.l.s8.bf16 %v886
    %v1127 = vunpack.c.l.s8.bf16 %v887
    %v1128 = vunpack.c.l.s8.bf16 %v888
    %v1129 = vunpack.c.l.s8.bf16 %v889
    %v1130 = vunpack.c.l.s8.bf16 %v890
    %v1131 = vunpack.c.l.s8.bf16 %v891
    %v1132 = vunpack.c.h.s8.bf16 %v884
    %v1133 = vunpack.c.h.s8.bf16 %v885
    %v1134 = vunpack.c.h.s8.bf16 %v886
    %v1135 = vunpack.c.h.s8.bf16 %v887
    %v1136 = vunpack.c.h.s8.bf16 %v888
    %v1137 = vunpack.c.h.s8.bf16 %v889
    %v1138 = vunpack.c.h.s8.bf16 %v890
    %v1139 = vunpack.c.h.s8.bf16 %v891
    %v1140 = vunpack.c.l.s8.bf16 %v892
    %v1141 = vunpack.c.l.s8.bf16 %v893
    %v1142 = vunpack.c.l.s8.bf16 %v894
    %v1143 = vunpack.c.l.s8.bf16 %v895
    %v1144 = vunpack.c.l.s8.bf16 %v896
    %v1145 = vunpack.c.l.s8.bf16 %v897
    %v1146 = vunpack.c.l.s8.bf16 %v898
    %v1147 = vunpack.c.l.s8.bf16 %v899
    %v1148 = vunpack.c.h.s8.bf16 %v892
    %v1149 = vunpack.c.h.s8.bf16 %v893
    %v1150 = vunpack.c.h.s8.bf16 %v894
    %v1151 = vunpack.c.h.s8.bf16 %v895
    %v1152 = vunpack.c.h.s8.bf16 %v896
    %v1153 = vunpack.c.h.s8.bf16 %v897
    %v1154 = vunpack.c.h.s8.bf16 %v898
    %v1155 = vunpack.c.h.s8.bf16 %v899
    %1156 = vmatprep.subr.bf16.mxu0 %v901
    %1157 = vmatpush1.bf16.msra.mxu0 %v900
    %1158 = vmatprep.subr.bf16.mxu0 %v909
    %1159 = vmatpush1.bf16.msra.mxu0 %v908
    %1160 = vmatprep.subr.bf16.mxu0 %v917
    %1161 = vmatpush1.bf16.msra.mxu0 %v916
    %1162 = vmatprep.subr.bf16.mxu0 %v925
    %1163 = vmatpush1.bf16.msra.mxu0 %v924
    %1164 = vmatprep.subr.bf16.mxu0 %v933
    %1165 = vmatpush1.bf16.msra.mxu0 %v932
    %1166 = vmatprep.subr.bf16.mxu0 %v941
    %1167 = vmatpush1.bf16.msra.mxu0 %v940
    %1168 = vmatprep.subr.bf16.mxu0 %v949
    %1169 = vmatpush1.bf16.msra.mxu0 %v948
    %1170 = vmatprep.subr.bf16.mxu0 %v957
    %1171 = vmatpush1.bf16.msra.mxu0 %v956
    %1172 = vmatprep.subr.bf16.mxu0 %v965
    %1173 = vmatpush1.bf16.msra.mxu0 %v964
    %1174 = vmatprep.subr.bf16.mxu0 %v973
    %1175 = vmatpush1.bf16.msra.mxu0 %v972
    %1176 = vmatprep.subr.bf16.mxu0 %v981
    %1177 = vmatpush1.bf16.msra.mxu0 %v980
    %1178 = vmatprep.subr.bf16.mxu0 %v989
    %1179 = vmatpush1.bf16.msra.mxu0 %v988
    %1180 = vmatprep.subr.bf16.mxu0 %v997
    %1181 = vmatpush1.bf16.msra.mxu0 %v996
    %1182 = vmatprep.subr.bf16.mxu0 %v1005
    %1183 = vmatpush1.bf16.msra.mxu0 %v1004
    %1184 = vmatprep.subr.bf16.mxu0 %v1013
    %1185 = vmatpush1.bf16.msra.mxu0 %v1012
    %1186 = vmatprep.subr.bf16.mxu0 %v1021
    %1187 = vmatpush1.bf16.msra.mxu0 %v1020
    %1188 = vmatprep.mubr.bf16.mxu0 %v769
    %1189 = vmatmul.mubr.bf16.gmra.mrb[0].mxu0 %v768
    %v1190 = vpop.f32.mrb[0].mxu0
    %v1191 = vadd.f32 0.0, %v1190
    %v1192 = vpop.f32.mrb[0].mxu0
    %v1193 = vadd.f32 0.0, %v1192
    %v1194 = vpop.f32.mrb[0].mxu0
    %v1195 = vpop.f32.mrb[0].mxu0
    %1196 = vdwg.mxu0
    %1197 = vmatprep.subr.bf16.mxu0 %v1029
    %1198 = vmatpush1.bf16.msra.mxu0 %v1028
    %1199 = vmatprep.subr.bf16.mxu0 %v1037
    %1200 = vmatpush1.bf16.msra.mxu0 %v1036
    %1201 = vmatprep.subr.bf16.mxu0 %v1045
    %1202 = vmatpush1.bf16.msra.mxu0 %v1044
    %1203 = vmatprep.subr.bf16.mxu0 %v1053
    %1204 = vmatpush1.bf16.msra.mxu0 %v1052
    %1205 = vmatprep.subr.bf16.mxu0 %v1061
    %1206 = vmatpush1.bf16.msra.mxu0 %v1060
    %1207 = vmatprep.subr.bf16.mxu0 %v1069
    %1208 = vmatpush1.bf16.msra.mxu0 %v1068
    %1209 = vmatprep.subr.bf16.mxu0 %v1077
    %1210 = vmatpush1.bf16.msra.mxu0 %v1076
    %1211 = vmatprep.subr.bf16.mxu0 %v1085
    %1212 = vmatpush1.bf16.msra.mxu0 %v1084
    %1213 = vmatprep.subr.bf16.mxu0 %v1093
    %1214 = vmatpush1.bf16.msra.mxu0 %v1092
    %1215 = vmatprep.subr.bf16.mxu0 %v1101
    %1216 = vmatpush1.bf16.msra.mxu0 %v1100
    %1217 = vmatprep.subr.bf16.mxu0 %v1109
    %1218 = vmatpush1.bf16.msra.mxu0 %v1108
    %1219 = vmatprep.subr.bf16.mxu0 %v1117
    %1220 = vmatpush1.bf16.msra.mxu0 %v1116
    %1221 = vmatprep.subr.bf16.mxu0 %v1125
    %1222 = vmatpush1.bf16.msra.mxu0 %v1124
    %1223 = vmatprep.subr.bf16.mxu0 %v1133
    %1224 = vmatpush1.bf16.msra.mxu0 %v1132
    %1225 = vmatprep.subr.bf16.mxu0 %v1141
    %1226 = vmatpush1.bf16.msra.mxu0 %v1140
    %1227 = vmatprep.subr.bf16.mxu0 %v1149
    %1228 = vmatpush1.bf16.msra.mxu0 %v1148
    %1229 = vmatprep.mubr.bf16.mxu0 %v771
    %1230 = vmatmul.mubr.bf16.gmra.mrb[0].mxu0 %v770
    %v1231 = vpop.f32.mrb[0].mxu0
    %v1232 = vadd.f32 %v1191, %v1231
    %v1233 = vpop.f32.mrb[0].mxu0
    %v1234 = vadd.f32 %v1193, %v1233
    %v1235 = vpop.f32.mrb[0].mxu0
    %v1236 = vpop.f32.mrb[0].mxu0
    %1237 = vdwg.mxu0
    %1238 = vmatprep.subr.bf16.mxu0 %v903
    %1239 = vmatpush1.bf16.msra.mxu0 %v902
    %1240 = vmatprep.subr.bf16.mxu0 %v911
    %1241 = vmatpush1.bf16.msra.mxu0 %v910
    %1242 = vmatprep.subr.bf16.mxu0 %v919
    %1243 = vmatpush1.bf16.msra.mxu0 %v918
    %1244 = vmatprep.subr.bf16.mxu0 %v927
    %1245 = vmatpush1.bf16.msra.mxu0 %v926
    %1246 = vmatprep.subr.bf16.mxu0 %v935
    %1247 = vmatpush1.bf16.msra.mxu0 %v934
    %1248 = vmatprep.subr.bf16.mxu0 %v943
    %1249 = vmatpush1.bf16.msra.mxu0 %v942
    %1250 = vmatprep.subr.bf16.mxu0 %v951
    %1251 = vmatpush1.bf16.msra.mxu0 %v950
    %1252 = vmatprep.subr.bf16.mxu0 %v959
    %1253 = vmatpush1.bf16.msra.mxu0 %v958
    %1254 = vmatprep.subr.bf16.mxu0 %v967
    %1255 = vmatpush1.bf16.msra.mxu0 %v966
    %1256 = vmatprep.subr.bf16.mxu0 %v975
    %1257 = vmatpush1.bf16.msra.mxu0 %v974
    %1258 = vmatprep.subr.bf16.mxu0 %v983
    %1259 = vmatpush1.bf16.msra.mxu0 %v982
    %1260 = vmatprep.subr.bf16.mxu0 %v991
    %1261 = vmatpush1.bf16.msra.mxu0 %v990
    %1262 = vmatprep.subr.bf16.mxu0 %v999
    %1263 = vmatpush1.bf16.msra.mxu0 %v998
    %1264 = vmatprep.subr.bf16.mxu0 %v1007
    %1265 = vmatpush1.bf16.msra.mxu0 %v1006
    %1266 = vmatprep.subr.bf16.mxu0 %v1015
    %1267 = vmatpush1.bf16.msra.mxu0 %v1014
    %1268 = vmatprep.subr.bf16.mxu0 %v1023
    %1269 = vmatpush1.bf16.msra.mxu0 %v1022
    %1270 = vmatprep.mubr.bf16.mxu0 %v769
    %1271 = vmatmul.mubr.bf16.gmra.mrb[0].mxu0 %v768
    %v1272 = vpop.f32.mrb[0].mxu0
    %v1273 = vadd.f32 0.0, %v1272
    %v1274 = vpop.f32.mrb[0].mxu0
    %v1275 = vadd.f32 0.0, %v1274
    %v1276 = vpop.f32.mrb[0].mxu0
    %v1277 = vpop.f32.mrb[0].mxu0
    %1278 = vdwg.mxu0
    %1279 = vmatprep.subr.bf16.mxu0 %v1031
    %1280 = vmatpush1.bf16.msra.mxu0 %v1030
    %1281 = vmatprep.subr.bf16.mxu0 %v1039
    %1282 = vmatpush1.bf16.msra.mxu0 %v1038
    %1283 = vmatprep.subr.bf16.mxu0 %v1047
    %1284 = vmatpush1.bf16.msra.mxu0 %v1046
    %1285 = vmatprep.subr.bf16.mxu0 %v1055
    %1286 = vmatpush1.bf16.msra.mxu0 %v1054
    %1287 = vmatprep.subr.bf16.mxu0 %v1063
    %1288 = vmatpush1.bf16.msra.mxu0 %v1062
    %1289 = vmatprep.subr.bf16.mxu0 %v1071
    %1290 = vmatpush1.bf16.msra.mxu0 %v1070
    %1291 = vmatprep.subr.bf16.mxu0 %v1079
    %1292 = vmatpush1.bf16.msra.mxu0 %v1078
    %1293 = vmatprep.subr.bf16.mxu0 %v1087
    %1294 = vmatpush1.bf16.msra.mxu0 %v1086
    %1295 = vmatprep.subr.bf16.mxu0 %v1095
    %1296 = vmatpush1.bf16.msra.mxu0 %v1094
    %1297 = vmatprep.subr.bf16.mxu0 %v1103
    %1298 = vmatpush1.bf16.msra.mxu0 %v1102
    %1299 = vmatprep.subr.bf16.mxu0 %v1111
    %1300 = vmatpush1.bf16.msra.mxu0 %v1110
    %1301 = vmatprep.subr.bf16.mxu0 %v1119
    %1302 = vmatpush1.bf16.msra.mxu0 %v1118
    %1303 = vmatprep.subr.bf16.mxu0 %v1127
    %1304 = vmatpush1.bf16.msra.mxu0 %v1126
    %1305 = vmatprep.subr.bf16.mxu0 %v1135
    %1306 = vmatpush1.bf16.msra.mxu0 %v1134
    %1307 = vmatprep.subr.bf16.mxu0 %v1143
    %1308 = vmatpush1.bf16.msra.mxu0 %v1142
    %1309 = vmatprep.subr.bf16.mxu0 %v1151
    %1310 = vmatpush1.bf16.msra.mxu0 %v1150
    %1311 = vmatprep.mubr.bf16.mxu0 %v771
    %1312 = vmatmul.mubr.bf16.gmra.mrb[0].mxu0 %v770
    %v1313 = vpop.f32.mrb[0].mxu0
    %v1314 = vadd.f32 %v1273, %v1313
    %v1315 = vpop.f32.mrb[0].mxu0
    %v1316 = vadd.f32 %v1275, %v1315
    %v1317 = vpop.f32.mrb[0].mxu0
    %v1318 = vpop.f32.mrb[0].mxu0
    %1319 = vdwg.mxu0
    %1320 = vmatprep.subr.bf16.mxu0 %v905
    %1321 = vmatpush1.bf16.msra.mxu0 %v904
    %1322 = vmatprep.subr.bf16.mxu0 %v913
    %1323 = vmatpush1.bf16.msra.mxu0 %v912
    %1324 = vmatprep.subr.bf16.mxu0 %v921
    %1325 = vmatpush1.bf16.msra.mxu0 %v920
    %1326 = vmatprep.subr.bf16.mxu0 %v929
    %1327 = vmatpush1.bf16.msra.mxu0 %v928
    %1328 = vmatprep.subr.bf16.mxu0 %v937
    %1329 = vmatpush1.bf16.msra.mxu0 %v936
    %1330 = vmatprep.subr.bf16.mxu0 %v945
    %1331 = vmatpush1.bf16.msra.mxu0 %v944
    %1332 = vmatprep.subr.bf16.mxu0 %v953
    %1333 = vmatpush1.bf16.msra.mxu0 %v952
    %1334 = vmatprep.subr.bf16.mxu0 %v961
    %1335 = vmatpush1.bf16.msra.mxu0 %v960
    %1336 = vmatprep.subr.bf16.mxu0 %v969
    %1337 = vmatpush1.bf16.msra.mxu0 %v968
    %1338 = vmatprep.subr.bf16.mxu0 %v977
    %1339 = vmatpush1.bf16.msra.mxu0 %v976
    %1340 = vmatprep.subr.bf16.mxu0 %v985
    %1341 = vmatpush1.bf16.msra.mxu0 %v984
    %1342 = vmatprep.subr.bf16.mxu0 %v993
    %1343 = vmatpush1.bf16.msra.mxu0 %v992
    %1344 = vmatprep.subr.bf16.mxu0 %v1001
    %1345 = vmatpush1.bf16.msra.mxu0 %v1000
    %1346 = vmatprep.subr.bf16.mxu0 %v1009
    %1347 = vmatpush1.bf16.msra.mxu0 %v1008
    %1348 = vmatprep.subr.bf16.mxu0 %v1017
    %1349 = vmatpush1.bf16.msra.mxu0 %v1016
    %1350 = vmatprep.subr.bf16.mxu0 %v1025
    %1351 = vmatpush1.bf16.msra.mxu0 %v1024
    %1352 = vmatprep.mubr.bf16.mxu0 %v769
    %1353 = vmatmul.mubr.bf16.gmra.mrb[0].mxu0 %v768
    %v1354 = vpop.f32.mrb[0].mxu0
    %v1355 = vadd.f32 0.0, %v1354
    %v1356 = vpop.f32.mrb[0].mxu0
    %v1357 = vadd.f32 0.0, %v1356
    %v1358 = vpop.f32.mrb[0].mxu0
    %v1359 = vpop.f32.mrb[0].mxu0
    %1360 = vdwg.mxu0
    %1361 = vmatprep.subr.bf16.mxu0 %v1033
    %1362 = vmatpush1.bf16.msra.mxu0 %v1032
    %1363 = vmatprep.subr.bf16.mxu0 %v1041
    %1364 = vmatpush1.bf16.msra.mxu0 %v1040
    %1365 = vmatprep.subr.bf16.mxu0 %v1049
    %1366 = vmatpush1.bf16.msra.mxu0 %v1048
    %1367 = vmatprep.subr.bf16.mxu0 %v1057
    %1368 = vmatpush1.bf16.msra.mxu0 %v1056
    %1369 = vmatprep.subr.bf16.mxu0 %v1065
    %1370 = vmatpush1.bf16.msra.mxu0 %v1064
    %1371 = vmatprep.subr.bf16.mxu0 %v1073
    %1372 = vmatpush1.bf16.msra.mxu0 %v1072
    %1373 = vmatprep.subr.bf16.mxu0 %v1081
    %1374 = vmatpush1.bf16.msra.mxu0 %v1080
    %1375 = vmatprep.subr.bf16.mxu0 %v1089
    %1376 = vmatpush1.bf16.msra.mxu0 %v1088
    %1377 = vmatprep.subr.bf16.mxu0 %v1097
    %1378 = vmatpush1.bf16.msra.mxu0 %v1096
    %1379 = vmatprep.subr.bf16.mxu0 %v1105
    %1380 = vmatpush1.bf16.msra.mxu0 %v1104
    %1381 = vmatprep.subr.bf16.mxu0 %v1113
    %1382 = vmatpush1.bf16.msra.mxu0 %v1112
    %1383 = vmatprep.subr.bf16.mxu0 %v1121
    %1384 = vmatpush1.bf16.msra.mxu0 %v1120
    %1385 = vmatprep.subr.bf16.mxu0 %v1129
    %1386 = vmatpush1.bf16.msra.mxu0 %v1128
    %1387 = vmatprep.subr.bf16.mxu0 %v1137
    %1388 = vmatpush1.bf16.msra.mxu0 %v1136
    %1389 = vmatprep.subr.bf16.mxu0 %v1145
    %1390 = vmatpush1.bf16.msra.mxu0 %v1144
    %1391 = vmatprep.subr.bf16.mxu0 %v1153
    %1392 = vmatpush1.bf16.msra.mxu0 %v1152
    %1393 = vmatprep.mubr.bf16.mxu0 %v771
    %1394 = vmatmul.mubr.bf16.gmra.mrb[0].mxu0 %v770
    %v1395 = vpop.f32.mrb[0].mxu0
    %v1396 = vadd.f32 %v1355, %v1395
    %v1397 = vpop.f32.mrb[0].mxu0
    %v1398 = vadd.f32 %v1357, %v1397
    %v1399 = vpop.f32.mrb[0].mxu0
    %v1400 = vpop.f32.mrb[0].mxu0
    %1401 = vdwg.mxu0
    %1402 = vmatprep.subr.bf16.mxu0 %v907
    %1403 = vmatpush1.bf16.msra.mxu0 %v906
    %1404 = vmatprep.subr.bf16.mxu0 %v915
    %1405 = vmatpush1.bf16.msra.mxu0 %v914
    %1406 = vmatprep.subr.bf16.mxu0 %v923
    %1407 = vmatpush1.bf16.msra.mxu0 %v922
    %1408 = vmatprep.subr.bf16.mxu0 %v931
    %1409 = vmatpush1.bf16.msra.mxu0 %v930
    %1410 = vmatprep.subr.bf16.mxu0 %v939
    %1411 = vmatpush1.bf16.msra.mxu0 %v938
    %1412 = vmatprep.subr.bf16.mxu0 %v947
    %1413 = vmatpush1.bf16.msra.mxu0 %v946
    %1414 = vmatprep.subr.bf16.mxu0 %v955
    %1415 = vmatpush1.bf16.msra.mxu0 %v954
    %1416 = vmatprep.subr.bf16.mxu0 %v963
    %1417 = vmatpush1.bf16.msra.mxu0 %v962
    %1418 = vmatprep.subr.bf16.mxu0 %v971
    %1419 = vmatpush1.bf16.msra.mxu0 %v970
    %1420 = vmatprep.subr.bf16.mxu0 %v979
    %1421 = vmatpush1.bf16.msra.mxu0 %v978
    %1422 = vmatprep.subr.bf16.mxu0 %v987
    %1423 = vmatpush1.bf16.msra.mxu0 %v986
    %1424 = vmatprep.subr.bf16.mxu0 %v995
    %1425 = vmatpush1.bf16.msra.mxu0 %v994
    %1426 = vmatprep.subr.bf16.mxu0 %v1003
    %1427 = vmatpush1.bf16.msra.mxu0 %v1002
    %1428 = vmatprep.subr.bf16.mxu0 %v1011
    %1429 = vmatpush1.bf16.msra.mxu0 %v1010
    %1430 = vmatprep.subr.bf16.mxu0 %v1019
    %1431 = vmatpush1.bf16.msra.mxu0 %v1018
    %1432 = vmatprep.subr.bf16.mxu0 %v1027
    %1433 = vmatpush1.bf16.msra.mxu0 %v1026
    %1434 = vmatprep.mubr.bf16.mxu0 %v769
    %1435 = vmatmul.mubr.bf16.gmra.mrb[0].mxu0 %v768
    %v1436 = vpop.f32.mrb[0].mxu0
    %v1437 = vadd.f32 0.0, %v1436
    %v1438 = vpop.f32.mrb[0].mxu0
    %v1439 = vadd.f32 0.0, %v1438
    %v1440 = vpop.f32.mrb[0].mxu0
    %v1441 = vpop.f32.mrb[0].mxu0
    %1442 = vdwg.mxu0
    %1443 = vmatprep.subr.bf16.mxu0 %v1035
    %1444 = vmatpush1.bf16.msra.mxu0 %v1034
    %1445 = vmatprep.subr.bf16.mxu0 %v1043
    %1446 = vmatpush1.bf16.msra.mxu0 %v1042
    %1447 = vmatprep.subr.bf16.mxu0 %v1051
    %1448 = vmatpush1.bf16.msra.mxu0 %v1050
    %1449 = vmatprep.subr.bf16.mxu0 %v1059
    %1450 = vmatpush1.bf16.msra.mxu0 %v1058
    %1451 = vmatprep.subr.bf16.mxu0 %v1067
    %1452 = vmatpush1.bf16.msra.mxu0 %v1066
    %1453 = vmatprep.subr.bf16.mxu0 %v1075
    %1454 = vmatpush1.bf16.msra.mxu0 %v1074
    %1455 = vmatprep.subr.bf16.mxu0 %v1083
    %1456 = vmatpush1.bf16.msra.mxu0 %v1082
    %1457 = vmatprep.subr.bf16.mxu0 %v1091
    %1458 = vmatpush1.bf16.msra.mxu0 %v1090
    %1459 = vmatprep.subr.bf16.mxu0 %v1099
    %1460 = vmatpush1.bf16.msra.mxu0 %v1098
    %1461 = vmatprep.subr.bf16.mxu0 %v1107
    %1462 = vmatpush1.bf16.msra.mxu0 %v1106
    %1463 = vmatprep.subr.bf16.mxu0 %v1115
    %1464 = vmatpush1.bf16.msra.mxu0 %v1114
    %1465 = vmatprep.subr.bf16.mxu0 %v1123
    %1466 = vmatpush1.bf16.msra.mxu0 %v1122
    %1467 = vmatprep.subr.bf16.mxu0 %v1131
    %1468 = vmatpush1.bf16.msra.mxu0 %v1130
    %1469 = vmatprep.subr.bf16.mxu0 %v1139
    %1470 = vmatpush1.bf16.msra.mxu0 %v1138
    %1471 = vmatprep.subr.bf16.mxu0 %v1147
    %1472 = vmatpush1.bf16.msra.mxu0 %v1146
    %1473 = vmatprep.subr.bf16.mxu0 %v1155
    %1474 = vmatpush1.bf16.msra.mxu0 %v1154
    %1475 = vmatprep.mubr.bf16.mxu0 %v771
    %1476 = vmatmul.mubr.bf16.gmra.mrb[0].mxu0 %v770
    %v1477 = vpop.f32.mrb[0].mxu0
    %v1478 = vadd.f32 %v1437, %v1477
    %v1479 = vpop.f32.mrb[0].mxu0
    %v1480 = vadd.f32 %v1439, %v1479
    %v1481 = vpop.f32.mrb[0].mxu0
    %v1482 = vpop.f32.mrb[0].mxu0
    %1483 = vdwg.mxu0
    %v1484 = vld [vmem:[#allocation19] sm:$0xff]
    %v1486 = vlaneseq
    %v1487 = vshrl.u32 %v1486, 7
    %v1488 = vsub.s32 0, %v1487
    %v1489 = vrot.slane %v1484, %v1488
    %v1490 = vlaneseq
    %v1491 = vshrl.u32 %v1490, 7
    %v1492 = vsub.s32 1, %v1491
    %v1493 = vrot.slane %v1484, %v1492
    %v1494 = vlaneseq
    %v1495 = vshrl.u32 %v1494, 7
    %v1496 = vsub.s32 2, %v1495
    %v1497 = vrot.slane %v1484, %v1496
    %v1498 = vlaneseq
    %v1499 = vshrl.u32 %v1498, 7
    %v1500 = vsub.s32 3, %v1499
    %v1501 = vrot.slane %v1484, %v1500
    %v1502 = vlaneseq
    %v1503 = vshrl.u32 %v1502, 7
    %v1504 = vsub.s32 4, %v1503
    %v1505 = vrot.slane %v1484, %v1504
    %v1506 = vlaneseq
    %v1507 = vshrl.u32 %v1506, 7
    %v1508 = vsub.s32 5, %v1507
    %v1509 = vrot.slane %v1484, %v1508
    %v1510 = vlaneseq
    %v1511 = vshrl.u32 %v1510, 7
    %v1512 = vsub.s32 6, %v1511
    %v1513 = vrot.slane %v1484, %v1512
    %v1514 = vlaneseq
    %v1515 = vshrl.u32 %v1514, 7
    %v1516 = vsub.s32 7, %v1515
    %v1517 = vrot.slane %v1484, %v1516
    %v1526 = vmul.f32 %v1232, %v1489
    %v1527 = vmul.f32 %v1234, %v1493
    %v1528 = vmul.f32 %v1314, %v1497
    %v1529 = vmul.f32 %v1316, %v1501
    %v1530 = vmul.f32 %v1396, %v1505
    %v1531 = vmul.f32 %v1398, %v1509
    %v1532 = vmul.f32 %v1478, %v1513
    %v1533 = vmul.f32 %v1480, %v1517
    %v1534 = vld [vmem:[#allocation20] sm:$0xff]
    %v1536 = vlaneseq
    %v1537 = vshrl.u32 %v1536, 7
    %v1538 = vsub.s32 0, %v1537
    %v1539 = vrot.slane %v1534, %v1538
    %v1540 = vlaneseq
    %v1541 = vshrl.u32 %v1540, 7
    %v1542 = vsub.s32 1, %v1541
    %v1543 = vrot.slane %v1534, %v1542
    %v1544 = vlaneseq
    %v1545 = vshrl.u32 %v1544, 7
    %v1546 = vsub.s32 2, %v1545
    %v1547 = vrot.slane %v1534, %v1546
    %v1548 = vlaneseq
    %v1549 = vshrl.u32 %v1548, 7
    %v1550 = vsub.s32 3, %v1549
    %v1551 = vrot.slane %v1534, %v1550
    %v1552 = vlaneseq
    %v1553 = vshrl.u32 %v1552, 7
    %v1554 = vsub.s32 4, %v1553
    %v1555 = vrot.slane %v1534, %v1554
    %v1556 = vlaneseq
    %v1557 = vshrl.u32 %v1556, 7
    %v1558 = vsub.s32 5, %v1557
    %v1559 = vrot.slane %v1534, %v1558
    %v1560 = vlaneseq
    %v1561 = vshrl.u32 %v1560, 7
    %v1562 = vsub.s32 6, %v1561
    %v1563 = vrot.slane %v1534, %v1562
    %v1564 = vlaneseq
    %v1565 = vshrl.u32 %v1564, 7
    %v1566 = vsub.s32 7, %v1565
    %v1567 = vrot.slane %v1534, %v1566
    %v1576 = vadd.f32 %v1526, %v1539
    %v1577 = vadd.f32 %v1527, %v1543
    %v1578 = vadd.f32 %v1528, %v1547
    %v1579 = vadd.f32 %v1529, %v1551
    %v1580 = vadd.f32 %v1530, %v1555
    %v1581 = vadd.f32 %v1531, %v1559
    %v1582 = vadd.f32 %v1532, %v1563
    %v1583 = vadd.f32 %v1533, %v1567
    %v1584 = vmax.f32 %v1576, 0.0
    %v1585 = vmax.f32 %v1577, 0.0
    %v1586 = vmax.f32 %v1578, 0.0
    %v1587 = vmax.f32 %v1579, 0.0
    %v1588 = vmax.f32 %v1580, 0.0
    %v1589 = vmax.f32 %v1581, 0.0
    %v1590 = vmax.f32 %v1582, 0.0
    %v1591 = vmax.f32 %v1583, 0.0
    %v1592 = vpack.c.bf16 %v1584, %v1584
    %v1593 = vpack.c.bf16 %v1585, %v1585
    %v1594 = vpack.c.bf16 %v1586, %v1586
    %v1595 = vpack.c.bf16 %v1587, %v1587
    %v1596 = vpack.c.bf16 %v1588, %v1588
    %v1597 = vpack.c.bf16 %v1589, %v1589
    %v1598 = vpack.c.bf16 %v1590, %v1590
    %v1599 = vpack.c.bf16 %v1591, %v1591
    %v1600 = vld [vmem:[#allocation22] sm:$0xff]
    %v1601 = vld [vmem:[#allocation22 + $0x8] sm:$0xff]
    %v1602 = vld [vmem:[#allocation22 + $0x10] sm:$0xff]
    %v1603 = vld [vmem:[#allocation22 + $0x18] sm:$0xff]
    %v1604 = vld [vmem:[#allocation22 + $0x20] sm:$0xff]
    %v1605 = vld [vmem:[#allocation22 + $0x28] sm:$0xff]
    %v1606 = vld [vmem:[#allocation22 + $0x30] sm:$0xff]
    %v1607 = vld [vmem:[#allocation22 + $0x38] sm:$0xff]
    %v1608 = vld [vmem:[#allocation22 + $0x40] sm:$0xff]
    %v1609 = vld [vmem:[#allocation22 + $0x48] sm:$0xff]
    %v1610 = vld [vmem:[#allocation22 + $0x50] sm:$0xff]
    %v1611 = vld [vmem:[#allocation22 + $0x58] sm:$0xff]
    %v1612 = vld [vmem:[#allocation22 + $0x60] sm:$0xff]
    %v1613 = vld [vmem:[#allocation22 + $0x68] sm:$0xff]
    %v1614 = vld [vmem:[#allocation22 + $0x70] sm:$0xff]
    %v1615 = vld [vmem:[#allocation22 + $0x78] sm:$0xff]
    %v1616 = vld [vmem:[#allocation22 + $0x80] sm:$0xff]
    %v1617 = vld [vmem:[#allocation22 + $0x88] sm:$0xff]
    %v1618 = vld [vmem:[#allocation22 + $0x90] sm:$0xff]
    %v1619 = vld [vmem:[#allocation22 + $0x98] sm:$0xff]
    %v1620 = vld [vmem:[#allocation22 + $0xa0] sm:$0xff]
    %v1621 = vld [vmem:[#allocation22 + $0xa8] sm:$0xff]
    %v1622 = vld [vmem:[#allocation22 + $0xb0] sm:$0xff]
    %v1623 = vld [vmem:[#allocation22 + $0xb8] sm:$0xff]
    %v1624 = vld [vmem:[#allocation22 + $0xc0] sm:$0xff]
    %v1625 = vld [vmem:[#allocation22 + $0xc8] sm:$0xff]
    %v1626 = vld [vmem:[#allocation22 + $0xd0] sm:$0xff]
    %v1627 = vld [vmem:[#allocation22 + $0xd8] sm:$0xff]
    %v1628 = vld [vmem:[#allocation22 + $0xe0] sm:$0xff]
    %v1629 = vld [vmem:[#allocation22 + $0xe8] sm:$0xff]
    %v1630 = vld [vmem:[#allocation22 + $0xf0] sm:$0xff]
    %v1631 = vld [vmem:[#allocation22 + $0xf8] sm:$0xff]
    %v1632 = vld [vmem:[#allocation22 + $0x100] sm:$0xff]
    %v1633 = vld [vmem:[#allocation22 + $0x108] sm:$0xff]
    %v1634 = vld [vmem:[#allocation22 + $0x110] sm:$0xff]
    %v1635 = vld [vmem:[#allocation22 + $0x118] sm:$0xff]
    %v1636 = vld [vmem:[#allocation22 + $0x120] sm:$0xff]
    %v1637 = vld [vmem:[#allocation22 + $0x128] sm:$0xff]
    %v1638 = vld [vmem:[#allocation22 + $0x130] sm:$0xff]
    %v1639 = vld [vmem:[#allocation22 + $0x138] sm:$0xff]
    %v1640 = vld [vmem:[#allocation22 + $0x140] sm:$0xff]
    %v1641 = vld [vmem:[#allocation22 + $0x148] sm:$0xff]
    %v1642 = vld [vmem:[#allocation22 + $0x150] sm:$0xff]
    %v1643 = vld [vmem:[#allocation22 + $0x158] sm:$0xff]
    %v1644 = vld [vmem:[#allocation22 + $0x160] sm:$0xff]
    %v1645 = vld [vmem:[#allocation22 + $0x168] sm:$0xff]
    %v1646 = vld [vmem:[#allocation22 + $0x170] sm:$0xff]
    %v1647 = vld [vmem:[#allocation22 + $0x178] sm:$0xff]
    %v1648 = vld [vmem:[#allocation22 + $0x180] sm:$0xff]
    %v1649 = vld [vmem:[#allocation22 + $0x188] sm:$0xff]
    %v1650 = vld [vmem:[#allocation22 + $0x190] sm:$0xff]
    %v1651 = vld [vmem:[#allocation22 + $0x198] sm:$0xff]
    %v1652 = vld [vmem:[#allocation22 + $0x1a0] sm:$0xff]
    %v1653 = vld [vmem:[#allocation22 + $0x1a8] sm:$0xff]
    %v1654 = vld [vmem:[#allocation22 + $0x1b0] sm:$0xff]
    %v1655 = vld [vmem:[#allocation22 + $0x1b8] sm:$0xff]
    %v1656 = vld [vmem:[#allocation22 + $0x1c0] sm:$0xff]
    %v1657 = vld [vmem:[#allocation22 + $0x1c8] sm:$0xff]
    %v1658 = vld [vmem:[#allocation22 + $0x1d0] sm:$0xff]
    %v1659 = vld [vmem:[#allocation22 + $0x1d8] sm:$0xff]
    %v1660 = vld [vmem:[#allocation22 + $0x1e0] sm:$0xff]
    %v1661 = vld [vmem:[#allocation22 + $0x1e8] sm:$0xff]
    %v1662 = vld [vmem:[#allocation22 + $0x1f0] sm:$0xff]
    %v1663 = vld [vmem:[#allocation22 + $0x1f8] sm:$0xff]
    %v1664 = vld [vmem:[#allocation22 + $0x200] sm:$0xff]
    %v1665 = vld [vmem:[#allocation22 + $0x208] sm:$0xff]
    %v1666 = vld [vmem:[#allocation22 + $0x210] sm:$0xff]
    %v1667 = vld [vmem:[#allocation22 + $0x218] sm:$0xff]
    %v1668 = vld [vmem:[#allocation22 + $0x220] sm:$0xff]
    %v1669 = vld [vmem:[#allocation22 + $0x228] sm:$0xff]
    %v1670 = vld [vmem:[#allocation22 + $0x230] sm:$0xff]
    %v1671 = vld [vmem:[#allocation22 + $0x238] sm:$0xff]
    %v1672 = vld [vmem:[#allocation22 + $0x240] sm:$0xff]
    %v1673 = vld [vmem:[#allocation22 + $0x248] sm:$0xff]
    %v1674 = vld [vmem:[#allocation22 + $0x250] sm:$0xff]
    %v1675 = vld [vmem:[#allocation22 + $0x258] sm:$0xff]
    %v1676 = vld [vmem:[#allocation22 + $0x260] sm:$0xff]
    %v1677 = vld [vmem:[#allocation22 + $0x268] sm:$0xff]
    %v1678 = vld [vmem:[#allocation22 + $0x270] sm:$0xff]
    %v1679 = vld [vmem:[#allocation22 + $0x278] sm:$0xff]
    %v1680 = vld [vmem:[#allocation22 + $0x280] sm:$0xff]
    %v1681 = vld [vmem:[#allocation22 + $0x288] sm:$0xff]
    %v1682 = vld [vmem:[#allocation22 + $0x290] sm:$0xff]
    %v1683 = vld [vmem:[#allocation22 + $0x298] sm:$0xff]
    %v1684 = vld [vmem:[#allocation22 + $0x2a0] sm:$0xff]
    %v1685 = vld [vmem:[#allocation22 + $0x2a8] sm:$0xff]
    %v1686 = vld [vmem:[#allocation22 + $0x2b0] sm:$0xff]
    %v1687 = vld [vmem:[#allocation22 + $0x2b8] sm:$0xff]
    %v1688 = vld [vmem:[#allocation22 + $0x2c0] sm:$0xff]
    %v1689 = vld [vmem:[#allocation22 + $0x2c8] sm:$0xff]
    %v1690 = vld [vmem:[#allocation22 + $0x2d0] sm:$0xff]
    %v1691 = vld [vmem:[#allocation22 + $0x2d8] sm:$0xff]
    %v1692 = vld [vmem:[#allocation22 + $0x2e0] sm:$0xff]
    %v1693 = vld [vmem:[#allocation22 + $0x2e8] sm:$0xff]
    %v1694 = vld [vmem:[#allocation22 + $0x2f0] sm:$0xff]
    %v1695 = vld [vmem:[#allocation22 + $0x2f8] sm:$0xff]
    %v1696 = vld [vmem:[#allocation22 + $0x300] sm:$0xff]
    %v1697 = vld [vmem:[#allocation22 + $0x308] sm:$0xff]
    %v1698 = vld [vmem:[#allocation22 + $0x310] sm:$0xff]
    %v1699 = vld [vmem:[#allocation22 + $0x318] sm:$0xff]
    %v1700 = vld [vmem:[#allocation22 + $0x320] sm:$0xff]
    %v1701 = vld [vmem:[#allocation22 + $0x328] sm:$0xff]
    %v1702 = vld [vmem:[#allocation22 + $0x330] sm:$0xff]
    %v1703 = vld [vmem:[#allocation22 + $0x338] sm:$0xff]
    %v1704 = vld [vmem:[#allocation22 + $0x340] sm:$0xff]
    %v1705 = vld [vmem:[#allocation22 + $0x348] sm:$0xff]
    %v1706 = vld [vmem:[#allocation22 + $0x350] sm:$0xff]
    %v1707 = vld [vmem:[#allocation22 + $0x358] sm:$0xff]
    %v1708 = vld [vmem:[#allocation22 + $0x360] sm:$0xff]
    %v1709 = vld [vmem:[#allocation22 + $0x368] sm:$0xff]
    %v1710 = vld [vmem:[#allocation22 + $0x370] sm:$0xff]
    %v1711 = vld [vmem:[#allocation22 + $0x378] sm:$0xff]
    %v1712 = vld [vmem:[#allocation22 + $0x380] sm:$0xff]
    %v1713 = vld [vmem:[#allocation22 + $0x388] sm:$0xff]
    %v1714 = vld [vmem:[#allocation22 + $0x390] sm:$0xff]
    %v1715 = vld [vmem:[#allocation22 + $0x398] sm:$0xff]
    %v1716 = vld [vmem:[#allocation22 + $0x3a0] sm:$0xff]
    %v1717 = vld [vmem:[#allocation22 + $0x3a8] sm:$0xff]
    %v1718 = vld [vmem:[#allocation22 + $0x3b0] sm:$0xff]
    %v1719 = vld [vmem:[#allocation22 + $0x3b8] sm:$0xff]
    %v1720 = vld [vmem:[#allocation22 + $0x3c0] sm:$0xff]
    %v1721 = vld [vmem:[#allocation22 + $0x3c8] sm:$0xff]
    %v1722 = vld [vmem:[#allocation22 + $0x3d0] sm:$0xff]
    %v1723 = vld [vmem:[#allocation22 + $0x3d8] sm:$0xff]
    %v1724 = vld [vmem:[#allocation22 + $0x3e0] sm:$0xff]
    %v1725 = vld [vmem:[#allocation22 + $0x3e8] sm:$0xff]
    %v1726 = vld [vmem:[#allocation22 + $0x3f0] sm:$0xff]
    %v1727 = vld [vmem:[#allocation22 + $0x3f8] sm:$0xff]
    %v1728 = vld [vmem:[#allocation22 + $0x400] sm:$0xff]
    %v1729 = vld [vmem:[#allocation22 + $0x408] sm:$0xff]
    %v1730 = vld [vmem:[#allocation22 + $0x410] sm:$0xff]
    %v1731 = vld [vmem:[#allocation22 + $0x418] sm:$0xff]
    %v1732 = vld [vmem:[#allocation22 + $0x420] sm:$0xff]
    %v1733 = vld [vmem:[#allocation22 + $0x428] sm:$0xff]
    %v1734 = vld [vmem:[#allocation22 + $0x430] sm:$0xff]
    %v1735 = vld [vmem:[#allocation22 + $0x438] sm:$0xff]
    %v1736 = vld [vmem:[#allocation22 + $0x440] sm:$0xff]
    %v1737 = vld [vmem:[#allocation22 + $0x448] sm:$0xff]
    %v1738 = vld [vmem:[#allocation22 + $0x450] sm:$0xff]
    %v1739 = vld [vmem:[#allocation22 + $0x458] sm:$0xff]
    %v1740 = vld [vmem:[#allocation22 + $0x460] sm:$0xff]
    %v1741 = vld [vmem:[#allocation22 + $0x468] sm:$0xff]
    %v1742 = vld [vmem:[#allocation22 + $0x470] sm:$0xff]
    %v1743 = vld [vmem:[#allocation22 + $0x478] sm:$0xff]
    %v1744 = vld [vmem:[#allocation22 + $0x480] sm:$0xff]
    %v1745 = vld [vmem:[#allocation22 + $0x488] sm:$0xff]
    %v1746 = vld [vmem:[#allocation22 + $0x490] sm:$0xff]
    %v1747 = vld [vmem:[#allocation22 + $0x498] sm:$0xff]
    %v1748 = vld [vmem:[#allocation22 + $0x4a0] sm:$0xff]
    %v1749 = vld [vmem:[#allocation22 + $0x4a8] sm:$0xff]
    %v1750 = vld [vmem:[#allocation22 + $0x4b0] sm:$0xff]
    %v1751 = vld [vmem:[#allocation22 + $0x4b8] sm:$0xff]
    %v1752 = vld [vmem:[#allocation22 + $0x4c0] sm:$0xff]
    %v1753 = vld [vmem:[#allocation22 + $0x4c8] sm:$0xff]
    %v1754 = vld [vmem:[#allocation22 + $0x4d0] sm:$0xff]
    %v1755 = vld [vmem:[#allocation22 + $0x4d8] sm:$0xff]
    %v1756 = vld [vmem:[#allocation22 + $0x4e0] sm:$0xff]
    %v1757 = vld [vmem:[#allocation22 + $0x4e8] sm:$0xff]
    %v1758 = vld [vmem:[#allocation22 + $0x4f0] sm:$0xff]
    %v1759 = vld [vmem:[#allocation22 + $0x4f8] sm:$0xff]
    %v1760 = vld [vmem:[#allocation22 + $0x500] sm:$0xff]
    %v1761 = vld [vmem:[#allocation22 + $0x508] sm:$0xff]
    %v1762 = vld [vmem:[#allocation22 + $0x510] sm:$0xff]
    %v1763 = vld [vmem:[#allocation22 + $0x518] sm:$0xff]
    %v1764 = vld [vmem:[#allocation22 + $0x520] sm:$0xff]
    %v1765 = vld [vmem:[#allocation22 + $0x528] sm:$0xff]
    %v1766 = vld [vmem:[#allocation22 + $0x530] sm:$0xff]
    %v1767 = vld [vmem:[#allocation22 + $0x538] sm:$0xff]
    %v1768 = vld [vmem:[#allocation22 + $0x540] sm:$0xff]
    %v1769 = vld [vmem:[#allocation22 + $0x548] sm:$0xff]
    %v1770 = vld [vmem:[#allocation22 + $0x550] sm:$0xff]
    %v1771 = vld [vmem:[#allocation22 + $0x558] sm:$0xff]
    %v1772 = vld [vmem:[#allocation22 + $0x560] sm:$0xff]
    %v1773 = vld [vmem:[#allocation22 + $0x568] sm:$0xff]
    %v1774 = vld [vmem:[#allocation22 + $0x570] sm:$0xff]
    %v1775 = vld [vmem:[#allocation22 + $0x578] sm:$0xff]
    %v1776 = vld [vmem:[#allocation22 + $0x580] sm:$0xff]
    %v1777 = vld [vmem:[#allocation22 + $0x588] sm:$0xff]
    %v1778 = vld [vmem:[#allocation22 + $0x590] sm:$0xff]
    %v1779 = vld [vmem:[#allocation22 + $0x598] sm:$0xff]
    %v1780 = vld [vmem:[#allocation22 + $0x5a0] sm:$0xff]
    %v1781 = vld [vmem:[#allocation22 + $0x5a8] sm:$0xff]
    %v1782 = vld [vmem:[#allocation22 + $0x5b0] sm:$0xff]
    %v1783 = vld [vmem:[#allocation22 + $0x5b8] sm:$0xff]
    %v1784 = vld [vmem:[#allocation22 + $0x5c0] sm:$0xff]
    %v1785 = vld [vmem:[#allocation22 + $0x5c8] sm:$0xff]
    %v1786 = vld [vmem:[#allocation22 + $0x5d0] sm:$0xff]
    %v1787 = vld [vmem:[#allocation22 + $0x5d8] sm:$0xff]
    %v1788 = vld [vmem:[#allocation22 + $0x5e0] sm:$0xff]
    %v1789 = vld [vmem:[#allocation22 + $0x5e8] sm:$0xff]
    %v1790 = vld [vmem:[#allocation22 + $0x5f0] sm:$0xff]
    %v1791 = vld [vmem:[#allocation22 + $0x5f8] sm:$0xff]
    %v1792 = vld [vmem:[#allocation22 + $0x600] sm:$0xff]
    %v1793 = vld [vmem:[#allocation22 + $0x608] sm:$0xff]
    %v1794 = vld [vmem:[#allocation22 + $0x610] sm:$0xff]
    %v1795 = vld [vmem:[#allocation22 + $0x618] sm:$0xff]
    %v1796 = vld [vmem:[#allocation22 + $0x620] sm:$0xff]
    %v1797 = vld [vmem:[#allocation22 + $0x628] sm:$0xff]
    %v1798 = vld [vmem:[#allocation22 + $0x630] sm:$0xff]
    %v1799 = vld [vmem:[#allocation22 + $0x638] sm:$0xff]
    %v1800 = vld [vmem:[#allocation22 + $0x640] sm:$0xff]
    %v1801 = vld [vmem:[#allocation22 + $0x648] sm:$0xff]
    %v1802 = vld [vmem:[#allocation22 + $0x650] sm:$0xff]
    %v1803 = vld [vmem:[#allocation22 + $0x658] sm:$0xff]
    %v1804 = vld [vmem:[#allocation22 + $0x660] sm:$0xff]
    %v1805 = vld [vmem:[#allocation22 + $0x668] sm:$0xff]
    %v1806 = vld [vmem:[#allocation22 + $0x670] sm:$0xff]
    %v1807 = vld [vmem:[#allocation22 + $0x678] sm:$0xff]
    %v1808 = vld [vmem:[#allocation22 + $0x680] sm:$0xff]
    %v1809 = vld [vmem:[#allocation22 + $0x688] sm:$0xff]
    %v1810 = vld [vmem:[#allocation22 + $0x690] sm:$0xff]
    %v1811 = vld [vmem:[#allocation22 + $0x698] sm:$0xff]
    %v1812 = vld [vmem:[#allocation22 + $0x6a0] sm:$0xff]
    %v1813 = vld [vmem:[#allocation22 + $0x6a8] sm:$0xff]
    %v1814 = vld [vmem:[#allocation22 + $0x6b0] sm:$0xff]
    %v1815 = vld [vmem:[#allocation22 + $0x6b8] sm:$0xff]
    %v1816 = vld [vmem:[#allocation22 + $0x6c0] sm:$0xff]
    %v1817 = vld [vmem:[#allocation22 + $0x6c8] sm:$0xff]
    %v1818 = vld [vmem:[#allocation22 + $0x6d0] sm:$0xff]
    %v1819 = vld [vmem:[#allocation22 + $0x6d8] sm:$0xff]
    %v1820 = vld [vmem:[#allocation22 + $0x6e0] sm:$0xff]
    %v1821 = vld [vmem:[#allocation22 + $0x6e8] sm:$0xff]
    %v1822 = vld [vmem:[#allocation22 + $0x6f0] sm:$0xff]
    %v1823 = vld [vmem:[#allocation22 + $0x6f8] sm:$0xff]
    %v1824 = vld [vmem:[#allocation22 + $0x700] sm:$0xff]
    %v1825 = vld [vmem:[#allocation22 + $0x708] sm:$0xff]
    %v1826 = vld [vmem:[#allocation22 + $0x710] sm:$0xff]
    %v1827 = vld [vmem:[#allocation22 + $0x718] sm:$0xff]
    %v1828 = vld [vmem:[#allocation22 + $0x720] sm:$0xff]
    %v1829 = vld [vmem:[#allocation22 + $0x728] sm:$0xff]
    %v1830 = vld [vmem:[#allocation22 + $0x730] sm:$0xff]
    %v1831 = vld [vmem:[#allocation22 + $0x738] sm:$0xff]
    %v1832 = vld [vmem:[#allocation22 + $0x740] sm:$0xff]
    %v1833 = vld [vmem:[#allocation22 + $0x748] sm:$0xff]
    %v1834 = vld [vmem:[#allocation22 + $0x750] sm:$0xff]
    %v1835 = vld [vmem:[#allocation22 + $0x758] sm:$0xff]
    %v1836 = vld [vmem:[#allocation22 + $0x760] sm:$0xff]
    %v1837 = vld [vmem:[#allocation22 + $0x768] sm:$0xff]
    %v1838 = vld [vmem:[#allocation22 + $0x770] sm:$0xff]
    %v1839 = vld [vmem:[#allocation22 + $0x778] sm:$0xff]
    %v1840 = vld [vmem:[#allocation22 + $0x780] sm:$0xff]
    %v1841 = vld [vmem:[#allocation22 + $0x788] sm:$0xff]
    %v1842 = vld [vmem:[#allocation22 + $0x790] sm:$0xff]
    %v1843 = vld [vmem:[#allocation22 + $0x798] sm:$0xff]
    %v1844 = vld [vmem:[#allocation22 + $0x7a0] sm:$0xff]
    %v1845 = vld [vmem:[#allocation22 + $0x7a8] sm:$0xff]
    %v1846 = vld [vmem:[#allocation22 + $0x7b0] sm:$0xff]
    %v1847 = vld [vmem:[#allocation22 + $0x7b8] sm:$0xff]
    %v1848 = vld [vmem:[#allocation22 + $0x7c0] sm:$0xff]
    %v1849 = vld [vmem:[#allocation22 + $0x7c8] sm:$0xff]
    %v1850 = vld [vmem:[#allocation22 + $0x7d0] sm:$0xff]
    %v1851 = vld [vmem:[#allocation22 + $0x7d8] sm:$0xff]
    %v1852 = vld [vmem:[#allocation22 + $0x7e0] sm:$0xff]
    %v1853 = vld [vmem:[#allocation22 + $0x7e8] sm:$0xff]
    %v1854 = vld [vmem:[#allocation22 + $0x7f0] sm:$0xff]
    %v1855 = vld [vmem:[#allocation22 + $0x7f8] sm:$0xff]
    %v1856 = vld [vmem:[#allocation22 + $0x800] sm:$0xff]
    %v1857 = vld [vmem:[#allocation22 + $0x808] sm:$0xff]
    %v1858 = vld [vmem:[#allocation22 + $0x810] sm:$0xff]
    %v1859 = vld [vmem:[#allocation22 + $0x818] sm:$0xff]
    %v1860 = vld [vmem:[#allocation22 + $0x820] sm:$0xff]
    %v1861 = vld [vmem:[#allocation22 + $0x828] sm:$0xff]
    %v1862 = vld [vmem:[#allocation22 + $0x830] sm:$0xff]
    %v1863 = vld [vmem:[#allocation22 + $0x838] sm:$0xff]
    %v1864 = vld [vmem:[#allocation22 + $0x840] sm:$0xff]
    %v1865 = vld [vmem:[#allocation22 + $0x848] sm:$0xff]
    %v1866 = vld [vmem:[#allocation22 + $0x850] sm:$0xff]
    %v1867 = vld [vmem:[#allocation22 + $0x858] sm:$0xff]
    %v1868 = vld [vmem:[#allocation22 + $0x860] sm:$0xff]
    %v1869 = vld [vmem:[#allocation22 + $0x868] sm:$0xff]
    %v1870 = vld [vmem:[#allocation22 + $0x870] sm:$0xff]
    %v1871 = vld [vmem:[#allocation22 + $0x878] sm:$0xff]
    %v1872 = vld [vmem:[#allocation22 + $0x880] sm:$0xff]
    %v1873 = vld [vmem:[#allocation22 + $0x888] sm:$0xff]
    %v1874 = vld [vmem:[#allocation22 + $0x890] sm:$0xff]
    %v1875 = vld [vmem:[#allocation22 + $0x898] sm:$0xff]
    %v1876 = vld [vmem:[#allocation22 + $0x8a0] sm:$0xff]
    %v1877 = vld [vmem:[#allocation22 + $0x8a8] sm:$0xff]
    %v1878 = vld [vmem:[#allocation22 + $0x8b0] sm:$0xff]
    %v1879 = vld [vmem:[#allocation22 + $0x8b8] sm:$0xff]
    %v1880 = vld [vmem:[#allocation22 + $0x8c0] sm:$0xff]
    %v1881 = vld [vmem:[#allocation22 + $0x8c8] sm:$0xff]
    %v1882 = vld [vmem:[#allocation22 + $0x8d0] sm:$0xff]
    %v1883 = vld [vmem:[#allocation22 + $0x8d8] sm:$0xff]
    %v1884 = vld [vmem:[#allocation22 + $0x8e0] sm:$0xff]
    %v1885 = vld [vmem:[#allocation22 + $0x8e8] sm:$0xff]
    %v1886 = vld [vmem:[#allocation22 + $0x8f0] sm:$0xff]
    %v1887 = vld [vmem:[#allocation22 + $0x8f8] sm:$0xff]
    %v1888 = vld [vmem:[#allocation22 + $0x900] sm:$0xff]
    %v1889 = vld [vmem:[#allocation22 + $0x908] sm:$0xff]
    %v1890 = vld [vmem:[#allocation22 + $0x910] sm:$0xff]
    %v1891 = vld [vmem:[#allocation22 + $0x918] sm:$0xff]
    %v1892 = vld [vmem:[#allocation22 + $0x920] sm:$0xff]
    %v1893 = vld [vmem:[#allocation22 + $0x928] sm:$0xff]
    %v1894 = vld [vmem:[#allocation22 + $0x930] sm:$0xff]
    %v1895 = vld [vmem:[#allocation22 + $0x938] sm:$0xff]
    %v1896 = vld [vmem:[#allocation22 + $0x940] sm:$0xff]
    %v1897 = vld [vmem:[#allocation22 + $0x948] sm:$0xff]
    %v1898 = vld [vmem:[#allocation22 + $0x950] sm:$0xff]
    %v1899 = vld [vmem:[#allocation22 + $0x958] sm:$0xff]
    %v1900 = vld [vmem:[#allocation22 + $0x960] sm:$0xff]
    %v1901 = vld [vmem:[#allocation22 + $0x968] sm:$0xff]
    %v1902 = vld [vmem:[#allocation22 + $0x970] sm:$0xff]
    %v1903 = vld [vmem:[#allocation22 + $0x978] sm:$0xff]
    %v1904 = vld [vmem:[#allocation22 + $0x980] sm:$0xff]
    %v1905 = vld [vmem:[#allocation22 + $0x988] sm:$0xff]
    %v1906 = vld [vmem:[#allocation22 + $0x990] sm:$0xff]
    %v1907 = vld [vmem:[#allocation22 + $0x998] sm:$0xff]
    %v1908 = vld [vmem:[#allocation22 + $0x9a0] sm:$0xff]
    %v1909 = vld [vmem:[#allocation22 + $0x9a8] sm:$0xff]
    %v1910 = vld [vmem:[#allocation22 + $0x9b0] sm:$0xff]
    %v1911 = vld [vmem:[#allocation22 + $0x9b8] sm:$0xff]
    %v1912 = vld [vmem:[#allocation22 + $0x9c0] sm:$0xff]
    %v1913 = vld [vmem:[#allocation22 + $0x9c8] sm:$0xff]
    %v1914 = vld [vmem:[#allocation22 + $0x9d0] sm:$0xff]
    %v1915 = vld [vmem:[#allocation22 + $0x9d8] sm:$0xff]
    %v1916 = vld [vmem:[#allocation22 + $0x9e0] sm:$0xff]
    %v1917 = vld [vmem:[#allocation22 + $0x9e8] sm:$0xff]
    %v1918 = vld [vmem:[#allocation22 + $0x9f0] sm:$0xff]
    %v1919 = vld [vmem:[#allocation22 + $0x9f8] sm:$0xff]
    %v1920 = vld [vmem:[#allocation22 + $0xa00] sm:$0xff]
    %v1921 = vld [vmem:[#allocation22 + $0xa08] sm:$0xff]
    %v1922 = vld [vmem:[#allocation22 + $0xa10] sm:$0xff]
    %v1923 = vld [vmem:[#allocation22 + $0xa18] sm:$0xff]
    %v1924 = vld [vmem:[#allocation22 + $0xa20] sm:$0xff]
    %v1925 = vld [vmem:[#allocation22 + $0xa28] sm:$0xff]
    %v1926 = vld [vmem:[#allocation22 + $0xa30] sm:$0xff]
    %v1927 = vld [vmem:[#allocation22 + $0xa38] sm:$0xff]
    %v1928 = vld [vmem:[#allocation22 + $0xa40] sm:$0xff]
    %v1929 = vld [vmem:[#allocation22 + $0xa48] sm:$0xff]
    %v1930 = vld [vmem:[#allocation22 + $0xa50] sm:$0xff]
    %v1931 = vld [vmem:[#allocation22 + $0xa58] sm:$0xff]
    %v1932 = vld [vmem:[#allocation22 + $0xa60] sm:$0xff]
    %v1933 = vld [vmem:[#allocation22 + $0xa68] sm:$0xff]
    %v1934 = vld [vmem:[#allocation22 + $0xa70] sm:$0xff]
    %v1935 = vld [vmem:[#allocation22 + $0xa78] sm:$0xff]
    %v1936 = vld [vmem:[#allocation22 + $0xa80] sm:$0xff]
    %v1937 = vld [vmem:[#allocation22 + $0xa88] sm:$0xff]
    %v1938 = vld [vmem:[#allocation22 + $0xa90] sm:$0xff]
    %v1939 = vld [vmem:[#allocation22 + $0xa98] sm:$0xff]
    %v1940 = vld [vmem:[#allocation22 + $0xaa0] sm:$0xff]
    %v1941 = vld [vmem:[#allocation22 + $0xaa8] sm:$0xff]
    %v1942 = vld [vmem:[#allocation22 + $0xab0] sm:$0xff]
    %v1943 = vld [vmem:[#allocation22 + $0xab8] sm:$0xff]
    %v1944 = vld [vmem:[#allocation22 + $0xac0] sm:$0xff]
    %v1945 = vld [vmem:[#allocation22 + $0xac8] sm:$0xff]
    %v1946 = vld [vmem:[#allocation22 + $0xad0] sm:$0xff]
    %v1947 = vld [vmem:[#allocation22 + $0xad8] sm:$0xff]
    %v1948 = vld [vmem:[#allocation22 + $0xae0] sm:$0xff]
    %v1949 = vld [vmem:[#allocation22 + $0xae8] sm:$0xff]
    %v1950 = vld [vmem:[#allocation22 + $0xaf0] sm:$0xff]
    %v1951 = vld [vmem:[#allocation22 + $0xaf8] sm:$0xff]
    %v1952 = vld [vmem:[#allocation22 + $0xb00] sm:$0xff]
    %v1953 = vld [vmem:[#allocation22 + $0xb08] sm:$0xff]
    %v1954 = vld [vmem:[#allocation22 + $0xb10] sm:$0xff]
    %v1955 = vld [vmem:[#allocation22 + $0xb18] sm:$0xff]
    %v1956 = vld [vmem:[#allocation22 + $0xb20] sm:$0xff]
    %v1957 = vld [vmem:[#allocation22 + $0xb28] sm:$0xff]
    %v1958 = vld [vmem:[#allocation22 + $0xb30] sm:$0xff]
    %v1959 = vld [vmem:[#allocation22 + $0xb38] sm:$0xff]
    %v1960 = vld [vmem:[#allocation22 + $0xb40] sm:$0xff]
    %v1961 = vld [vmem:[#allocation22 + $0xb48] sm:$0xff]
    %v1962 = vld [vmem:[#allocation22 + $0xb50] sm:$0xff]
    %v1963 = vld [vmem:[#allocation22 + $0xb58] sm:$0xff]
    %v1964 = vld [vmem:[#allocation22 + $0xb60] sm:$0xff]
    %v1965 = vld [vmem:[#allocation22 + $0xb68] sm:$0xff]
    %v1966 = vld [vmem:[#allocation22 + $0xb70] sm:$0xff]
    %v1967 = vld [vmem:[#allocation22 + $0xb78] sm:$0xff]
    %v1968 = vld [vmem:[#allocation22 + $0xb80] sm:$0xff]
    %v1969 = vld [vmem:[#allocation22 + $0xb88] sm:$0xff]
    %v1970 = vld [vmem:[#allocation22 + $0xb90] sm:$0xff]
    %v1971 = vld [vmem:[#allocation22 + $0xb98] sm:$0xff]
    %v1972 = vld [vmem:[#allocation22 + $0xba0] sm:$0xff]
    %v1973 = vld [vmem:[#allocation22 + $0xba8] sm:$0xff]
    %v1974 = vld [vmem:[#allocation22 + $0xbb0] sm:$0xff]
    %v1975 = vld [vmem:[#allocation22 + $0xbb8] sm:$0xff]
    %v1976 = vld [vmem:[#allocation22 + $0xbc0] sm:$0xff]
    %v1977 = vld [vmem:[#allocation22 + $0xbc8] sm:$0xff]
    %v1978 = vld [vmem:[#allocation22 + $0xbd0] sm:$0xff]
    %v1979 = vld [vmem:[#allocation22 + $0xbd8] sm:$0xff]
    %v1980 = vld [vmem:[#allocation22 + $0xbe0] sm:$0xff]
    %v1981 = vld [vmem:[#allocation22 + $0xbe8] sm:$0xff]
    %v1982 = vld [vmem:[#allocation22 + $0xbf0] sm:$0xff]
    %v1983 = vld [vmem:[#allocation22 + $0xbf8] sm:$0xff]
    %v1984 = vld [vmem:[#allocation22 + $0xc00] sm:$0xff]
    %v1985 = vld [vmem:[#allocation22 + $0xc08] sm:$0xff]
    %v1986 = vld [vmem:[#allocation22 + $0xc10] sm:$0xff]
    %v1987 = vld [vmem:[#allocation22 + $0xc18] sm:$0xff]
    %v1988 = vld [vmem:[#allocation22 + $0xc20] sm:$0xff]
    %v1989 = vld [vmem:[#allocation22 + $0xc28] sm:$0xff]
    %v1990 = vld [vmem:[#allocation22 + $0xc30] sm:$0xff]
    %v1991 = vld [vmem:[#allocation22 + $0xc38] sm:$0xff]
    %v1992 = vld [vmem:[#allocation22 + $0xc40] sm:$0xff]
    %v1993 = vld [vmem:[#allocation22 + $0xc48] sm:$0xff]
    %v1994 = vld [vmem:[#allocation22 + $0xc50] sm:$0xff]
    %v1995 = vld [vmem:[#allocation22 + $0xc58] sm:$0xff]
    %v1996 = vld [vmem:[#allocation22 + $0xc60] sm:$0xff]
    %v1997 = vld [vmem:[#allocation22 + $0xc68] sm:$0xff]
    %v1998 = vld [vmem:[#allocation22 + $0xc70] sm:$0xff]
    %v1999 = vld [vmem:[#allocation22 + $0xc78] sm:$0xff]
    %v2000 = vld [vmem:[#allocation22 + $0xc80] sm:$0xff]
    %v2001 = vld [vmem:[#allocation22 + $0xc88] sm:$0xff]
    %v2002 = vld [vmem:[#allocation22 + $0xc90] sm:$0xff]
    %v2003 = vld [vmem:[#allocation22 + $0xc98] sm:$0xff]
    %v2004 = vld [vmem:[#allocation22 + $0xca0] sm:$0xff]
    %v2005 = vld [vmem:[#allocation22 + $0xca8] sm:$0xff]
    %v2006 = vld [vmem:[#allocation22 + $0xcb0] sm:$0xff]
    %v2007 = vld [vmem:[#allocation22 + $0xcb8] sm:$0xff]
    %v2008 = vld [vmem:[#allocation22 + $0xcc0] sm:$0xff]
    %v2009 = vld [vmem:[#allocation22 + $0xcc8] sm:$0xff]
    %v2010 = vld [vmem:[#allocation22 + $0xcd0] sm:$0xff]
    %v2011 = vld [vmem:[#allocation22 + $0xcd8] sm:$0xff]
    %v2012 = vld [vmem:[#allocation22 + $0xce0] sm:$0xff]
    %v2013 = vld [vmem:[#allocation22 + $0xce8] sm:$0xff]
    %v2014 = vld [vmem:[#allocation22 + $0xcf0] sm:$0xff]
    %v2015 = vld [vmem:[#allocation22 + $0xcf8] sm:$0xff]
    %v2016 = vld [vmem:[#allocation22 + $0xd00] sm:$0xff]
    %v2017 = vld [vmem:[#allocation22 + $0xd08] sm:$0xff]
    %v2018 = vld [vmem:[#allocation22 + $0xd10] sm:$0xff]
    %v2019 = vld [vmem:[#allocation22 + $0xd18] sm:$0xff]
    %v2020 = vld [vmem:[#allocation22 + $0xd20] sm:$0xff]
    %v2021 = vld [vmem:[#allocation22 + $0xd28] sm:$0xff]
    %v2022 = vld [vmem:[#allocation22 + $0xd30] sm:$0xff]
    %v2023 = vld [vmem:[#allocation22 + $0xd38] sm:$0xff]
    %v2024 = vld [vmem:[#allocation22 + $0xd40] sm:$0xff]
    %v2025 = vld [vmem:[#allocation22 + $0xd48] sm:$0xff]
    %v2026 = vld [vmem:[#allocation22 + $0xd50] sm:$0xff]
    %v2027 = vld [vmem:[#allocation22 + $0xd58] sm:$0xff]
    %v2028 = vld [vmem:[#allocation22 + $0xd60] sm:$0xff]
    %v2029 = vld [vmem:[#allocation22 + $0xd68] sm:$0xff]
    %v2030 = vld [vmem:[#allocation22 + $0xd70] sm:$0xff]
    %v2031 = vld [vmem:[#allocation22 + $0xd78] sm:$0xff]
    %v2032 = vld [vmem:[#allocation22 + $0xd80] sm:$0xff]
    %v2033 = vld [vmem:[#allocation22 + $0xd88] sm:$0xff]
    %v2034 = vld [vmem:[#allocation22 + $0xd90] sm:$0xff]
    %v2035 = vld [vmem:[#allocation22 + $0xd98] sm:$0xff]
    %v2036 = vld [vmem:[#allocation22 + $0xda0] sm:$0xff]
    %v2037 = vld [vmem:[#allocation22 + $0xda8] sm:$0xff]
    %v2038 = vld [vmem:[#allocation22 + $0xdb0] sm:$0xff]
    %v2039 = vld [vmem:[#allocation22 + $0xdb8] sm:$0xff]
    %v2040 = vld [vmem:[#allocation22 + $0xdc0] sm:$0xff]
    %v2041 = vld [vmem:[#allocation22 + $0xdc8] sm:$0xff]
    %v2042 = vld [vmem:[#allocation22 + $0xdd0] sm:$0xff]
    %v2043 = vld [vmem:[#allocation22 + $0xdd8] sm:$0xff]
    %v2044 = vld [vmem:[#allocation22 + $0xde0] sm:$0xff]
    %v2045 = vld [vmem:[#allocation22 + $0xde8] sm:$0xff]
    %v2046 = vld [vmem:[#allocation22 + $0xdf0] sm:$0xff]
    %v2047 = vld [vmem:[#allocation22 + $0xdf8] sm:$0xff]
    %v2048 = vld [vmem:[#allocation22 + $0xe00] sm:$0xff]
    %v2049 = vld [vmem:[#allocation22 + $0xe08] sm:$0xff]
    %v2050 = vld [vmem:[#allocation22 + $0xe10] sm:$0xff]
    %v2051 = vld [vmem:[#allocation22 + $0xe18] sm:$0xff]
    %v2052 = vld [vmem:[#allocation22 + $0xe20] sm:$0xff]
    %v2053 = vld [vmem:[#allocation22 + $0xe28] sm:$0xff]
    %v2054 = vld [vmem:[#allocation22 + $0xe30] sm:$0xff]
    %v2055 = vld [vmem:[#allocation22 + $0xe38] sm:$0xff]
    %v2056 = vld [vmem:[#allocation22 + $0xe40] sm:$0xff]
    %v2057 = vld [vmem:[#allocation22 + $0xe48] sm:$0xff]
    %v2058 = vld [vmem:[#allocation22 + $0xe50] sm:$0xff]
    %v2059 = vld [vmem:[#allocation22 + $0xe58] sm:$0xff]
    %v2060 = vld [vmem:[#allocation22 + $0xe60] sm:$0xff]
    %v2061 = vld [vmem:[#allocation22 + $0xe68] sm:$0xff]
    %v2062 = vld [vmem:[#allocation22 + $0xe70] sm:$0xff]
    %v2063 = vld [vmem:[#allocation22 + $0xe78] sm:$0xff]
    %v2064 = vld [vmem:[#allocation22 + $0xe80] sm:$0xff]
    %v2065 = vld [vmem:[#allocation22 + $0xe88] sm:$0xff]
    %v2066 = vld [vmem:[#allocation22 + $0xe90] sm:$0xff]
    %v2067 = vld [vmem:[#allocation22 + $0xe98] sm:$0xff]
    %v2068 = vld [vmem:[#allocation22 + $0xea0] sm:$0xff]
    %v2069 = vld [vmem:[#allocation22 + $0xea8] sm:$0xff]
    %v2070 = vld [vmem:[#allocation22 + $0xeb0] sm:$0xff]
    %v2071 = vld [vmem:[#allocation22 + $0xeb8] sm:$0xff]
    %v2072 = vld [vmem:[#allocation22 + $0xec0] sm:$0xff]
    %v2073 = vld [vmem:[#allocation22 + $0xec8] sm:$0xff]
    %v2074 = vld [vmem:[#allocation22 + $0xed0] sm:$0xff]
    %v2075 = vld [vmem:[#allocation22 + $0xed8] sm:$0xff]
    %v2076 = vld [vmem:[#allocation22 + $0xee0] sm:$0xff]
    %v2077 = vld [vmem:[#allocation22 + $0xee8] sm:$0xff]
    %v2078 = vld [vmem:[#allocation22 + $0xef0] sm:$0xff]
    %v2079 = vld [vmem:[#allocation22 + $0xef8] sm:$0xff]
    %v2080 = vld [vmem:[#allocation22 + $0xf00] sm:$0xff]
    %v2081 = vld [vmem:[#allocation22 + $0xf08] sm:$0xff]
    %v2082 = vld [vmem:[#allocation22 + $0xf10] sm:$0xff]
    %v2083 = vld [vmem:[#allocation22 + $0xf18] sm:$0xff]
    %v2084 = vld [vmem:[#allocation22 + $0xf20] sm:$0xff]
    %v2085 = vld [vmem:[#allocation22 + $0xf28] sm:$0xff]
    %v2086 = vld [vmem:[#allocation22 + $0xf30] sm:$0xff]
    %v2087 = vld [vmem:[#allocation22 + $0xf38] sm:$0xff]
    %v2088 = vld [vmem:[#allocation22 + $0xf40] sm:$0xff]
    %v2089 = vld [vmem:[#allocation22 + $0xf48] sm:$0xff]
    %v2090 = vld [vmem:[#allocation22 + $0xf50] sm:$0xff]
    %v2091 = vld [vmem:[#allocation22 + $0xf58] sm:$0xff]
    %v2092 = vld [vmem:[#allocation22 + $0xf60] sm:$0xff]
    %v2093 = vld [vmem:[#allocation22 + $0xf68] sm:$0xff]
    %v2094 = vld [vmem:[#allocation22 + $0xf70] sm:$0xff]
    %v2095 = vld [vmem:[#allocation22 + $0xf78] sm:$0xff]
    %v2096 = vld [vmem:[#allocation22 + $0xf80] sm:$0xff]
    %v2097 = vld [vmem:[#allocation22 + $0xf88] sm:$0xff]
    %v2098 = vld [vmem:[#allocation22 + $0xf90] sm:$0xff]
    %v2099 = vld [vmem:[#allocation22 + $0xf98] sm:$0xff]
    %v2100 = vld [vmem:[#allocation22 + $0xfa0] sm:$0xff]
    %v2101 = vld [vmem:[#allocation22 + $0xfa8] sm:$0xff]
    %v2102 = vld [vmem:[#allocation22 + $0xfb0] sm:$0xff]
    %v2103 = vld [vmem:[#allocation22 + $0xfb8] sm:$0xff]
    %v2104 = vld [vmem:[#allocation22 + $0xfc0] sm:$0xff]
    %v2105 = vld [vmem:[#allocation22 + $0xfc8] sm:$0xff]
    %v2106 = vld [vmem:[#allocation22 + $0xfd0] sm:$0xff]
    %v2107 = vld [vmem:[#allocation22 + $0xfd8] sm:$0xff]
    %v2108 = vld [vmem:[#allocation22 + $0xfe0] sm:$0xff]
    %v2109 = vld [vmem:[#allocation22 + $0xfe8] sm:$0xff]
    %v2110 = vld [vmem:[#allocation22 + $0xff0] sm:$0xff]
    %v2111 = vld [vmem:[#allocation22 + $0xff8] sm:$0xff]
    %v2112 = vunpack.c.l.s8.bf16 %v1600
    %v2113 = vunpack.c.l.s8.bf16 %v1601
    %v2114 = vunpack.c.l.s8.bf16 %v1602
    %v2115 = vunpack.c.l.s8.bf16 %v1603
    %v2116 = vunpack.c.l.s8.bf16 %v1604
    %v2117 = vunpack.c.l.s8.bf16 %v1605
    %v2118 = vunpack.c.l.s8.bf16 %v1606
    %v2119 = vunpack.c.l.s8.bf16 %v1607
    %v2120 = vunpack.c.l.s8.bf16 %v1608
    %v2121 = vunpack.c.l.s8.bf16 %v1609
    %v2122 = vunpack.c.l.s8.bf16 %v1610
    %v2123 = vunpack.c.l.s8.bf16 %v1611
    %v2124 = vunpack.c.l.s8.bf16 %v1612
    %v2125 = vunpack.c.l.s8.bf16 %v1613
    %v2126 = vunpack.c.l.s8.bf16 %v1614
    %v2127 = vunpack.c.l.s8.bf16 %v1615
    %v2128 = vunpack.c.h.s8.bf16 %v1600
    %v2129 = vunpack.c.h.s8.bf16 %v1601
    %v2130 = vunpack.c.h.s8.bf16 %v1602
    %v2131 = vunpack.c.h.s8.bf16 %v1603
    %v2132 = vunpack.c.h.s8.bf16 %v1604
    %v2133 = vunpack.c.h.s8.bf16 %v1605
    %v2134 = vunpack.c.h.s8.bf16 %v1606
    %v2135 = vunpack.c.h.s8.bf16 %v1607
    %v2136 = vunpack.c.h.s8.bf16 %v1608
    %v2137 = vunpack.c.h.s8.bf16 %v1609
    %v2138 = vunpack.c.h.s8.bf16 %v1610
    %v2139 = vunpack.c.h.s8.bf16 %v1611
    %v2140 = vunpack.c.h.s8.bf16 %v1612
    %v2141 = vunpack.c.h.s8.bf16 %v1613
    %v2142 = vunpack.c.h.s8.bf16 %v1614
    %v2143 = vunpack.c.h.s8.bf16 %v1615
    %v2144 = vunpack.c.l.s8.bf16 %v1616
    %v2145 = vunpack.c.l.s8.bf16 %v1617
    %v2146 = vunpack.c.l.s8.bf16 %v1618
    %v2147 = vunpack.c.l.s8.bf16 %v1619
    %v2148 = vunpack.c.l.s8.bf16 %v1620
    %v2149 = vunpack.c.l.s8.bf16 %v1621
    %v2150 = vunpack.c.l.s8.bf16 %v1622
    %v2151 = vunpack.c.l.s8.bf16 %v1623
    %v2152 = vunpack.c.l.s8.bf16 %v1624
    %v2153 = vunpack.c.l.s8.bf16 %v1625
    %v2154 = vunpack.c.l.s8.bf16 %v1626
    %v2155 = vunpack.c.l.s8.bf16 %v1627
    %v2156 = vunpack.c.l.s8.bf16 %v1628
    %v2157 = vunpack.c.l.s8.bf16 %v1629
    %v2158 = vunpack.c.l.s8.bf16 %v1630
    %v2159 = vunpack.c.l.s8.bf16 %v1631
    %v2160 = vunpack.c.h.s8.bf16 %v1616
    %v2161 = vunpack.c.h.s8.bf16 %v1617
    %v2162 = vunpack.c.h.s8.bf16 %v1618
    %v2163 = vunpack.c.h.s8.bf16 %v1619
    %v2164 = vunpack.c.h.s8.bf16 %v1620
    %v2165 = vunpack.c.h.s8.bf16 %v1621
    %v2166 = vunpack.c.h.s8.bf16 %v1622
    %v2167 = vunpack.c.h.s8.bf16 %v1623
    %v2168 = vunpack.c.h.s8.bf16 %v1624
    %v2169 = vunpack.c.h.s8.bf16 %v1625
    %v2170 = vunpack.c.h.s8.bf16 %v1626
    %v2171 = vunpack.c.h.s8.bf16 %v1627
    %v2172 = vunpack.c.h.s8.bf16 %v1628
    %v2173 = vunpack.c.h.s8.bf16 %v1629
    %v2174 = vunpack.c.h.s8.bf16 %v1630
    %v2175 = vunpack.c.h.s8.bf16 %v1631
    %v2176 = vunpack.c.l.s8.bf16 %v1632
    %v2177 = vunpack.c.l.s8.bf16 %v1633
    %v2178 = vunpack.c.l.s8.bf16 %v1634
    %v2179 = vunpack.c.l.s8.bf16 %v1635
    %v2180 = vunpack.c.l.s8.bf16 %v1636
    %v2181 = vunpack.c.l.s8.bf16 %v1637
    %v2182 = vunpack.c.l.s8.bf16 %v1638
    %v2183 = vunpack.c.l.s8.bf16 %v1639
    %v2184 = vunpack.c.l.s8.bf16 %v1640
    %v2185 = vunpack.c.l.s8.bf16 %v1641
    %v2186 = vunpack.c.l.s8.bf16 %v1642
    %v2187 = vunpack.c.l.s8.bf16 %v1643
    %v2188 = vunpack.c.l.s8.bf16 %v1644
    %v2189 = vunpack.c.l.s8.bf16 %v1645
    %v2190 = vunpack.c.l.s8.bf16 %v1646
    %v2191 = vunpack.c.l.s8.bf16 %v1647
    %v2192 = vunpack.c.h.s8.bf16 %v1632
    %v2193 = vunpack.c.h.s8.bf16 %v1633
    %v2194 = vunpack.c.h.s8.bf16 %v1634
    %v2195 = vunpack.c.h.s8.bf16 %v1635
    %v2196 = vunpack.c.h.s8.bf16 %v1636
    %v2197 = vunpack.c.h.s8.bf16 %v1637
    %v2198 = vunpack.c.h.s8.bf16 %v1638
    %v2199 = vunpack.c.h.s8.bf16 %v1639
    %v2200 = vunpack.c.h.s8.bf16 %v1640
    %v2201 = vunpack.c.h.s8.bf16 %v1641
    %v2202 = vunpack.c.h.s8.bf16 %v1642
    %v2203 = vunpack.c.h.s8.bf16 %v1643
    %v2204 = vunpack.c.h.s8.bf16 %v1644
    %v2205 = vunpack.c.h.s8.bf16 %v1645
    %v2206 = vunpack.c.h.s8.bf16 %v1646
    %v2207 = vunpack.c.h.s8.bf16 %v1647
    %v2208 = vunpack.c.l.s8.bf16 %v1648
    %v2209 = vunpack.c.l.s8.bf16 %v1649
    %v2210 = vunpack.c.l.s8.bf16 %v1650
    %v2211 = vunpack.c.l.s8.bf16 %v1651
    %v2212 = vunpack.c.l.s8.bf16 %v1652
    %v2213 = vunpack.c.l.s8.bf16 %v1653
    %v2214 = vunpack.c.l.s8.bf16 %v1654
    %v2215 = vunpack.c.l.s8.bf16 %v1655
    %v2216 = vunpack.c.l.s8.bf16 %v1656
    %v2217 = vunpack.c.l.s8.bf16 %v1657
    %v2218 = vunpack.c.l.s8.bf16 %v1658
    %v2219 = vunpack.c.l.s8.bf16 %v1659
    %v2220 = vunpack.c.l.s8.bf16 %v1660
    %v2221 = vunpack.c.l.s8.bf16 %v1661
    %v2222 = vunpack.c.l.s8.bf16 %v1662
    %v2223 = vunpack.c.l.s8.bf16 %v1663
    %v2224 = vunpack.c.h.s8.bf16 %v1648
    %v2225 = vunpack.c.h.s8.bf16 %v1649
    %v2226 = vunpack.c.h.s8.bf16 %v1650
    %v2227 = vunpack.c.h.s8.bf16 %v1651
    %v2228 = vunpack.c.h.s8.bf16 %v1652
    %v2229 = vunpack.c.h.s8.bf16 %v1653
    %v2230 = vunpack.c.h.s8.bf16 %v1654
    %v2231 = vunpack.c.h.s8.bf16 %v1655
    %v2232 = vunpack.c.h.s8.bf16 %v1656
    %v2233 = vunpack.c.h.s8.bf16 %v1657
    %v2234 = vunpack.c.h.s8.bf16 %v1658
    %v2235 = vunpack.c.h.s8.bf16 %v1659
    %v2236 = vunpack.c.h.s8.bf16 %v1660
    %v2237 = vunpack.c.h.s8.bf16 %v1661
    %v2238 = vunpack.c.h.s8.bf16 %v1662
    %v2239 = vunpack.c.h.s8.bf16 %v1663
    %v2240 = vunpack.c.l.s8.bf16 %v1664
    %v2241 = vunpack.c.l.s8.bf16 %v1665
    %v2242 = vunpack.c.l.s8.bf16 %v1666
    %v2243 = vunpack.c.l.s8.bf16 %v1667
    %v2244 = vunpack.c.l.s8.bf16 %v1668
    %v2245 = vunpack.c.l.s8.bf16 %v1669
    %v2246 = vunpack.c.l.s8.bf16 %v1670
    %v2247 = vunpack.c.l.s8.bf16 %v1671
    %v2248 = vunpack.c.l.s8.bf16 %v1672
    %v2249 = vunpack.c.l.s8.bf16 %v1673
    %v2250 = vunpack.c.l.s8.bf16 %v1674
    %v2251 = vunpack.c.l.s8.bf16 %v1675
    %v2252 = vunpack.c.l.s8.bf16 %v1676
    %v2253 = vunpack.c.l.s8.bf16 %v1677
    %v2254 = vunpack.c.l.s8.bf16 %v1678
    %v2255 = vunpack.c.l.s8.bf16 %v1679
    %v2256 = vunpack.c.h.s8.bf16 %v1664
    %v2257 = vunpack.c.h.s8.bf16 %v1665
    %v2258 = vunpack.c.h.s8.bf16 %v1666
    %v2259 = vunpack.c.h.s8.bf16 %v1667
    %v2260 = vunpack.c.h.s8.bf16 %v1668
    %v2261 = vunpack.c.h.s8.bf16 %v1669
    %v2262 = vunpack.c.h.s8.bf16 %v1670
    %v2263 = vunpack.c.h.s8.bf16 %v1671
    %v2264 = vunpack.c.h.s8.bf16 %v1672
    %v2265 = vunpack.c.h.s8.bf16 %v1673
    %v2266 = vunpack.c.h.s8.bf16 %v1674
    %v2267 = vunpack.c.h.s8.bf16 %v1675
    %v2268 = vunpack.c.h.s8.bf16 %v1676
    %v2269 = vunpack.c.h.s8.bf16 %v1677
    %v2270 = vunpack.c.h.s8.bf16 %v1678
    %v2271 = vunpack.c.h.s8.bf16 %v1679
    %v2272 = vunpack.c.l.s8.bf16 %v1680
    %v2273 = vunpack.c.l.s8.bf16 %v1681
    %v2274 = vunpack.c.l.s8.bf16 %v1682
    %v2275 = vunpack.c.l.s8.bf16 %v1683
    %v2276 = vunpack.c.l.s8.bf16 %v1684
    %v2277 = vunpack.c.l.s8.bf16 %v1685
    %v2278 = vunpack.c.l.s8.bf16 %v1686
    %v2279 = vunpack.c.l.s8.bf16 %v1687
    %v2280 = vunpack.c.l.s8.bf16 %v1688
    %v2281 = vunpack.c.l.s8.bf16 %v1689
    %v2282 = vunpack.c.l.s8.bf16 %v1690
    %v2283 = vunpack.c.l.s8.bf16 %v1691
    %v2284 = vunpack.c.l.s8.bf16 %v1692
    %v2285 = vunpack.c.l.s8.bf16 %v1693
    %v2286 = vunpack.c.l.s8.bf16 %v1694
    %v2287 = vunpack.c.l.s8.bf16 %v1695
    %v2288 = vunpack.c.h.s8.bf16 %v1680
    %v2289 = vunpack.c.h.s8.bf16 %v1681
    %v2290 = vunpack.c.h.s8.bf16 %v1682
    %v2291 = vunpack.c.h.s8.bf16 %v1683
    %v2292 = vunpack.c.h.s8.bf16 %v1684
    %v2293 = vunpack.c.h.s8.bf16 %v1685
    %v2294 = vunpack.c.h.s8.bf16 %v1686
    %v2295 = vunpack.c.h.s8.bf16 %v1687
    %v2296 = vunpack.c.h.s8.bf16 %v1688
    %v2297 = vunpack.c.h.s8.bf16 %v1689
    %v2298 = vunpack.c.h.s8.bf16 %v1690
    %v2299 = vunpack.c.h.s8.bf16 %v1691
    %v2300 = vunpack.c.h.s8.bf16 %v1692
    %v2301 = vunpack.c.h.s8.bf16 %v1693
    %v2302 = vunpack.c.h.s8.bf16 %v1694
    %v2303 = vunpack.c.h.s8.bf16 %v1695
    %v2304 = vunpack.c.l.s8.bf16 %v1696
    %v2305 = vunpack.c.l.s8.bf16 %v1697
    %v2306 = vunpack.c.l.s8.bf16 %v1698
    %v2307 = vunpack.c.l.s8.bf16 %v1699
    %v2308 = vunpack.c.l.s8.bf16 %v1700
    %v2309 = vunpack.c.l.s8.bf16 %v1701
    %v2310 = vunpack.c.l.s8.bf16 %v1702
    %v2311 = vunpack.c.l.s8.bf16 %v1703
    %v2312 = vunpack.c.l.s8.bf16 %v1704
    %v2313 = vunpack.c.l.s8.bf16 %v1705
    %v2314 = vunpack.c.l.s8.bf16 %v1706
    %v2315 = vunpack.c.l.s8.bf16 %v1707
    %v2316 = vunpack.c.l.s8.bf16 %v1708
    %v2317 = vunpack.c.l.s8.bf16 %v1709
    %v2318 = vunpack.c.l.s8.bf16 %v1710
    %v2319 = vunpack.c.l.s8.bf16 %v1711
    %v2320 = vunpack.c.h.s8.bf16 %v1696
    %v2321 = vunpack.c.h.s8.bf16 %v1697
    %v2322 = vunpack.c.h.s8.bf16 %v1698
    %v2323 = vunpack.c.h.s8.bf16 %v1699
    %v2324 = vunpack.c.h.s8.bf16 %v1700
    %v2325 = vunpack.c.h.s8.bf16 %v1701
    %v2326 = vunpack.c.h.s8.bf16 %v1702
    %v2327 = vunpack.c.h.s8.bf16 %v1703
    %v2328 = vunpack.c.h.s8.bf16 %v1704
    %v2329 = vunpack.c.h.s8.bf16 %v1705
    %v2330 = vunpack.c.h.s8.bf16 %v1706
    %v2331 = vunpack.c.h.s8.bf16 %v1707
    %v2332 = vunpack.c.h.s8.bf16 %v1708
    %v2333 = vunpack.c.h.s8.bf16 %v1709
    %v2334 = vunpack.c.h.s8.bf16 %v1710
    %v2335 = vunpack.c.h.s8.bf16 %v1711
    %v2336 = vunpack.c.l.s8.bf16 %v1712
    %v2337 = vunpack.c.l.s8.bf16 %v1713
    %v2338 = vunpack.c.l.s8.bf16 %v1714
    %v2339 = vunpack.c.l.s8.bf16 %v1715
    %v2340 = vunpack.c.l.s8.bf16 %v1716
    %v2341 = vunpack.c.l.s8.bf16 %v1717
    %v2342 = vunpack.c.l.s8.bf16 %v1718
    %v2343 = vunpack.c.l.s8.bf16 %v1719
    %v2344 = vunpack.c.l.s8.bf16 %v1720
    %v2345 = vunpack.c.l.s8.bf16 %v1721
    %v2346 = vunpack.c.l.s8.bf16 %v1722
    %v2347 = vunpack.c.l.s8.bf16 %v1723
    %v2348 = vunpack.c.l.s8.bf16 %v1724
    %v2349 = vunpack.c.l.s8.bf16 %v1725
    %v2350 = vunpack.c.l.s8.bf16 %v1726
    %v2351 = vunpack.c.l.s8.bf16 %v1727
    %v2352 = vunpack.c.h.s8.bf16 %v1712
    %v2353 = vunpack.c.h.s8.bf16 %v1713
    %v2354 = vunpack.c.h.s8.bf16 %v1714
    %v2355 = vunpack.c.h.s8.bf16 %v1715
    %v2356 = vunpack.c.h.s8.bf16 %v1716
    %v2357 = vunpack.c.h.s8.bf16 %v1717
    %v2358 = vunpack.c.h.s8.bf16 %v1718
    %v2359 = vunpack.c.h.s8.bf16 %v1719
    %v2360 = vunpack.c.h.s8.bf16 %v1720
    %v2361 = vunpack.c.h.s8.bf16 %v1721
    %v2362 = vunpack.c.h.s8.bf16 %v1722
    %v2363 = vunpack.c.h.s8.bf16 %v1723
    %v2364 = vunpack.c.h.s8.bf16 %v1724
    %v2365 = vunpack.c.h.s8.bf16 %v1725
    %v2366 = vunpack.c.h.s8.bf16 %v1726
    %v2367 = vunpack.c.h.s8.bf16 %v1727
    %v2368 = vunpack.c.l.s8.bf16 %v1728
    %v2369 = vunpack.c.l.s8.bf16 %v1729
    %v2370 = vunpack.c.l.s8.bf16 %v1730
    %v2371 = vunpack.c.l.s8.bf16 %v1731
    %v2372 = vunpack.c.l.s8.bf16 %v1732
    %v2373 = vunpack.c.l.s8.bf16 %v1733
    %v2374 = vunpack.c.l.s8.bf16 %v1734
    %v2375 = vunpack.c.l.s8.bf16 %v1735
    %v2376 = vunpack.c.l.s8.bf16 %v1736
    %v2377 = vunpack.c.l.s8.bf16 %v1737
    %v2378 = vunpack.c.l.s8.bf16 %v1738
    %v2379 = vunpack.c.l.s8.bf16 %v1739
    %v2380 = vunpack.c.l.s8.bf16 %v1740
    %v2381 = vunpack.c.l.s8.bf16 %v1741
    %v2382 = vunpack.c.l.s8.bf16 %v1742
    %v2383 = vunpack.c.l.s8.bf16 %v1743
    %v2384 = vunpack.c.h.s8.bf16 %v1728
    %v2385 = vunpack.c.h.s8.bf16 %v1729
    %v2386 = vunpack.c.h.s8.bf16 %v1730
    %v2387 = vunpack.c.h.s8.bf16 %v1731
    %v2388 = vunpack.c.h.s8.bf16 %v1732
    %v2389 = vunpack.c.h.s8.bf16 %v1733
    %v2390 = vunpack.c.h.s8.bf16 %v1734
    %v2391 = vunpack.c.h.s8.bf16 %v1735
    %v2392 = vunpack.c.h.s8.bf16 %v1736
    %v2393 = vunpack.c.h.s8.bf16 %v1737
    %v2394 = vunpack.c.h.s8.bf16 %v1738
    %v2395 = vunpack.c.h.s8.bf16 %v1739
    %v2396 = vunpack.c.h.s8.bf16 %v1740
    %v2397 = vunpack.c.h.s8.bf16 %v1741
    %v2398 = vunpack.c.h.s8.bf16 %v1742
    %v2399 = vunpack.c.h.s8.bf16 %v1743
    %v2400 = vunpack.c.l.s8.bf16 %v1744
    %v2401 = vunpack.c.l.s8.bf16 %v1745
    %v2402 = vunpack.c.l.s8.bf16 %v1746
    %v2403 = vunpack.c.l.s8.bf16 %v1747
    %v2404 = vunpack.c.l.s8.bf16 %v1748
    %v2405 = vunpack.c.l.s8.bf16 %v1749
    %v2406 = vunpack.c.l.s8.bf16 %v1750
    %v2407 = vunpack.c.l.s8.bf16 %v1751
    %v2408 = vunpack.c.l.s8.bf16 %v1752
    %v2409 = vunpack.c.l.s8.bf16 %v1753
    %v2410 = vunpack.c.l.s8.bf16 %v1754
    %v2411 = vunpack.c.l.s8.bf16 %v1755
    %v2412 = vunpack.c.l.s8.bf16 %v1756
    %v2413 = vunpack.c.l.s8.bf16 %v1757
    %v2414 = vunpack.c.l.s8.bf16 %v1758
    %v2415 = vunpack.c.l.s8.bf16 %v1759
    %v2416 = vunpack.c.h.s8.bf16 %v1744
    %v2417 = vunpack.c.h.s8.bf16 %v1745
    %v2418 = vunpack.c.h.s8.bf16 %v1746
    %v2419 = vunpack.c.h.s8.bf16 %v1747
    %v2420 = vunpack.c.h.s8.bf16 %v1748
    %v2421 = vunpack.c.h.s8.bf16 %v1749
    %v2422 = vunpack.c.h.s8.bf16 %v1750
    %v2423 = vunpack.c.h.s8.bf16 %v1751
    %v2424 = vunpack.c.h.s8.bf16 %v1752
    %v2425 = vunpack.c.h.s8.bf16 %v1753
    %v2426 = vunpack.c.h.s8.bf16 %v1754
    %v2427 = vunpack.c.h.s8.bf16 %v1755
    %v2428 = vunpack.c.h.s8.bf16 %v1756
    %v2429 = vunpack.c.h.s8.bf16 %v1757
    %v2430 = vunpack.c.h.s8.bf16 %v1758
    %v2431 = vunpack.c.h.s8.bf16 %v1759
    %v2432 = vunpack.c.l.s8.bf16 %v1760
    %v2433 = vunpack.c.l.s8.bf16 %v1761
    %v2434 = vunpack.c.l.s8.bf16 %v1762
    %v2435 = vunpack.c.l.s8.bf16 %v1763
    %v2436 = vunpack.c.l.s8.bf16 %v1764
    %v2437 = vunpack.c.l.s8.bf16 %v1765
    %v2438 = vunpack.c.l.s8.bf16 %v1766
    %v2439 = vunpack.c.l.s8.bf16 %v1767
    %v2440 = vunpack.c.l.s8.bf16 %v1768
    %v2441 = vunpack.c.l.s8.bf16 %v1769
    %v2442 = vunpack.c.l.s8.bf16 %v1770
    %v2443 = vunpack.c.l.s8.bf16 %v1771
    %v2444 = vunpack.c.l.s8.bf16 %v1772
    %v2445 = vunpack.c.l.s8.bf16 %v1773
    %v2446 = vunpack.c.l.s8.bf16 %v1774
    %v2447 = vunpack.c.l.s8.bf16 %v1775
    %v2448 = vunpack.c.h.s8.bf16 %v1760
    %v2449 = vunpack.c.h.s8.bf16 %v1761
    %v2450 = vunpack.c.h.s8.bf16 %v1762
    %v2451 = vunpack.c.h.s8.bf16 %v1763
    %v2452 = vunpack.c.h.s8.bf16 %v1764
    %v2453 = vunpack.c.h.s8.bf16 %v1765
    %v2454 = vunpack.c.h.s8.bf16 %v1766
    %v2455 = vunpack.c.h.s8.bf16 %v1767
    %v2456 = vunpack.c.h.s8.bf16 %v1768
    %v2457 = vunpack.c.h.s8.bf16 %v1769
    %v2458 = vunpack.c.h.s8.bf16 %v1770
    %v2459 = vunpack.c.h.s8.bf16 %v1771
    %v2460 = vunpack.c.h.s8.bf16 %v1772
    %v2461 = vunpack.c.h.s8.bf16 %v1773
    %v2462 = vunpack.c.h.s8.bf16 %v1774
    %v2463 = vunpack.c.h.s8.bf16 %v1775
    %v2464 = vunpack.c.l.s8.bf16 %v1776
    %v2465 = vunpack.c.l.s8.bf16 %v1777
    %v2466 = vunpack.c.l.s8.bf16 %v1778
    %v2467 = vunpack.c.l.s8.bf16 %v1779
    %v2468 = vunpack.c.l.s8.bf16 %v1780
    %v2469 = vunpack.c.l.s8.bf16 %v1781
    %v2470 = vunpack.c.l.s8.bf16 %v1782
    %v2471 = vunpack.c.l.s8.bf16 %v1783
    %v2472 = vunpack.c.l.s8.bf16 %v1784
    %v2473 = vunpack.c.l.s8.bf16 %v1785
    %v2474 = vunpack.c.l.s8.bf16 %v1786
    %v2475 = vunpack.c.l.s8.bf16 %v1787
    %v2476 = vunpack.c.l.s8.bf16 %v1788
    %v2477 = vunpack.c.l.s8.bf16 %v1789
    %v2478 = vunpack.c.l.s8.bf16 %v1790
    %v2479 = vunpack.c.l.s8.bf16 %v1791
    %v2480 = vunpack.c.h.s8.bf16 %v1776
    %v2481 = vunpack.c.h.s8.bf16 %v1777
    %v2482 = vunpack.c.h.s8.bf16 %v1778
    %v2483 = vunpack.c.h.s8.bf16 %v1779
    %v2484 = vunpack.c.h.s8.bf16 %v1780
    %v2485 = vunpack.c.h.s8.bf16 %v1781
    %v2486 = vunpack.c.h.s8.bf16 %v1782
    %v2487 = vunpack.c.h.s8.bf16 %v1783
    %v2488 = vunpack.c.h.s8.bf16 %v1784
    %v2489 = vunpack.c.h.s8.bf16 %v1785
    %v2490 = vunpack.c.h.s8.bf16 %v1786
    %v2491 = vunpack.c.h.s8.bf16 %v1787
    %v2492 = vunpack.c.h.s8.bf16 %v1788
    %v2493 = vunpack.c.h.s8.bf16 %v1789
    %v2494 = vunpack.c.h.s8.bf16 %v1790
    %v2495 = vunpack.c.h.s8.bf16 %v1791
    %v2496 = vunpack.c.l.s8.bf16 %v1792
    %v2497 = vunpack.c.l.s8.bf16 %v1793
    %v2498 = vunpack.c.l.s8.bf16 %v1794
    %v2499 = vunpack.c.l.s8.bf16 %v1795
    %v2500 = vunpack.c.l.s8.bf16 %v1796
    %v2501 = vunpack.c.l.s8.bf16 %v1797
    %v2502 = vunpack.c.l.s8.bf16 %v1798
    %v2503 = vunpack.c.l.s8.bf16 %v1799
    %v2504 = vunpack.c.l.s8.bf16 %v1800
    %v2505 = vunpack.c.l.s8.bf16 %v1801
    %v2506 = vunpack.c.l.s8.bf16 %v1802
    %v2507 = vunpack.c.l.s8.bf16 %v1803
    %v2508 = vunpack.c.l.s8.bf16 %v1804
    %v2509 = vunpack.c.l.s8.bf16 %v1805
    %v2510 = vunpack.c.l.s8.bf16 %v1806
    %v2511 = vunpack.c.l.s8.bf16 %v1807
    %v2512 = vunpack.c.h.s8.bf16 %v1792
    %v2513 = vunpack.c.h.s8.bf16 %v1793
    %v2514 = vunpack.c.h.s8.bf16 %v1794
    %v2515 = vunpack.c.h.s8.bf16 %v1795
    %v2516 = vunpack.c.h.s8.bf16 %v1796
    %v2517 = vunpack.c.h.s8.bf16 %v1797
    %v2518 = vunpack.c.h.s8.bf16 %v1798
    %v2519 = vunpack.c.h.s8.bf16 %v1799
    %v2520 = vunpack.c.h.s8.bf16 %v1800
    %v2521 = vunpack.c.h.s8.bf16 %v1801
    %v2522 = vunpack.c.h.s8.bf16 %v1802
    %v2523 = vunpack.c.h.s8.bf16 %v1803
    %v2524 = vunpack.c.h.s8.bf16 %v1804
    %v2525 = vunpack.c.h.s8.bf16 %v1805
    %v2526 = vunpack.c.h.s8.bf16 %v1806
    %v2527 = vunpack.c.h.s8.bf16 %v1807
    %v2528 = vunpack.c.l.s8.bf16 %v1808
    %v2529 = vunpack.c.l.s8.bf16 %v1809
    %v2530 = vunpack.c.l.s8.bf16 %v1810
    %v2531 = vunpack.c.l.s8.bf16 %v1811
    %v2532 = vunpack.c.l.s8.bf16 %v1812
    %v2533 = vunpack.c.l.s8.bf16 %v1813
    %v2534 = vunpack.c.l.s8.bf16 %v1814
    %v2535 = vunpack.c.l.s8.bf16 %v1815
    %v2536 = vunpack.c.l.s8.bf16 %v1816
    %v2537 = vunpack.c.l.s8.bf16 %v1817
    %v2538 = vunpack.c.l.s8.bf16 %v1818
    %v2539 = vunpack.c.l.s8.bf16 %v1819
    %v2540 = vunpack.c.l.s8.bf16 %v1820
    %v2541 = vunpack.c.l.s8.bf16 %v1821
    %v2542 = vunpack.c.l.s8.bf16 %v1822
    %v2543 = vunpack.c.l.s8.bf16 %v1823
    %v2544 = vunpack.c.h.s8.bf16 %v1808
    %v2545 = vunpack.c.h.s8.bf16 %v1809
    %v2546 = vunpack.c.h.s8.bf16 %v1810
    %v2547 = vunpack.c.h.s8.bf16 %v1811
    %v2548 = vunpack.c.h.s8.bf16 %v1812
    %v2549 = vunpack.c.h.s8.bf16 %v1813
    %v2550 = vunpack.c.h.s8.bf16 %v1814
    %v2551 = vunpack.c.h.s8.bf16 %v1815
    %v2552 = vunpack.c.h.s8.bf16 %v1816
    %v2553 = vunpack.c.h.s8.bf16 %v1817
    %v2554 = vunpack.c.h.s8.bf16 %v1818
    %v2555 = vunpack.c.h.s8.bf16 %v1819
    %v2556 = vunpack.c.h.s8.bf16 %v1820
    %v2557 = vunpack.c.h.s8.bf16 %v1821
    %v2558 = vunpack.c.h.s8.bf16 %v1822
    %v2559 = vunpack.c.h.s8.bf16 %v1823
    %v2560 = vunpack.c.l.s8.bf16 %v1824
    %v2561 = vunpack.c.l.s8.bf16 %v1825
    %v2562 = vunpack.c.l.s8.bf16 %v1826
    %v2563 = vunpack.c.l.s8.bf16 %v1827
    %v2564 = vunpack.c.l.s8.bf16 %v1828
    %v2565 = vunpack.c.l.s8.bf16 %v1829
    %v2566 = vunpack.c.l.s8.bf16 %v1830
    %v2567 = vunpack.c.l.s8.bf16 %v1831
    %v2568 = vunpack.c.l.s8.bf16 %v1832
    %v2569 = vunpack.c.l.s8.bf16 %v1833
    %v2570 = vunpack.c.l.s8.bf16 %v1834
    %v2571 = vunpack.c.l.s8.bf16 %v1835
    %v2572 = vunpack.c.l.s8.bf16 %v1836
    %v2573 = vunpack.c.l.s8.bf16 %v1837
    %v2574 = vunpack.c.l.s8.bf16 %v1838
    %v2575 = vunpack.c.l.s8.bf16 %v1839
    %v2576 = vunpack.c.h.s8.bf16 %v1824
    %v2577 = vunpack.c.h.s8.bf16 %v1825
    %v2578 = vunpack.c.h.s8.bf16 %v1826
    %v2579 = vunpack.c.h.s8.bf16 %v1827
    %v2580 = vunpack.c.h.s8.bf16 %v1828
    %v2581 = vunpack.c.h.s8.bf16 %v1829
    %v2582 = vunpack.c.h.s8.bf16 %v1830
    %v2583 = vunpack.c.h.s8.bf16 %v1831
    %v2584 = vunpack.c.h.s8.bf16 %v1832
    %v2585 = vunpack.c.h.s8.bf16 %v1833
    %v2586 = vunpack.c.h.s8.bf16 %v1834
    %v2587 = vunpack.c.h.s8.bf16 %v1835
    %v2588 = vunpack.c.h.s8.bf16 %v1836
    %v2589 = vunpack.c.h.s8.bf16 %v1837
    %v2590 = vunpack.c.h.s8.bf16 %v1838
    %v2591 = vunpack.c.h.s8.bf16 %v1839
    %v2592 = vunpack.c.l.s8.bf16 %v1840
    %v2593 = vunpack.c.l.s8.bf16 %v1841
    %v2594 = vunpack.c.l.s8.bf16 %v1842
    %v2595 = vunpack.c.l.s8.bf16 %v1843
    %v2596 = vunpack.c.l.s8.bf16 %v1844
    %v2597 = vunpack.c.l.s8.bf16 %v1845
    %v2598 = vunpack.c.l.s8.bf16 %v1846
    %v2599 = vunpack.c.l.s8.bf16 %v1847
    %v2600 = vunpack.c.l.s8.bf16 %v1848
    %v2601 = vunpack.c.l.s8.bf16 %v1849
    %v2602 = vunpack.c.l.s8.bf16 %v1850
    %v2603 = vunpack.c.l.s8.bf16 %v1851
    %v2604 = vunpack.c.l.s8.bf16 %v1852
    %v2605 = vunpack.c.l.s8.bf16 %v1853
    %v2606 = vunpack.c.l.s8.bf16 %v1854
    %v2607 = vunpack.c.l.s8.bf16 %v1855
    %v2608 = vunpack.c.h.s8.bf16 %v1840
    %v2609 = vunpack.c.h.s8.bf16 %v1841
    %v2610 = vunpack.c.h.s8.bf16 %v1842
    %v2611 = vunpack.c.h.s8.bf16 %v1843
    %v2612 = vunpack.c.h.s8.bf16 %v1844
    %v2613 = vunpack.c.h.s8.bf16 %v1845
    %v2614 = vunpack.c.h.s8.bf16 %v1846
    %v2615 = vunpack.c.h.s8.bf16 %v1847
    %v2616 = vunpack.c.h.s8.bf16 %v1848
    %v2617 = vunpack.c.h.s8.bf16 %v1849
    %v2618 = vunpack.c.h.s8.bf16 %v1850
    %v2619 = vunpack.c.h.s8.bf16 %v1851
    %v2620 = vunpack.c.h.s8.bf16 %v1852
    %v2621 = vunpack.c.h.s8.bf16 %v1853
    %v2622 = vunpack.c.h.s8.bf16 %v1854
    %v2623 = vunpack.c.h.s8.bf16 %v1855
    %v2624 = vunpack.c.l.s8.bf16 %v1856
    %v2625 = vunpack.c.l.s8.bf16 %v1857
    %v2626 = vunpack.c.l.s8.bf16 %v1858
    %v2627 = vunpack.c.l.s8.bf16 %v1859
    %v2628 = vunpack.c.l.s8.bf16 %v1860
    %v2629 = vunpack.c.l.s8.bf16 %v1861
    %v2630 = vunpack.c.l.s8.bf16 %v1862
    %v2631 = vunpack.c.l.s8.bf16 %v1863
    %v2632 = vunpack.c.l.s8.bf16 %v1864
    %v2633 = vunpack.c.l.s8.bf16 %v1865
    %v2634 = vunpack.c.l.s8.bf16 %v1866
    %v2635 = vunpack.c.l.s8.bf16 %v1867
    %v2636 = vunpack.c.l.s8.bf16 %v1868
    %v2637 = vunpack.c.l.s8.bf16 %v1869
    %v2638 = vunpack.c.l.s8.bf16 %v1870
    %v2639 = vunpack.c.l.s8.bf16 %v1871
    %v2640 = vunpack.c.h.s8.bf16 %v1856
    %v2641 = vunpack.c.h.s8.bf16 %v1857
    %v2642 = vunpack.c.h.s8.bf16 %v1858
    %v2643 = vunpack.c.h.s8.bf16 %v1859
    %v2644 = vunpack.c.h.s8.bf16 %v1860
    %v2645 = vunpack.c.h.s8.bf16 %v1861
    %v2646 = vunpack.c.h.s8.bf16 %v1862
    %v2647 = vunpack.c.h.s8.bf16 %v1863
    %v2648 = vunpack.c.h.s8.bf16 %v1864
    %v2649 = vunpack.c.h.s8.bf16 %v1865
    %v2650 = vunpack.c.h.s8.bf16 %v1866
    %v2651 = vunpack.c.h.s8.bf16 %v1867
    %v2652 = vunpack.c.h.s8.bf16 %v1868
    %v2653 = vunpack.c.h.s8.bf16 %v1869
    %v2654 = vunpack.c.h.s8.bf16 %v1870
    %v2655 = vunpack.c.h.s8.bf16 %v1871
    %v2656 = vunpack.c.l.s8.bf16 %v1872
    %v2657 = vunpack.c.l.s8.bf16 %v1873
    %v2658 = vunpack.c.l.s8.bf16 %v1874
    %v2659 = vunpack.c.l.s8.bf16 %v1875
    %v2660 = vunpack.c.l.s8.bf16 %v1876
    %v2661 = vunpack.c.l.s8.bf16 %v1877
    %v2662 = vunpack.c.l.s8.bf16 %v1878
    %v2663 = vunpack.c.l.s8.bf16 %v1879
    %v2664 = vunpack.c.l.s8.bf16 %v1880
    %v2665 = vunpack.c.l.s8.bf16 %v1881
    %v2666 = vunpack.c.l.s8.bf16 %v1882
    %v2667 = vunpack.c.l.s8.bf16 %v1883
    %v2668 = vunpack.c.l.s8.bf16 %v1884
    %v2669 = vunpack.c.l.s8.bf16 %v1885
    %v2670 = vunpack.c.l.s8.bf16 %v1886
    %v2671 = vunpack.c.l.s8.bf16 %v1887
    %v2672 = vunpack.c.h.s8.bf16 %v1872
    %v2673 = vunpack.c.h.s8.bf16 %v1873
    %v2674 = vunpack.c.h.s8.bf16 %v1874
    %v2675 = vunpack.c.h.s8.bf16 %v1875
    %v2676 = vunpack.c.h.s8.bf16 %v1876
    %v2677 = vunpack.c.h.s8.bf16 %v1877
    %v2678 = vunpack.c.h.s8.bf16 %v1878
    %v2679 = vunpack.c.h.s8.bf16 %v1879
    %v2680 = vunpack.c.h.s8.bf16 %v1880
    %v2681 = vunpack.c.h.s8.bf16 %v1881
    %v2682 = vunpack.c.h.s8.bf16 %v1882
    %v2683 = vunpack.c.h.s8.bf16 %v1883
    %v2684 = vunpack.c.h.s8.bf16 %v1884
    %v2685 = vunpack.c.h.s8.bf16 %v1885
    %v2686 = vunpack.c.h.s8.bf16 %v1886
    %v2687 = vunpack.c.h.s8.bf16 %v1887
    %v2688 = vunpack.c.l.s8.bf16 %v1888
    %v2689 = vunpack.c.l.s8.bf16 %v1889
    %v2690 = vunpack.c.l.s8.bf16 %v1890
    %v2691 = vunpack.c.l.s8.bf16 %v1891
    %v2692 = vunpack.c.l.s8.bf16 %v1892
    %v2693 = vunpack.c.l.s8.bf16 %v1893
    %v2694 = vunpack.c.l.s8.bf16 %v1894
    %v2695 = vunpack.c.l.s8.bf16 %v1895
    %v2696 = vunpack.c.l.s8.bf16 %v1896
    %v2697 = vunpack.c.l.s8.bf16 %v1897
    %v2698 = vunpack.c.l.s8.bf16 %v1898
    %v2699 = vunpack.c.l.s8.bf16 %v1899
    %v2700 = vunpack.c.l.s8.bf16 %v1900
    %v2701 = vunpack.c.l.s8.bf16 %v1901
    %v2702 = vunpack.c.l.s8.bf16 %v1902
    %v2703 = vunpack.c.l.s8.bf16 %v1903
    %v2704 = vunpack.c.h.s8.bf16 %v1888
    %v2705 = vunpack.c.h.s8.bf16 %v1889
    %v2706 = vunpack.c.h.s8.bf16 %v1890
    %v2707 = vunpack.c.h.s8.bf16 %v1891
    %v2708 = vunpack.c.h.s8.bf16 %v1892
    %v2709 = vunpack.c.h.s8.bf16 %v1893
    %v2710 = vunpack.c.h.s8.bf16 %v1894
    %v2711 = vunpack.c.h.s8.bf16 %v1895
    %v2712 = vunpack.c.h.s8.bf16 %v1896
    %v2713 = vunpack.c.h.s8.bf16 %v1897
    %v2714 = vunpack.c.h.s8.bf16 %v1898
    %v2715 = vunpack.c.h.s8.bf16 %v1899
    %v2716 = vunpack.c.h.s8.bf16 %v1900
    %v2717 = vunpack.c.h.s8.bf16 %v1901
    %v2718 = vunpack.c.h.s8.bf16 %v1902
    %v2719 = vunpack.c.h.s8.bf16 %v1903
    %v2720 = vunpack.c.l.s8.bf16 %v1904
    %v2721 = vunpack.c.l.s8.bf16 %v1905
    %v2722 = vunpack.c.l.s8.bf16 %v1906
    %v2723 = vunpack.c.l.s8.bf16 %v1907
    %v2724 = vunpack.c.l.s8.bf16 %v1908
    %v2725 = vunpack.c.l.s8.bf16 %v1909
    %v2726 = vunpack.c.l.s8.bf16 %v1910
    %v2727 = vunpack.c.l.s8.bf16 %v1911
    %v2728 = vunpack.c.l.s8.bf16 %v1912
    %v2729 = vunpack.c.l.s8.bf16 %v1913
    %v2730 = vunpack.c.l.s8.bf16 %v1914
    %v2731 = vunpack.c.l.s8.bf16 %v1915
    %v2732 = vunpack.c.l.s8.bf16 %v1916
    %v2733 = vunpack.c.l.s8.bf16 %v1917
    %v2734 = vunpack.c.l.s8.bf16 %v1918
    %v2735 = vunpack.c.l.s8.bf16 %v1919
    %v2736 = vunpack.c.h.s8.bf16 %v1904
    %v2737 = vunpack.c.h.s8.bf16 %v1905
    %v2738 = vunpack.c.h.s8.bf16 %v1906
    %v2739 = vunpack.c.h.s8.bf16 %v1907
    %v2740 = vunpack.c.h.s8.bf16 %v1908
    %v2741 = vunpack.c.h.s8.bf16 %v1909
    %v2742 = vunpack.c.h.s8.bf16 %v1910
    %v2743 = vunpack.c.h.s8.bf16 %v1911
    %v2744 = vunpack.c.h.s8.bf16 %v1912
    %v2745 = vunpack.c.h.s8.bf16 %v1913
    %v2746 = vunpack.c.h.s8.bf16 %v1914
    %v2747 = vunpack.c.h.s8.bf16 %v1915
    %v2748 = vunpack.c.h.s8.bf16 %v1916
    %v2749 = vunpack.c.h.s8.bf16 %v1917
    %v2750 = vunpack.c.h.s8.bf16 %v1918
    %v2751 = vunpack.c.h.s8.bf16 %v1919
    %v2752 = vunpack.c.l.s8.bf16 %v1920
    %v2753 = vunpack.c.l.s8.bf16 %v1921
    %v2754 = vunpack.c.l.s8.bf16 %v1922
    %v2755 = vunpack.c.l.s8.bf16 %v1923
    %v2756 = vunpack.c.l.s8.bf16 %v1924
    %v2757 = vunpack.c.l.s8.bf16 %v1925
    %v2758 = vunpack.c.l.s8.bf16 %v1926
    %v2759 = vunpack.c.l.s8.bf16 %v1927
    %v2760 = vunpack.c.l.s8.bf16 %v1928
    %v2761 = vunpack.c.l.s8.bf16 %v1929
    %v2762 = vunpack.c.l.s8.bf16 %v1930
    %v2763 = vunpack.c.l.s8.bf16 %v1931
    %v2764 = vunpack.c.l.s8.bf16 %v1932
    %v2765 = vunpack.c.l.s8.bf16 %v1933
    %v2766 = vunpack.c.l.s8.bf16 %v1934
    %v2767 = vunpack.c.l.s8.bf16 %v1935
    %v2768 = vunpack.c.h.s8.bf16 %v1920
    %v2769 = vunpack.c.h.s8.bf16 %v1921
    %v2770 = vunpack.c.h.s8.bf16 %v1922
    %v2771 = vunpack.c.h.s8.bf16 %v1923
    %v2772 = vunpack.c.h.s8.bf16 %v1924
    %v2773 = vunpack.c.h.s8.bf16 %v1925
    %v2774 = vunpack.c.h.s8.bf16 %v1926
    %v2775 = vunpack.c.h.s8.bf16 %v1927
    %v2776 = vunpack.c.h.s8.bf16 %v1928
    %v2777 = vunpack.c.h.s8.bf16 %v1929
    %v2778 = vunpack.c.h.s8.bf16 %v1930
    %v2779 = vunpack.c.h.s8.bf16 %v1931
    %v2780 = vunpack.c.h.s8.bf16 %v1932
    %v2781 = vunpack.c.h.s8.bf16 %v1933
    %v2782 = vunpack.c.h.s8.bf16 %v1934
    %v2783 = vunpack.c.h.s8.bf16 %v1935
    %v2784 = vunpack.c.l.s8.bf16 %v1936
    %v2785 = vunpack.c.l.s8.bf16 %v1937
    %v2786 = vunpack.c.l.s8.bf16 %v1938
    %v2787 = vunpack.c.l.s8.bf16 %v1939
    %v2788 = vunpack.c.l.s8.bf16 %v1940
    %v2789 = vunpack.c.l.s8.bf16 %v1941
    %v2790 = vunpack.c.l.s8.bf16 %v1942
    %v2791 = vunpack.c.l.s8.bf16 %v1943
    %v2792 = vunpack.c.l.s8.bf16 %v1944
    %v2793 = vunpack.c.l.s8.bf16 %v1945
    %v2794 = vunpack.c.l.s8.bf16 %v1946
    %v2795 = vunpack.c.l.s8.bf16 %v1947
    %v2796 = vunpack.c.l.s8.bf16 %v1948
    %v2797 = vunpack.c.l.s8.bf16 %v1949
    %v2798 = vunpack.c.l.s8.bf16 %v1950
    %v2799 = vunpack.c.l.s8.bf16 %v1951
    %v2800 = vunpack.c.h.s8.bf16 %v1936
    %v2801 = vunpack.c.h.s8.bf16 %v1937
    %v2802 = vunpack.c.h.s8.bf16 %v1938
    %v2803 = vunpack.c.h.s8.bf16 %v1939
    %v2804 = vunpack.c.h.s8.bf16 %v1940
    %v2805 = vunpack.c.h.s8.bf16 %v1941
    %v2806 = vunpack.c.h.s8.bf16 %v1942
    %v2807 = vunpack.c.h.s8.bf16 %v1943
    %v2808 = vunpack.c.h.s8.bf16 %v1944
    %v2809 = vunpack.c.h.s8.bf16 %v1945
    %v2810 = vunpack.c.h.s8.bf16 %v1946
    %v2811 = vunpack.c.h.s8.bf16 %v1947
    %v2812 = vunpack.c.h.s8.bf16 %v1948
    %v2813 = vunpack.c.h.s8.bf16 %v1949
    %v2814 = vunpack.c.h.s8.bf16 %v1950
    %v2815 = vunpack.c.h.s8.bf16 %v1951
    %v2816 = vunpack.c.l.s8.bf16 %v1952
    %v2817 = vunpack.c.l.s8.bf16 %v1953
    %v2818 = vunpack.c.l.s8.bf16 %v1954
    %v2819 = vunpack.c.l.s8.bf16 %v1955
    %v2820 = vunpack.c.l.s8.bf16 %v1956
    %v2821 = vunpack.c.l.s8.bf16 %v1957
    %v2822 = vunpack.c.l.s8.bf16 %v1958
    %v2823 = vunpack.c.l.s8.bf16 %v1959
    %v2824 = vunpack.c.l.s8.bf16 %v1960
    %v2825 = vunpack.c.l.s8.bf16 %v1961
    %v2826 = vunpack.c.l.s8.bf16 %v1962
    %v2827 = vunpack.c.l.s8.bf16 %v1963
    %v2828 = vunpack.c.l.s8.bf16 %v1964
    %v2829 = vunpack.c.l.s8.bf16 %v1965
    %v2830 = vunpack.c.l.s8.bf16 %v1966
    %v2831 = vunpack.c.l.s8.bf16 %v1967
    %v2832 = vunpack.c.h.s8.bf16 %v1952
    %v2833 = vunpack.c.h.s8.bf16 %v1953
    %v2834 = vunpack.c.h.s8.bf16 %v1954
    %v2835 = vunpack.c.h.s8.bf16 %v1955
    %v2836 = vunpack.c.h.s8.bf16 %v1956
    %v2837 = vunpack.c.h.s8.bf16 %v1957
    %v2838 = vunpack.c.h.s8.bf16 %v1958
    %v2839 = vunpack.c.h.s8.bf16 %v1959
    %v2840 = vunpack.c.h.s8.bf16 %v1960
    %v2841 = vunpack.c.h.s8.bf16 %v1961
    %v2842 = vunpack.c.h.s8.bf16 %v1962
    %v2843 = vunpack.c.h.s8.bf16 %v1963
    %v2844 = vunpack.c.h.s8.bf16 %v1964
    %v2845 = vunpack.c.h.s8.bf16 %v1965
    %v2846 = vunpack.c.h.s8.bf16 %v1966
    %v2847 = vunpack.c.h.s8.bf16 %v1967
    %v2848 = vunpack.c.l.s8.bf16 %v1968
    %v2849 = vunpack.c.l.s8.bf16 %v1969
    %v2850 = vunpack.c.l.s8.bf16 %v1970
    %v2851 = vunpack.c.l.s8.bf16 %v1971
    %v2852 = vunpack.c.l.s8.bf16 %v1972
    %v2853 = vunpack.c.l.s8.bf16 %v1973
    %v2854 = vunpack.c.l.s8.bf16 %v1974
    %v2855 = vunpack.c.l.s8.bf16 %v1975
    %v2856 = vunpack.c.l.s8.bf16 %v1976
    %v2857 = vunpack.c.l.s8.bf16 %v1977
    %v2858 = vunpack.c.l.s8.bf16 %v1978
    %v2859 = vunpack.c.l.s8.bf16 %v1979
    %v2860 = vunpack.c.l.s8.bf16 %v1980
    %v2861 = vunpack.c.l.s8.bf16 %v1981
    %v2862 = vunpack.c.l.s8.bf16 %v1982
    %v2863 = vunpack.c.l.s8.bf16 %v1983
    %v2864 = vunpack.c.h.s8.bf16 %v1968
    %v2865 = vunpack.c.h.s8.bf16 %v1969
    %v2866 = vunpack.c.h.s8.bf16 %v1970
    %v2867 = vunpack.c.h.s8.bf16 %v1971
    %v2868 = vunpack.c.h.s8.bf16 %v1972
    %v2869 = vunpack.c.h.s8.bf16 %v1973
    %v2870 = vunpack.c.h.s8.bf16 %v1974
    %v2871 = vunpack.c.h.s8.bf16 %v1975
    %v2872 = vunpack.c.h.s8.bf16 %v1976
    %v2873 = vunpack.c.h.s8.bf16 %v1977
    %v2874 = vunpack.c.h.s8.bf16 %v1978
    %v2875 = vunpack.c.h.s8.bf16 %v1979
    %v2876 = vunpack.c.h.s8.bf16 %v1980
    %v2877 = vunpack.c.h.s8.bf16 %v1981
    %v2878 = vunpack.c.h.s8.bf16 %v1982
    %v2879 = vunpack.c.h.s8.bf16 %v1983
    %v2880 = vunpack.c.l.s8.bf16 %v1984
    %v2881 = vunpack.c.l.s8.bf16 %v1985
    %v2882 = vunpack.c.l.s8.bf16 %v1986
    %v2883 = vunpack.c.l.s8.bf16 %v1987
    %v2884 = vunpack.c.l.s8.bf16 %v1988
    %v2885 = vunpack.c.l.s8.bf16 %v1989
    %v2886 = vunpack.c.l.s8.bf16 %v1990
    %v2887 = vunpack.c.l.s8.bf16 %v1991
    %v2888 = vunpack.c.l.s8.bf16 %v1992
    %v2889 = vunpack.c.l.s8.bf16 %v1993
    %v2890 = vunpack.c.l.s8.bf16 %v1994
    %v2891 = vunpack.c.l.s8.bf16 %v1995
    %v2892 = vunpack.c.l.s8.bf16 %v1996
    %v2893 = vunpack.c.l.s8.bf16 %v1997
    %v2894 = vunpack.c.l.s8.bf16 %v1998
    %v2895 = vunpack.c.l.s8.bf16 %v1999
    %v2896 = vunpack.c.h.s8.bf16 %v1984
    %v2897 = vunpack.c.h.s8.bf16 %v1985
    %v2898 = vunpack.c.h.s8.bf16 %v1986
    %v2899 = vunpack.c.h.s8.bf16 %v1987
    %v2900 = vunpack.c.h.s8.bf16 %v1988
    %v2901 = vunpack.c.h.s8.bf16 %v1989
    %v2902 = vunpack.c.h.s8.bf16 %v1990
    %v2903 = vunpack.c.h.s8.bf16 %v1991
    %v2904 = vunpack.c.h.s8.bf16 %v1992
    %v2905 = vunpack.c.h.s8.bf16 %v1993
    %v2906 = vunpack.c.h.s8.bf16 %v1994
    %v2907 = vunpack.c.h.s8.bf16 %v1995
    %v2908 = vunpack.c.h.s8.bf16 %v1996
    %v2909 = vunpack.c.h.s8.bf16 %v1997
    %v2910 = vunpack.c.h.s8.bf16 %v1998
    %v2911 = vunpack.c.h.s8.bf16 %v1999
    %v2912 = vunpack.c.l.s8.bf16 %v2000
    %v2913 = vunpack.c.l.s8.bf16 %v2001
    %v2914 = vunpack.c.l.s8.bf16 %v2002
    %v2915 = vunpack.c.l.s8.bf16 %v2003
    %v2916 = vunpack.c.l.s8.bf16 %v2004
    %v2917 = vunpack.c.l.s8.bf16 %v2005
    %v2918 = vunpack.c.l.s8.bf16 %v2006
    %v2919 = vunpack.c.l.s8.bf16 %v2007
    %v2920 = vunpack.c.l.s8.bf16 %v2008
    %v2921 = vunpack.c.l.s8.bf16 %v2009
    %v2922 = vunpack.c.l.s8.bf16 %v2010
    %v2923 = vunpack.c.l.s8.bf16 %v2011
    %v2924 = vunpack.c.l.s8.bf16 %v2012
    %v2925 = vunpack.c.l.s8.bf16 %v2013
    %v2926 = vunpack.c.l.s8.bf16 %v2014
    %v2927 = vunpack.c.l.s8.bf16 %v2015
    %v2928 = vunpack.c.h.s8.bf16 %v2000
    %v2929 = vunpack.c.h.s8.bf16 %v2001
    %v2930 = vunpack.c.h.s8.bf16 %v2002
    %v2931 = vunpack.c.h.s8.bf16 %v2003
    %v2932 = vunpack.c.h.s8.bf16 %v2004
    %v2933 = vunpack.c.h.s8.bf16 %v2005
    %v2934 = vunpack.c.h.s8.bf16 %v2006
    %v2935 = vunpack.c.h.s8.bf16 %v2007
    %v2936 = vunpack.c.h.s8.bf16 %v2008
    %v2937 = vunpack.c.h.s8.bf16 %v2009
    %v2938 = vunpack.c.h.s8.bf16 %v2010
    %v2939 = vunpack.c.h.s8.bf16 %v2011
    %v2940 = vunpack.c.h.s8.bf16 %v2012
    %v2941 = vunpack.c.h.s8.bf16 %v2013
    %v2942 = vunpack.c.h.s8.bf16 %v2014
    %v2943 = vunpack.c.h.s8.bf16 %v2015
    %v2944 = vunpack.c.l.s8.bf16 %v2016
    %v2945 = vunpack.c.l.s8.bf16 %v2017
    %v2946 = vunpack.c.l.s8.bf16 %v2018
    %v2947 = vunpack.c.l.s8.bf16 %v2019
    %v2948 = vunpack.c.l.s8.bf16 %v2020
    %v2949 = vunpack.c.l.s8.bf16 %v2021
    %v2950 = vunpack.c.l.s8.bf16 %v2022
    %v2951 = vunpack.c.l.s8.bf16 %v2023
    %v2952 = vunpack.c.l.s8.bf16 %v2024
    %v2953 = vunpack.c.l.s8.bf16 %v2025
    %v2954 = vunpack.c.l.s8.bf16 %v2026
    %v2955 = vunpack.c.l.s8.bf16 %v2027
    %v2956 = vunpack.c.l.s8.bf16 %v2028
    %v2957 = vunpack.c.l.s8.bf16 %v2029
    %v2958 = vunpack.c.l.s8.bf16 %v2030
    %v2959 = vunpack.c.l.s8.bf16 %v2031
    %v2960 = vunpack.c.h.s8.bf16 %v2016
    %v2961 = vunpack.c.h.s8.bf16 %v2017
    %v2962 = vunpack.c.h.s8.bf16 %v2018
    %v2963 = vunpack.c.h.s8.bf16 %v2019
    %v2964 = vunpack.c.h.s8.bf16 %v2020
    %v2965 = vunpack.c.h.s8.bf16 %v2021
    %v2966 = vunpack.c.h.s8.bf16 %v2022
    %v2967 = vunpack.c.h.s8.bf16 %v2023
    %v2968 = vunpack.c.h.s8.bf16 %v2024
    %v2969 = vunpack.c.h.s8.bf16 %v2025
    %v2970 = vunpack.c.h.s8.bf16 %v2026
    %v2971 = vunpack.c.h.s8.bf16 %v2027
    %v2972 = vunpack.c.h.s8.bf16 %v2028
    %v2973 = vunpack.c.h.s8.bf16 %v2029
    %v2974 = vunpack.c.h.s8.bf16 %v2030
    %v2975 = vunpack.c.h.s8.bf16 %v2031
    %v2976 = vunpack.c.l.s8.bf16 %v2032
    %v2977 = vunpack.c.l.s8.bf16 %v2033
    %v2978 = vunpack.c.l.s8.bf16 %v2034
    %v2979 = vunpack.c.l.s8.bf16 %v2035
    %v2980 = vunpack.c.l.s8.bf16 %v2036
    %v2981 = vunpack.c.l.s8.bf16 %v2037
    %v2982 = vunpack.c.l.s8.bf16 %v2038
    %v2983 = vunpack.c.l.s8.bf16 %v2039
    %v2984 = vunpack.c.l.s8.bf16 %v2040
    %v2985 = vunpack.c.l.s8.bf16 %v2041
    %v2986 = vunpack.c.l.s8.bf16 %v2042
    %v2987 = vunpack.c.l.s8.bf16 %v2043
    %v2988 = vunpack.c.l.s8.bf16 %v2044
    %v2989 = vunpack.c.l.s8.bf16 %v2045
    %v2990 = vunpack.c.l.s8.bf16 %v2046
    %v2991 = vunpack.c.l.s8.bf16 %v2047
    %v2992 = vunpack.c.h.s8.bf16 %v2032
    %v2993 = vunpack.c.h.s8.bf16 %v2033
    %v2994 = vunpack.c.h.s8.bf16 %v2034
    %v2995 = vunpack.c.h.s8.bf16 %v2035
    %v2996 = vunpack.c.h.s8.bf16 %v2036
    %v2997 = vunpack.c.h.s8.bf16 %v2037
    %v2998 = vunpack.c.h.s8.bf16 %v2038
    %v2999 = vunpack.c.h.s8.bf16 %v2039
    %v3000 = vunpack.c.h.s8.bf16 %v2040
    %v3001 = vunpack.c.h.s8.bf16 %v2041
    %v3002 = vunpack.c.h.s8.bf16 %v2042
    %v3003 = vunpack.c.h.s8.bf16 %v2043
    %v3004 = vunpack.c.h.s8.bf16 %v2044
    %v3005 = vunpack.c.h.s8.bf16 %v2045
    %v3006 = vunpack.c.h.s8.bf16 %v2046
    %v3007 = vunpack.c.h.s8.bf16 %v2047
    %v3008 = vunpack.c.l.s8.bf16 %v2048
    %v3009 = vunpack.c.l.s8.bf16 %v2049
    %v3010 = vunpack.c.l.s8.bf16 %v2050
    %v3011 = vunpack.c.l.s8.bf16 %v2051
    %v3012 = vunpack.c.l.s8.bf16 %v2052
    %v3013 = vunpack.c.l.s8.bf16 %v2053
    %v3014 = vunpack.c.l.s8.bf16 %v2054
    %v3015 = vunpack.c.l.s8.bf16 %v2055
    %v3016 = vunpack.c.l.s8.bf16 %v2056
    %v3017 = vunpack.c.l.s8.bf16 %v2057
    %v3018 = vunpack.c.l.s8.bf16 %v2058
    %v3019 = vunpack.c.l.s8.bf16 %v2059
    %v3020 = vunpack.c.l.s8.bf16 %v2060
    %v3021 = vunpack.c.l.s8.bf16 %v2061
    %v3022 = vunpack.c.l.s8.bf16 %v2062
    %v3023 = vunpack.c.l.s8.bf16 %v2063
    %v3024 = vunpack.c.h.s8.bf16 %v2048
    %v3025 = vunpack.c.h.s8.bf16 %v2049
    %v3026 = vunpack.c.h.s8.bf16 %v2050
    %v3027 = vunpack.c.h.s8.bf16 %v2051
    %v3028 = vunpack.c.h.s8.bf16 %v2052
    %v3029 = vunpack.c.h.s8.bf16 %v2053
    %v3030 = vunpack.c.h.s8.bf16 %v2054
    %v3031 = vunpack.c.h.s8.bf16 %v2055
    %v3032 = vunpack.c.h.s8.bf16 %v2056
    %v3033 = vunpack.c.h.s8.bf16 %v2057
    %v3034 = vunpack.c.h.s8.bf16 %v2058
    %v3035 = vunpack.c.h.s8.bf16 %v2059
    %v3036 = vunpack.c.h.s8.bf16 %v2060
    %v3037 = vunpack.c.h.s8.bf16 %v2061
    %v3038 = vunpack.c.h.s8.bf16 %v2062
    %v3039 = vunpack.c.h.s8.bf16 %v2063
    %v3040 = vunpack.c.l.s8.bf16 %v2064
    %v3041 = vunpack.c.l.s8.bf16 %v2065
    %v3042 = vunpack.c.l.s8.bf16 %v2066
    %v3043 = vunpack.c.l.s8.bf16 %v2067
    %v3044 = vunpack.c.l.s8.bf16 %v2068
    %v3045 = vunpack.c.l.s8.bf16 %v2069
    %v3046 = vunpack.c.l.s8.bf16 %v2070
    %v3047 = vunpack.c.l.s8.bf16 %v2071
    %v3048 = vunpack.c.l.s8.bf16 %v2072
    %v3049 = vunpack.c.l.s8.bf16 %v2073
    %v3050 = vunpack.c.l.s8.bf16 %v2074
    %v3051 = vunpack.c.l.s8.bf16 %v2075
    %v3052 = vunpack.c.l.s8.bf16 %v2076
    %v3053 = vunpack.c.l.s8.bf16 %v2077
    %v3054 = vunpack.c.l.s8.bf16 %v2078
    %v3055 = vunpack.c.l.s8.bf16 %v2079
    %v3056 = vunpack.c.h.s8.bf16 %v2064
    %v3057 = vunpack.c.h.s8.bf16 %v2065
    %v3058 = vunpack.c.h.s8.bf16 %v2066
    %v3059 = vunpack.c.h.s8.bf16 %v2067
    %v3060 = vunpack.c.h.s8.bf16 %v2068
    %v3061 = vunpack.c.h.s8.bf16 %v2069
    %v3062 = vunpack.c.h.s8.bf16 %v2070
    %v3063 = vunpack.c.h.s8.bf16 %v2071
    %v3064 = vunpack.c.h.s8.bf16 %v2072
    %v3065 = vunpack.c.h.s8.bf16 %v2073
    %v3066 = vunpack.c.h.s8.bf16 %v2074
    %v3067 = vunpack.c.h.s8.bf16 %v2075
    %v3068 = vunpack.c.h.s8.bf16 %v2076
    %v3069 = vunpack.c.h.s8.bf16 %v2077
    %v3070 = vunpack.c.h.s8.bf16 %v2078
    %v3071 = vunpack.c.h.s8.bf16 %v2079
    %v3072 = vunpack.c.l.s8.bf16 %v2080
    %v3073 = vunpack.c.l.s8.bf16 %v2081
    %v3074 = vunpack.c.l.s8.bf16 %v2082
    %v3075 = vunpack.c.l.s8.bf16 %v2083
    %v3076 = vunpack.c.l.s8.bf16 %v2084
    %v3077 = vunpack.c.l.s8.bf16 %v2085
    %v3078 = vunpack.c.l.s8.bf16 %v2086
    %v3079 = vunpack.c.l.s8.bf16 %v2087
    %v3080 = vunpack.c.l.s8.bf16 %v2088
    %v3081 = vunpack.c.l.s8.bf16 %v2089
    %v3082 = vunpack.c.l.s8.bf16 %v2090
    %v3083 = vunpack.c.l.s8.bf16 %v2091
    %v3084 = vunpack.c.l.s8.bf16 %v2092
    %v3085 = vunpack.c.l.s8.bf16 %v2093
    %v3086 = vunpack.c.l.s8.bf16 %v2094
    %v3087 = vunpack.c.l.s8.bf16 %v2095
    %v3088 = vunpack.c.h.s8.bf16 %v2080
    %v3089 = vunpack.c.h.s8.bf16 %v2081
    %v3090 = vunpack.c.h.s8.bf16 %v2082
    %v3091 = vunpack.c.h.s8.bf16 %v2083
    %v3092 = vunpack.c.h.s8.bf16 %v2084
    %v3093 = vunpack.c.h.s8.bf16 %v2085
    %v3094 = vunpack.c.h.s8.bf16 %v2086
    %v3095 = vunpack.c.h.s8.bf16 %v2087
    %v3096 = vunpack.c.h.s8.bf16 %v2088
    %v3097 = vunpack.c.h.s8.bf16 %v2089
    %v3098 = vunpack.c.h.s8.bf16 %v2090
    %v3099 = vunpack.c.h.s8.bf16 %v2091
    %v3100 = vunpack.c.h.s8.bf16 %v2092
    %v3101 = vunpack.c.h.s8.bf16 %v2093
    %v3102 = vunpack.c.h.s8.bf16 %v2094
    %v3103 = vunpack.c.h.s8.bf16 %v2095
    %v3104 = vunpack.c.l.s8.bf16 %v2096
    %v3105 = vunpack.c.l.s8.bf16 %v2097
    %v3106 = vunpack.c.l.s8.bf16 %v2098
    %v3107 = vunpack.c.l.s8.bf16 %v2099
    %v3108 = vunpack.c.l.s8.bf16 %v2100
    %v3109 = vunpack.c.l.s8.bf16 %v2101
    %v3110 = vunpack.c.l.s8.bf16 %v2102
    %v3111 = vunpack.c.l.s8.bf16 %v2103
    %v3112 = vunpack.c.l.s8.bf16 %v2104
    %v3113 = vunpack.c.l.s8.bf16 %v2105
    %v3114 = vunpack.c.l.s8.bf16 %v2106
    %v3115 = vunpack.c.l.s8.bf16 %v2107
    %v3116 = vunpack.c.l.s8.bf16 %v2108
    %v3117 = vunpack.c.l.s8.bf16 %v2109
    %v3118 = vunpack.c.l.s8.bf16 %v2110
    %v3119 = vunpack.c.l.s8.bf16 %v2111
    %v3120 = vunpack.c.h.s8.bf16 %v2096
    %v3121 = vunpack.c.h.s8.bf16 %v2097
    %v3122 = vunpack.c.h.s8.bf16 %v2098
    %v3123 = vunpack.c.h.s8.bf16 %v2099
    %v3124 = vunpack.c.h.s8.bf16 %v2100
    %v3125 = vunpack.c.h.s8.bf16 %v2101
    %v3126 = vunpack.c.h.s8.bf16 %v2102
    %v3127 = vunpack.c.h.s8.bf16 %v2103
    %v3128 = vunpack.c.h.s8.bf16 %v2104
    %v3129 = vunpack.c.h.s8.bf16 %v2105
    %v3130 = vunpack.c.h.s8.bf16 %v2106
    %v3131 = vunpack.c.h.s8.bf16 %v2107
    %v3132 = vunpack.c.h.s8.bf16 %v2108
    %v3133 = vunpack.c.h.s8.bf16 %v2109
    %v3134 = vunpack.c.h.s8.bf16 %v2110
    %v3135 = vunpack.c.h.s8.bf16 %v2111
    %3136 = vmatprep.subr.bf16.mxu0 %v2113
    %3137 = vmatpush1.bf16.msra.mxu0 %v2112
    %3138 = vmatprep.subr.bf16.mxu0 %v2129
    %3139 = vmatpush1.bf16.msra.mxu0 %v2128
    %3140 = vmatprep.subr.bf16.mxu0 %v2145
    %3141 = vmatpush1.bf16.msra.mxu0 %v2144
    %3142 = vmatprep.subr.bf16.mxu0 %v2161
    %3143 = vmatpush1.bf16.msra.mxu0 %v2160
    %3144 = vmatprep.subr.bf16.mxu0 %v2177
    %3145 = vmatpush1.bf16.msra.mxu0 %v2176
    %3146 = vmatprep.subr.bf16.mxu0 %v2193
    %3147 = vmatpush1.bf16.msra.mxu0 %v2192
    %3148 = vmatprep.subr.bf16.mxu0 %v2209
    %3149 = vmatpush1.bf16.msra.mxu0 %v2208
    %3150 = vmatprep.subr.bf16.mxu0 %v2225
    %3151 = vmatpush1.bf16.msra.mxu0 %v2224
    %3152 = vmatprep.subr.bf16.mxu0 %v2241
    %3153 = vmatpush1.bf16.msra.mxu0 %v2240
    %3154 = vmatprep.subr.bf16.mxu0 %v2257
    %3155 = vmatpush1.bf16.msra.mxu0 %v2256
    %3156 = vmatprep.subr.bf16.mxu0 %v2273
    %3157 = vmatpush1.bf16.msra.mxu0 %v2272
    %3158 = vmatprep.subr.bf16.mxu0 %v2289
    %3159 = vmatpush1.bf16.msra.mxu0 %v2288
    %3160 = vmatprep.subr.bf16.mxu0 %v2305
    %3161 = vmatpush1.bf16.msra.mxu0 %v2304
    %3162 = vmatprep.subr.bf16.mxu0 %v2321
    %3163 = vmatpush1.bf16.msra.mxu0 %v2320
    %3164 = vmatprep.subr.bf16.mxu0 %v2337
    %3165 = vmatpush1.bf16.msra.mxu0 %v2336
    %3166 = vmatprep.subr.bf16.mxu0 %v2353
    %3167 = vmatpush1.bf16.msra.mxu0 %v2352
    %3168 = vmatprep.mubr.bf16.mxu0 %v1593
    %3169 = vmatmul.mubr.bf16.gmra.mrb[0].mxu0 %v1592
    %v3170 = vpop.f32.mrb[0].mxu0
    %v3171 = vadd.f32 0.0, %v3170
    %v3172 = vpop.f32.mrb[0].mxu0
    %v3173 = vadd.f32 0.0, %v3172
    %v3174 = vpop.f32.mrb[0].mxu0
    %v3175 = vpop.f32.mrb[0].mxu0
    %3176 = vdwg.mxu0
    %3177 = vmatprep.subr.bf16.mxu0 %v2369
    %3178 = vmatpush1.bf16.msra.mxu0 %v2368
    %3179 = vmatprep.subr.bf16.mxu0 %v2385
    %3180 = vmatpush1.bf16.msra.mxu0 %v2384
    %3181 = vmatprep.subr.bf16.mxu0 %v2401
    %3182 = vmatpush1.bf16.msra.mxu0 %v2400
    %3183 = vmatprep.subr.bf16.mxu0 %v2417
    %3184 = vmatpush1.bf16.msra.mxu0 %v2416
    %3185 = vmatprep.subr.bf16.mxu0 %v2433
    %3186 = vmatpush1.bf16.msra.mxu0 %v2432
    %3187 = vmatprep.subr.bf16.mxu0 %v2449
    %3188 = vmatpush1.bf16.msra.mxu0 %v2448
    %3189 = vmatprep.subr.bf16.mxu0 %v2465
    %3190 = vmatpush1.bf16.msra.mxu0 %v2464
    %3191 = vmatprep.subr.bf16.mxu0 %v2481
    %3192 = vmatpush1.bf16.msra.mxu0 %v2480
    %3193 = vmatprep.subr.bf16.mxu0 %v2497
    %3194 = vmatpush1.bf16.msra.mxu0 %v2496
    %3195 = vmatprep.subr.bf16.mxu0 %v2513
    %3196 = vmatpush1.bf16.msra.mxu0 %v2512
    %3197 = vmatprep.subr.bf16.mxu0 %v2529
    %3198 = vmatpush1.bf16.msra.mxu0 %v2528
    %3199 = vmatprep.subr.bf16.mxu0 %v2545
    %3200 = vmatpush1.bf16.msra.mxu0 %v2544
    %3201 = vmatprep.subr.bf16.mxu0 %v2561
    %3202 = vmatpush1.bf16.msra.mxu0 %v2560
    %3203 = vmatprep.subr.bf16.mxu0 %v2577
    %3204 = vmatpush1.bf16.msra.mxu0 %v2576
    %3205 = vmatprep.subr.bf16.mxu0 %v2593
    %3206 = vmatpush1.bf16.msra.mxu0 %v2592
    %3207 = vmatprep.subr.bf16.mxu0 %v2609
    %3208 = vmatpush1.bf16.msra.mxu0 %v2608
    %3209 = vmatprep.mubr.bf16.mxu0 %v1595
    %3210 = vmatmul.mubr.bf16.gmra.mrb[0].mxu0 %v1594
    %v3211 = vpop.f32.mrb[0].mxu0
    %v3212 = vadd.f32 %v3171, %v3211
    %v3213 = vpop.f32.mrb[0].mxu0
    %v3214 = vadd.f32 %v3173, %v3213
    %v3215 = vpop.f32.mrb[0].mxu0
    %v3216 = vpop.f32.mrb[0].mxu0
    %3217 = vdwg.mxu0
    %3218 = vmatprep.subr.bf16.mxu0 %v2625
    %3219 = vmatpush1.bf16.msra.mxu0 %v2624
    %3220 = vmatprep.subr.bf16.mxu0 %v2641
    %3221 = vmatpush1.bf16.msra.mxu0 %v2640
    %3222 = vmatprep.subr.bf16.mxu0 %v2657
    %3223 = vmatpush1.bf16.msra.mxu0 %v2656
    %3224 = vmatprep.subr.bf16.mxu0 %v2673
    %3225 = vmatpush1.bf16.msra.mxu0 %v2672
    %3226 = vmatprep.subr.bf16.mxu0 %v2689
    %3227 = vmatpush1.bf16.msra.mxu0 %v2688
    %3228 = vmatprep.subr.bf16.mxu0 %v2705
    %3229 = vmatpush1.bf16.msra.mxu0 %v2704
    %3230 = vmatprep.subr.bf16.mxu0 %v2721
    %3231 = vmatpush1.bf16.msra.mxu0 %v2720
    %3232 = vmatprep.subr.bf16.mxu0 %v2737
    %3233 = vmatpush1.bf16.msra.mxu0 %v2736
    %3234 = vmatprep.subr.bf16.mxu0 %v2753
    %3235 = vmatpush1.bf16.msra.mxu0 %v2752
    %3236 = vmatprep.subr.bf16.mxu0 %v2769
    %3237 = vmatpush1.bf16.msra.mxu0 %v2768
    %3238 = vmatprep.subr.bf16.mxu0 %v2785
    %3239 = vmatpush1.bf16.msra.mxu0 %v2784
    %3240 = vmatprep.subr.bf16.mxu0 %v2801
    %3241 = vmatpush1.bf16.msra.mxu0 %v2800
    %3242 = vmatprep.subr.bf16.mxu0 %v2817
    %3243 = vmatpush1.bf16.msra.mxu0 %v2816
    %3244 = vmatprep.subr.bf16.mxu0 %v2833
    %3245 = vmatpush1.bf16.msra.mxu0 %v2832
    %3246 = vmatprep.subr.bf16.mxu0 %v2849
    %3247 = vmatpush1.bf16.msra.mxu0 %v2848
    %3248 = vmatprep.subr.bf16.mxu0 %v2865
    %3249 = vmatpush1.bf16.msra.mxu0 %v2864
    %3250 = vmatprep.mubr.bf16.mxu0 %v1597
    %3251 = vmatmul.mubr.bf16.gmra.mrb[0].mxu0 %v1596
    %v3252 = vpop.f32.mrb[0].mxu0
    %v3253 = vadd.f32 %v3212, %v3252
    %v3254 = vpop.f32.mrb[0].mxu0
    %v3255 = vadd.f32 %v3214, %v3254
    %v3256 = vpop.f32.mrb[0].mxu0
    %v3257 = vpop.f32.mrb[0].mxu0
    %3258 = vdwg.mxu0
    %3259 = vmatprep.subr.bf16.mxu0 %v2881
    %3260 = vmatpush1.bf16.msra.mxu0 %v2880
    %3261 = vmatprep.subr.bf16.mxu0 %v2897
    %3262 = vmatpush1.bf16.msra.mxu0 %v2896
    %3263 = vmatprep.subr.bf16.mxu0 %v2913
    %3264 = vmatpush1.bf16.msra.mxu0 %v2912
    %3265 = vmatprep.subr.bf16.mxu0 %v2929
    %3266 = vmatpush1.bf16.msra.mxu0 %v2928
    %3267 = vmatprep.subr.bf16.mxu0 %v2945
    %3268 = vmatpush1.bf16.msra.mxu0 %v2944
    %3269 = vmatprep.subr.bf16.mxu0 %v2961
    %3270 = vmatpush1.bf16.msra.mxu0 %v2960
    %3271 = vmatprep.subr.bf16.mxu0 %v2977
    %3272 = vmatpush1.bf16.msra.mxu0 %v2976
    %3273 = vmatprep.subr.bf16.mxu0 %v2993
    %3274 = vmatpush1.bf16.msra.mxu0 %v2992
    %3275 = vmatprep.subr.bf16.mxu0 %v3009
    %3276 = vmatpush1.bf16.msra.mxu0 %v3008
    %3277 = vmatprep.subr.bf16.mxu0 %v3025
    %3278 = vmatpush1.bf16.msra.mxu0 %v3024
    %3279 = vmatprep.subr.bf16.mxu0 %v3041
    %3280 = vmatpush1.bf16.msra.mxu0 %v3040
    %3281 = vmatprep.subr.bf16.mxu0 %v3057
    %3282 = vmatpush1.bf16.msra.mxu0 %v3056
    %3283 = vmatprep.subr.bf16.mxu0 %v3073
    %3284 = vmatpush1.bf16.msra.mxu0 %v3072
    %3285 = vmatprep.subr.bf16.mxu0 %v3089
    %3286 = vmatpush1.bf16.msra.mxu0 %v3088
    %3287 = vmatprep.subr.bf16.mxu0 %v3105
    %3288 = vmatpush1.bf16.msra.mxu0 %v3104
    %3289 = vmatprep.subr.bf16.mxu0 %v3121
    %3290 = vmatpush1.bf16.msra.mxu0 %v3120
    %3291 = vmatprep.mubr.bf16.mxu0 %v1599
    %3292 = vmatmul.mubr.bf16.gmra.mrb[0].mxu0 %v1598
    %v3293 = vpop.f32.mrb[0].mxu0
    %v3294 = vadd.f32 %v3253, %v3293
    %v3295 = vpop.f32.mrb[0].mxu0
    %v3296 = vadd.f32 %v3255, %v3295
    %v3297 = vpop.f32.mrb[0].mxu0
    %v3298 = vpop.f32.mrb[0].mxu0
    %3299 = vdwg.mxu0
    %3300 = vmatprep.subr.bf16.mxu0 %v2115
    %3301 = vmatpush1.bf16.msra.mxu0 %v2114
    %3302 = vmatprep.subr.bf16.mxu0 %v2131
    %3303 = vmatpush1.bf16.msra.mxu0 %v2130
    %3304 = vmatprep.subr.bf16.mxu0 %v2147
    %3305 = vmatpush1.bf16.msra.mxu0 %v2146
    %3306 = vmatprep.subr.bf16.mxu0 %v2163
    %3307 = vmatpush1.bf16.msra.mxu0 %v2162
    %3308 = vmatprep.subr.bf16.mxu0 %v2179
    %3309 = vmatpush1.bf16.msra.mxu0 %v2178
    %3310 = vmatprep.subr.bf16.mxu0 %v2195
    %3311 = vmatpush1.bf16.msra.mxu0 %v2194
    %3312 = vmatprep.subr.bf16.mxu0 %v2211
    %3313 = vmatpush1.bf16.msra.mxu0 %v2210
    %3314 = vmatprep.subr.bf16.mxu0 %v2227
    %3315 = vmatpush1.bf16.msra.mxu0 %v2226
    %3316 = vmatprep.subr.bf16.mxu0 %v2243
    %3317 = vmatpush1.bf16.msra.mxu0 %v2242
    %3318 = vmatprep.subr.bf16.mxu0 %v2259
    %3319 = vmatpush1.bf16.msra.mxu0 %v2258
    %3320 = vmatprep.subr.bf16.mxu0 %v2275
    %3321 = vmatpush1.bf16.msra.mxu0 %v2274
    %3322 = vmatprep.subr.bf16.mxu0 %v2291
    %3323 = vmatpush1.bf16.msra.mxu0 %v2290
    %3324 = vmatprep.subr.bf16.mxu0 %v2307
    %3325 = vmatpush1.bf16.msra.mxu0 %v2306
    %3326 = vmatprep.subr.bf16.mxu0 %v2323
    %3327 = vmatpush1.bf16.msra.mxu0 %v2322
    %3328 = vmatprep.subr.bf16.mxu0 %v2339
    %3329 = vmatpush1.bf16.msra.mxu0 %v2338
    %3330 = vmatprep.subr.bf16.mxu0 %v2355
    %3331 = vmatpush1.bf16.msra.mxu0 %v2354
    %3332 = vmatprep.mubr.bf16.mxu0 %v1593
    %3333 = vmatmul.mubr.bf16.gmra.mrb[0].mxu0 %v1592
    %v3334 = vpop.f32.mrb[0].mxu0
    %v3335 = vadd.f32 0.0, %v3334
    %v3336 = vpop.f32.mrb[0].mxu0
    %v3337 = vadd.f32 0.0, %v3336
    %v3338 = vpop.f32.mrb[0].mxu0
    %v3339 = vpop.f32.mrb[0].mxu0
    %3340 = vdwg.mxu0
    %3341 = vmatprep.subr.bf16.mxu0 %v2371
    %3342 = vmatpush1.bf16.msra.mxu0 %v2370
    %3343 = vmatprep.subr.bf16.mxu0 %v2387
    %3344 = vmatpush1.bf16.msra.mxu0 %v2386
    %3345 = vmatprep.subr.bf16.mxu0 %v2403
    %3346 = vmatpush1.bf16.msra.mxu0 %v2402
    %3347 = vmatprep.subr.bf16.mxu0 %v2419
    %3348 = vmatpush1.bf16.msra.mxu0 %v2418
    %3349 = vmatprep.subr.bf16.mxu0 %v2435
    %3350 = vmatpush1.bf16.msra.mxu0 %v2434
    %3351 = vmatprep.subr.bf16.mxu0 %v2451
    %3352 = vmatpush1.bf16.msra.mxu0 %v2450
    %3353 = vmatprep.subr.bf16.mxu0 %v2467
    %3354 = vmatpush1.bf16.msra.mxu0 %v2466
    %3355 = vmatprep.subr.bf16.mxu0 %v2483
    %3356 = vmatpush1.bf16.msra.mxu0 %v2482
    %3357 = vmatprep.subr.bf16.mxu0 %v2499
    %3358 = vmatpush1.bf16.msra.mxu0 %v2498
    %3359 = vmatprep.subr.bf16.mxu0 %v2515
    %3360 = vmatpush1.bf16.msra.mxu0 %v2514
    %3361 = vmatprep.subr.bf16.mxu0 %v2531
    %3362 = vmatpush1.bf16.msra.mxu0 %v2530
    %3363 = vmatprep.subr.bf16.mxu0 %v2547
    %3364 = vmatpush1.bf16.msra.mxu0 %v2546
    %3365 = vmatprep.subr.bf16.mxu0 %v2563
    %3366 = vmatpush1.bf16.msra.mxu0 %v2562
    %3367 = vmatprep.subr.bf16.mxu0 %v2579
    %3368 = vmatpush1.bf16.msra.mxu0 %v2578
    %3369 = vmatprep.subr.bf16.mxu0 %v2595
    %3370 = vmatpush1.bf16.msra.mxu0 %v2594
    %3371 = vmatprep.subr.bf16.mxu0 %v2611
    %3372 = vmatpush1.bf16.msra.mxu0 %v2610
    %3373 = vmatprep.mubr.bf16.mxu0 %v1595
    %3374 = vmatmul.mubr.bf16.gmra.mrb[0].mxu0 %v1594
    %v3375 = vpop.f32.mrb[0].mxu0
    %v3376 = vadd.f32 %v3335, %v3375
    %v3377 = vpop.f32.mrb[0].mxu0
    %v3378 = vadd.f32 %v3337, %v3377
    %v3379 = vpop.f32.mrb[0].mxu0
    %v3380 = vpop.f32.mrb[0].mxu0
    %3381 = vdwg.mxu0
    %3382 = vmatprep.subr.bf16.mxu0 %v2627
    %3383 = vmatpush1.bf16.msra.mxu0 %v2626
    %3384 = vmatprep.subr.bf16.mxu0 %v2643
    %3385 = vmatpush1.bf16.msra.mxu0 %v2642
    %3386 = vmatprep.subr.bf16.mxu0 %v2659
    %3387 = vmatpush1.bf16.msra.mxu0 %v2658
    %3388 = vmatprep.subr.bf16.mxu0 %v2675
    %3389 = vmatpush1.bf16.msra.mxu0 %v2674
    %3390 = vmatprep.subr.bf16.mxu0 %v2691
    %3391 = vmatpush1.bf16.msra.mxu0 %v2690
    %3392 = vmatprep.subr.bf16.mxu0 %v2707
    %3393 = vmatpush1.bf16.msra.mxu0 %v2706
    %3394 = vmatprep.subr.bf16.mxu0 %v2723
    %3395 = vmatpush1.bf16.msra.mxu0 %v2722
    %3396 = vmatprep.subr.bf16.mxu0 %v2739
    %3397 = vmatpush1.bf16.msra.mxu0 %v2738
    %3398 = vmatprep.subr.bf16.mxu0 %v2755
    %3399 = vmatpush1.bf16.msra.mxu0 %v2754
    %3400 = vmatprep.subr.bf16.mxu0 %v2771
    %3401 = vmatpush1.bf16.msra.mxu0 %v2770
    %3402 = vmatprep.subr.bf16.mxu0 %v2787
    %3403 = vmatpush1.bf16.msra.mxu0 %v2786
    %3404 = vmatprep.subr.bf16.mxu0 %v2803
    %3405 = vmatpush1.bf16.msra.mxu0 %v2802
    %3406 = vmatprep.subr.bf16.mxu0 %v2819
    %3407 = vmatpush1.bf16.msra.mxu0 %v2818
    %3408 = vmatprep.subr.bf16.mxu0 %v2835
    %3409 = vmatpush1.bf16.msra.mxu0 %v2834
    %3410 = vmatprep.subr.bf16.mxu0 %v2851
    %3411 = vmatpush1.bf16.msra.mxu0 %v2850
    %3412 = vmatprep.subr.bf16.mxu0 %v2867
    %3413 = vmatpush1.bf16.msra.mxu0 %v2866
    %3414 = vmatprep.mubr.bf16.mxu0 %v1597
    %3415 = vmatmul.mubr.bf16.gmra.mrb[0].mxu0 %v1596
    %v3416 = vpop.f32.mrb[0].mxu0
    %v3417 = vadd.f32 %v3376, %v3416
    %v3418 = vpop.f32.mrb[0].mxu0
    %v3419 = vadd.f32 %v3378, %v3418
    %v3420 = vpop.f32.mrb[0].mxu0
    %v3421 = vpop.f32.mrb[0].mxu0
    %3422 = vdwg.mxu0
    %3423 = vmatprep.subr.bf16.mxu0 %v2883
    %3424 = vmatpush1.bf16.msra.mxu0 %v2882
    %3425 = vmatprep.subr.bf16.mxu0 %v2899
    %3426 = vmatpush1.bf16.msra.mxu0 %v2898
    %3427 = vmatprep.subr.bf16.mxu0 %v2915
    %3428 = vmatpush1.bf16.msra.mxu0 %v2914
    %3429 = vmatprep.subr.bf16.mxu0 %v2931
    %3430 = vmatpush1.bf16.msra.mxu0 %v2930
    %3431 = vmatprep.subr.bf16.mxu0 %v2947
    %3432 = vmatpush1.bf16.msra.mxu0 %v2946
    %3433 = vmatprep.subr.bf16.mxu0 %v2963
    %3434 = vmatpush1.bf16.msra.mxu0 %v2962
    %3435 = vmatprep.subr.bf16.mxu0 %v2979
    %3436 = vmatpush1.bf16.msra.mxu0 %v2978
    %3437 = vmatprep.subr.bf16.mxu0 %v2995
    %3438 = vmatpush1.bf16.msra.mxu0 %v2994
    %3439 = vmatprep.subr.bf16.mxu0 %v3011
    %3440 = vmatpush1.bf16.msra.mxu0 %v3010
    %3441 = vmatprep.subr.bf16.mxu0 %v3027
    %3442 = vmatpush1.bf16.msra.mxu0 %v3026
    %3443 = vmatprep.subr.bf16.mxu0 %v3043
    %3444 = vmatpush1.bf16.msra.mxu0 %v3042
    %3445 = vmatprep.subr.bf16.mxu0 %v3059
    %3446 = vmatpush1.bf16.msra.mxu0 %v3058
    %3447 = vmatprep.subr.bf16.mxu0 %v3075
    %3448 = vmatpush1.bf16.msra.mxu0 %v3074
    %3449 = vmatprep.subr.bf16.mxu0 %v3091
    %3450 = vmatpush1.bf16.msra.mxu0 %v3090
    %3451 = vmatprep.subr.bf16.mxu0 %v3107
    %3452 = vmatpush1.bf16.msra.mxu0 %v3106
    %3453 = vmatprep.subr.bf16.mxu0 %v3123
    %3454 = vmatpush1.bf16.msra.mxu0 %v3122
    %3455 = vmatprep.mubr.bf16.mxu0 %v1599
    %3456 = vmatmul.mubr.bf16.gmra.mrb[0].mxu0 %v1598
    %v3457 = vpop.f32.mrb[0].mxu0
    %v3458 = vadd.f32 %v3417, %v3457
    %v3459 = vpop.f32.mrb[0].mxu0
    %v3460 = vadd.f32 %v3419, %v3459
    %v3461 = vpop.f32.mrb[0].mxu0
    %v3462 = vpop.f32.mrb[0].mxu0
    %3463 = vdwg.mxu0
    %3464 = vmatprep.subr.bf16.mxu0 %v2117
    %3465 = vmatpush1.bf16.msra.mxu0 %v2116
    %3466 = vmatprep.subr.bf16.mxu0 %v2133
    %3467 = vmatpush1.bf16.msra.mxu0 %v2132
    %3468 = vmatprep.subr.bf16.mxu0 %v2149
    %3469 = vmatpush1.bf16.msra.mxu0 %v2148
    %3470 = vmatprep.subr.bf16.mxu0 %v2165
    %3471 = vmatpush1.bf16.msra.mxu0 %v2164
    %3472 = vmatprep.subr.bf16.mxu0 %v2181
    %3473 = vmatpush1.bf16.msra.mxu0 %v2180
    %3474 = vmatprep.subr.bf16.mxu0 %v2197
    %3475 = vmatpush1.bf16.msra.mxu0 %v2196
    %3476 = vmatprep.subr.bf16.mxu0 %v2213
    %3477 = vmatpush1.bf16.msra.mxu0 %v2212
    %3478 = vmatprep.subr.bf16.mxu0 %v2229
    %3479 = vmatpush1.bf16.msra.mxu0 %v2228
    %3480 = vmatprep.subr.bf16.mxu0 %v2245
    %3481 = vmatpush1.bf16.msra.mxu0 %v2244
    %3482 = vmatprep.subr.bf16.mxu0 %v2261
    %3483 = vmatpush1.bf16.msra.mxu0 %v2260
    %3484 = vmatprep.subr.bf16.mxu0 %v2277
    %3485 = vmatpush1.bf16.msra.mxu0 %v2276
    %3486 = vmatprep.subr.bf16.mxu0 %v2293
    %3487 = vmatpush1.bf16.msra.mxu0 %v2292
    %3488 = vmatprep.subr.bf16.mxu0 %v2309
    %3489 = vmatpush1.bf16.msra.mxu0 %v2308
    %3490 = vmatprep.subr.bf16.mxu0 %v2325
    %3491 = vmatpush1.bf16.msra.mxu0 %v2324
    %3492 = vmatprep.subr.bf16.mxu0 %v2341
    %3493 = vmatpush1.bf16.msra.mxu0 %v2340
    %3494 = vmatprep.subr.bf16.mxu0 %v2357
    %3495 = vmatpush1.bf16.msra.mxu0 %v2356
    %3496 = vmatprep.mubr.bf16.mxu0 %v1593
    %3497 = vmatmul.mubr.bf16.gmra.mrb[0].mxu0 %v1592
    %v3498 = vpop.f32.mrb[0].mxu0
    %v3499 = vadd.f32 0.0, %v3498
    %v3500 = vpop.f32.mrb[0].mxu0
    %v3501 = vadd.f32 0.0, %v3500
    %v3502 = vpop.f32.mrb[0].mxu0
    %v3503 = vpop.f32.mrb[0].mxu0
    %3504 = vdwg.mxu0
    %3505 = vmatprep.subr.bf16.mxu0 %v2373
    %3506 = vmatpush1.bf16.msra.mxu0 %v2372
    %3507 = vmatprep.subr.bf16.mxu0 %v2389
    %3508 = vmatpush1.bf16.msra.mxu0 %v2388
    %3509 = vmatprep.subr.bf16.mxu0 %v2405
    %3510 = vmatpush1.bf16.msra.mxu0 %v2404
    %3511 = vmatprep.subr.bf16.mxu0 %v2421
    %3512 = vmatpush1.bf16.msra.mxu0 %v2420
    %3513 = vmatprep.subr.bf16.mxu0 %v2437
    %3514 = vmatpush1.bf16.msra.mxu0 %v2436
    %3515 = vmatprep.subr.bf16.mxu0 %v2453
    %3516 = vmatpush1.bf16.msra.mxu0 %v2452
    %3517 = vmatprep.subr.bf16.mxu0 %v2469
    %3518 = vmatpush1.bf16.msra.mxu0 %v2468
    %3519 = vmatprep.subr.bf16.mxu0 %v2485
    %3520 = vmatpush1.bf16.msra.mxu0 %v2484
    %3521 = vmatprep.subr.bf16.mxu0 %v2501
    %3522 = vmatpush1.bf16.msra.mxu0 %v2500
    %3523 = vmatprep.subr.bf16.mxu0 %v2517
    %3524 = vmatpush1.bf16.msra.mxu0 %v2516
    %3525 = vmatprep.subr.bf16.mxu0 %v2533
    %3526 = vmatpush1.bf16.msra.mxu0 %v2532
    %3527 = vmatprep.subr.bf16.mxu0 %v2549
    %3528 = vmatpush1.bf16.msra.mxu0 %v2548
    %3529 = vmatprep.subr.bf16.mxu0 %v2565
    %3530 = vmatpush1.bf16.msra.mxu0 %v2564
    %3531 = vmatprep.subr.bf16.mxu0 %v2581
    %3532 = vmatpush1.bf16.msra.mxu0 %v2580
    %3533 = vmatprep.subr.bf16.mxu0 %v2597
    %3534 = vmatpush1.bf16.msra.mxu0 %v2596
    %3535 = vmatprep.subr.bf16.mxu0 %v2613
    %3536 = vmatpush1.bf16.msra.mxu0 %v2612
    %3537 = vmatprep.mubr.bf16.mxu0 %v1595
    %3538 = vmatmul.mubr.bf16.gmra.mrb[0].mxu0 %v1594
    %v3539 = vpop.f32.mrb[0].mxu0
    %v3540 = vadd.f32 %v3499, %v3539
    %v3541 = vpop.f32.mrb[0].mxu0
    %v3542 = vadd.f32 %v3501, %v3541
    %v3543 = vpop.f32.mrb[0].mxu0
    %v3544 = vpop.f32.mrb[0].mxu0
    %3545 = vdwg.mxu0
    %3546 = vmatprep.subr.bf16.mxu0 %v2629
    %3547 = vmatpush1.bf16.msra.mxu0 %v2628
    %3548 = vmatprep.subr.bf16.mxu0 %v2645
    %3549 = vmatpush1.bf16.msra.mxu0 %v2644
    %3550 = vmatprep.subr.bf16.mxu0 %v2661
    %3551 = vmatpush1.bf16.msra.mxu0 %v2660
    %3552 = vmatprep.subr.bf16.mxu0 %v2677
    %3553 = vmatpush1.bf16.msra.mxu0 %v2676
    %3554 = vmatprep.subr.bf16.mxu0 %v2693
    %3555 = vmatpush1.bf16.msra.mxu0 %v2692
    %3556 = vmatprep.subr.bf16.mxu0 %v2709
    %3557 = vmatpush1.bf16.msra.mxu0 %v2708
    %3558 = vmatprep.subr.bf16.mxu0 %v2725
    %3559 = vmatpush1.bf16.msra.mxu0 %v2724
    %3560 = vmatprep.subr.bf16.mxu0 %v2741
    %3561 = vmatpush1.bf16.msra.mxu0 %v2740
    %3562 = vmatprep.subr.bf16.mxu0 %v2757
    %3563 = vmatpush1.bf16.msra.mxu0 %v2756
    %3564 = vmatprep.subr.bf16.mxu0 %v2773
    %3565 = vmatpush1.bf16.msra.mxu0 %v2772
    %3566 = vmatprep.subr.bf16.mxu0 %v2789
    %3567 = vmatpush1.bf16.msra.mxu0 %v2788
    %3568 = vmatprep.subr.bf16.mxu0 %v2805
    %3569 = vmatpush1.bf16.msra.mxu0 %v2804
    %3570 = vmatprep.subr.bf16.mxu0 %v2821
    %3571 = vmatpush1.bf16.msra.mxu0 %v2820
    %3572 = vmatprep.subr.bf16.mxu0 %v2837
    %3573 = vmatpush1.bf16.msra.mxu0 %v2836
    %3574 = vmatprep.subr.bf16.mxu0 %v2853
    %3575 = vmatpush1.bf16.msra.mxu0 %v2852
    %3576 = vmatprep.subr.bf16.mxu0 %v2869
    %3577 = vmatpush1.bf16.msra.mxu0 %v2868
    %3578 = vmatprep.mubr.bf16.mxu0 %v1597
    %3579 = vmatmul.mubr.bf16.gmra.mrb[0].mxu0 %v1596
    %v3580 = vpop.f32.mrb[0].mxu0
    %v3581 = vadd.f32 %v3540, %v3580
    %v3582 = vpop.f32.mrb[0].mxu0
    %v3583 = vadd.f32 %v3542, %v3582
    %v3584 = vpop.f32.mrb[0].mxu0
    %v3585 = vpop.f32.mrb[0].mxu0
    %3586 = vdwg.mxu0
    %3587 = vmatprep.subr.bf16.mxu0 %v2885
    %3588 = vmatpush1.bf16.msra.mxu0 %v2884
    %3589 = vmatprep.subr.bf16.mxu0 %v2901
    %3590 = vmatpush1.bf16.msra.mxu0 %v2900
    %3591 = vmatprep.subr.bf16.mxu0 %v2917
    %3592 = vmatpush1.bf16.msra.mxu0 %v2916
    %3593 = vmatprep.subr.bf16.mxu0 %v2933
    %3594 = vmatpush1.bf16.msra.mxu0 %v2932
    %3595 = vmatprep.subr.bf16.mxu0 %v2949
    %3596 = vmatpush1.bf16.msra.mxu0 %v2948
    %3597 = vmatprep.subr.bf16.mxu0 %v2965
    %3598 = vmatpush1.bf16.msra.mxu0 %v2964
    %3599 = vmatprep.subr.bf16.mxu0 %v2981
    %3600 = vmatpush1.bf16.msra.mxu0 %v2980
    %3601 = vmatprep.subr.bf16.mxu0 %v2997
    %3602 = vmatpush1.bf16.msra.mxu0 %v2996
    %3603 = vmatprep.subr.bf16.mxu0 %v3013
    %3604 = vmatpush1.bf16.msra.mxu0 %v3012
    %3605 = vmatprep.subr.bf16.mxu0 %v3029
    %3606 = vmatpush1.bf16.msra.mxu0 %v3028
    %3607 = vmatprep.subr.bf16.mxu0 %v3045
    %3608 = vmatpush1.bf16.msra.mxu0 %v3044
    %3609 = vmatprep.subr.bf16.mxu0 %v3061
    %3610 = vmatpush1.bf16.msra.mxu0 %v3060
    %3611 = vmatprep.subr.bf16.mxu0 %v3077
    %3612 = vmatpush1.bf16.msra.mxu0 %v3076
    %3613 = vmatprep.subr.bf16.mxu0 %v3093
    %3614 = vmatpush1.bf16.msra.mxu0 %v3092
    %3615 = vmatprep.subr.bf16.mxu0 %v3109
    %3616 = vmatpush1.bf16.msra.mxu0 %v3108
    %3617 = vmatprep.subr.bf16.mxu0 %v3125
    %3618 = vmatpush1.bf16.msra.mxu0 %v3124
    %3619 = vmatprep.mubr.bf16.mxu0 %v1599
    %3620 = vmatmul.mubr.bf16.gmra.mrb[0].mxu0 %v1598
    %v3621 = vpop.f32.mrb[0].mxu0
    %v3622 = vadd.f32 %v3581, %v3621
    %v3623 = vpop.f32.mrb[0].mxu0
    %v3624 = vadd.f32 %v3583, %v3623
    %v3625 = vpop.f32.mrb[0].mxu0
    %v3626 = vpop.f32.mrb[0].mxu0
    %3627 = vdwg.mxu0
    %3628 = vmatprep.subr.bf16.mxu0 %v2119
    %3629 = vmatpush1.bf16.msra.mxu0 %v2118
    %3630 = vmatprep.subr.bf16.mxu0 %v2135
    %3631 = vmatpush1.bf16.msra.mxu0 %v2134
    %3632 = vmatprep.subr.bf16.mxu0 %v2151
    %3633 = vmatpush1.bf16.msra.mxu0 %v2150
    %3634 = vmatprep.subr.bf16.mxu0 %v2167
    %3635 = vmatpush1.bf16.msra.mxu0 %v2166
    %3636 = vmatprep.subr.bf16.mxu0 %v2183
    %3637 = vmatpush1.bf16.msra.mxu0 %v2182
    %3638 = vmatprep.subr.bf16.mxu0 %v2199
    %3639 = vmatpush1.bf16.msra.mxu0 %v2198
    %3640 = vmatprep.subr.bf16.mxu0 %v2215
    %3641 = vmatpush1.bf16.msra.mxu0 %v2214
    %3642 = vmatprep.subr.bf16.mxu0 %v2231
    %3643 = vmatpush1.bf16.msra.mxu0 %v2230
    %3644 = vmatprep.subr.bf16.mxu0 %v2247
    %3645 = vmatpush1.bf16.msra.mxu0 %v2246
    %3646 = vmatprep.subr.bf16.mxu0 %v2263
    %3647 = vmatpush1.bf16.msra.mxu0 %v2262
    %3648 = vmatprep.subr.bf16.mxu0 %v2279
    %3649 = vmatpush1.bf16.msra.mxu0 %v2278
    %3650 = vmatprep.subr.bf16.mxu0 %v2295
    %3651 = vmatpush1.bf16.msra.mxu0 %v2294
    %3652 = vmatprep.subr.bf16.mxu0 %v2311
    %3653 = vmatpush1.bf16.msra.mxu0 %v2310
    %3654 = vmatprep.subr.bf16.mxu0 %v2327
    %3655 = vmatpush1.bf16.msra.mxu0 %v2326
    %3656 = vmatprep.subr.bf16.mxu0 %v2343
    %3657 = vmatpush1.bf16.msra.mxu0 %v2342
    %3658 = vmatprep.subr.bf16.mxu0 %v2359
    %3659 = vmatpush1.bf16.msra.mxu0 %v2358
    %3660 = vmatprep.mubr.bf16.mxu0 %v1593
    %3661 = vmatmul.mubr.bf16.gmra.mrb[0].mxu0 %v1592
    %v3662 = vpop.f32.mrb[0].mxu0
    %v3663 = vadd.f32 0.0, %v3662
    %v3664 = vpop.f32.mrb[0].mxu0
    %v3665 = vadd.f32 0.0, %v3664
    %v3666 = vpop.f32.mrb[0].mxu0
    %v3667 = vpop.f32.mrb[0].mxu0
    %3668 = vdwg.mxu0
    %3669 = vmatprep.subr.bf16.mxu0 %v2375
    %3670 = vmatpush1.bf16.msra.mxu0 %v2374
    %3671 = vmatprep.subr.bf16.mxu0 %v2391
    %3672 = vmatpush1.bf16.msra.mxu0 %v2390
    %3673 = vmatprep.subr.bf16.mxu0 %v2407
    %3674 = vmatpush1.bf16.msra.mxu0 %v2406
    %3675 = vmatprep.subr.bf16.mxu0 %v2423
    %3676 = vmatpush1.bf16.msra.mxu0 %v2422
    %3677 = vmatprep.subr.bf16.mxu0 %v2439
    %3678 = vmatpush1.bf16.msra.mxu0 %v2438
    %3679 = vmatprep.subr.bf16.mxu0 %v2455
    %3680 = vmatpush1.bf16.msra.mxu0 %v2454
    %3681 = vmatprep.subr.bf16.mxu0 %v2471
    %3682 = vmatpush1.bf16.msra.mxu0 %v2470
    %3683 = vmatprep.subr.bf16.mxu0 %v2487
    %3684 = vmatpush1.bf16.msra.mxu0 %v2486
    %3685 = vmatprep.subr.bf16.mxu0 %v2503
    %3686 = vmatpush1.bf16.msra.mxu0 %v2502
    %3687 = vmatprep.subr.bf16.mxu0 %v2519
    %3688 = vmatpush1.bf16.msra.mxu0 %v2518
    %3689 = vmatprep.subr.bf16.mxu0 %v2535
    %3690 = vmatpush1.bf16.msra.mxu0 %v2534
    %3691 = vmatprep.subr.bf16.mxu0 %v2551
    %3692 = vmatpush1.bf16.msra.mxu0 %v2550
    %3693 = vmatprep.subr.bf16.mxu0 %v2567
    %3694 = vmatpush1.bf16.msra.mxu0 %v2566
    %3695 = vmatprep.subr.bf16.mxu0 %v2583
    %3696 = vmatpush1.bf16.msra.mxu0 %v2582
    %3697 = vmatprep.subr.bf16.mxu0 %v2599
    %3698 = vmatpush1.bf16.msra.mxu0 %v2598
    %3699 = vmatprep.subr.bf16.mxu0 %v2615
    %3700 = vmatpush1.bf16.msra.mxu0 %v2614
    %3701 = vmatprep.mubr.bf16.mxu0 %v1595
    %3702 = vmatmul.mubr.bf16.gmra.mrb[0].mxu0 %v1594
    %v3703 = vpop.f32.mrb[0].mxu0
    %v3704 = vadd.f32 %v3663, %v3703
    %v3705 = vpop.f32.mrb[0].mxu0
    %v3706 = vadd.f32 %v3665, %v3705
    %v3707 = vpop.f32.mrb[0].mxu0
    %v3708 = vpop.f32.mrb[0].mxu0
    %3709 = vdwg.mxu0
    %3710 = vmatprep.subr.bf16.mxu0 %v2631
    %3711 = vmatpush1.bf16.msra.mxu0 %v2630
    %3712 = vmatprep.subr.bf16.mxu0 %v2647
    %3713 = vmatpush1.bf16.msra.mxu0 %v2646
    %3714 = vmatprep.subr.bf16.mxu0 %v2663
    %3715 = vmatpush1.bf16.msra.mxu0 %v2662
    %3716 = vmatprep.subr.bf16.mxu0 %v2679
    %3717 = vmatpush1.bf16.msra.mxu0 %v2678
    %3718 = vmatprep.subr.bf16.mxu0 %v2695
    %3719 = vmatpush1.bf16.msra.mxu0 %v2694
    %3720 = vmatprep.subr.bf16.mxu0 %v2711
    %3721 = vmatpush1.bf16.msra.mxu0 %v2710
    %3722 = vmatprep.subr.bf16.mxu0 %v2727
    %3723 = vmatpush1.bf16.msra.mxu0 %v2726
    %3724 = vmatprep.subr.bf16.mxu0 %v2743
    %3725 = vmatpush1.bf16.msra.mxu0 %v2742
    %3726 = vmatprep.subr.bf16.mxu0 %v2759
    %3727 = vmatpush1.bf16.msra.mxu0 %v2758
    %3728 = vmatprep.subr.bf16.mxu0 %v2775
    %3729 = vmatpush1.bf16.msra.mxu0 %v2774
    %3730 = vmatprep.subr.bf16.mxu0 %v2791
    %3731 = vmatpush1.bf16.msra.mxu0 %v2790
    %3732 = vmatprep.subr.bf16.mxu0 %v2807
    %3733 = vmatpush1.bf16.msra.mxu0 %v2806
    %3734 = vmatprep.subr.bf16.mxu0 %v2823
    %3735 = vmatpush1.bf16.msra.mxu0 %v2822
    %3736 = vmatprep.subr.bf16.mxu0 %v2839
    %3737 = vmatpush1.bf16.msra.mxu0 %v2838
    %3738 = vmatprep.subr.bf16.mxu0 %v2855
    %3739 = vmatpush1.bf16.msra.mxu0 %v2854
    %3740 = vmatprep.subr.bf16.mxu0 %v2871
    %3741 = vmatpush1.bf16.msra.mxu0 %v2870
    %3742 = vmatprep.mubr.bf16.mxu0 %v1597
    %3743 = vmatmul.mubr.bf16.gmra.mrb[0].mxu0 %v1596
    %v3744 = vpop.f32.mrb[0].mxu0
    %v3745 = vadd.f32 %v3704, %v3744
    %v3746 = vpop.f32.mrb[0].mxu0
    %v3747 = vadd.f32 %v3706, %v3746
    %v3748 = vpop.f32.mrb[0].mxu0
    %v3749 = vpop.f32.mrb[0].mxu0
    %3750 = vdwg.mxu0
    %3751 = vmatprep.subr.bf16.mxu0 %v2887
    %3752 = vmatpush1.bf16.msra.mxu0 %v2886
    %3753 = vmatprep.subr.bf16.mxu0 %v2903
    %3754 = vmatpush1.bf16.msra.mxu0 %v2902
    %3755 = vmatprep.subr.bf16.mxu0 %v2919
    %3756 = vmatpush1.bf16.msra.mxu0 %v2918
    %3757 = vmatprep.subr.bf16.mxu0 %v2935
    %3758 = vmatpush1.bf16.msra.mxu0 %v2934
    %3759 = vmatprep.subr.bf16.mxu0 %v2951
    %3760 = vmatpush1.bf16.msra.mxu0 %v2950
    %3761 = vmatprep.subr.bf16.mxu0 %v2967
    %3762 = vmatpush1.bf16.msra.mxu0 %v2966
    %3763 = vmatprep.subr.bf16.mxu0 %v2983
    %3764 = vmatpush1.bf16.msra.mxu0 %v2982
    %3765 = vmatprep.subr.bf16.mxu0 %v2999
    %3766 = vmatpush1.bf16.msra.mxu0 %v2998
    %3767 = vmatprep.subr.bf16.mxu0 %v3015
    %3768 = vmatpush1.bf16.msra.mxu0 %v3014
    %3769 = vmatprep.subr.bf16.mxu0 %v3031
    %3770 = vmatpush1.bf16.msra.mxu0 %v3030
    %3771 = vmatprep.subr.bf16.mxu0 %v3047
    %3772 = vmatpush1.bf16.msra.mxu0 %v3046
    %3773 = vmatprep.subr.bf16.mxu0 %v3063
    %3774 = vmatpush1.bf16.msra.mxu0 %v3062
    %3775 = vmatprep.subr.bf16.mxu0 %v3079
    %3776 = vmatpush1.bf16.msra.mxu0 %v3078
    %3777 = vmatprep.subr.bf16.mxu0 %v3095
    %3778 = vmatpush1.bf16.msra.mxu0 %v3094
    %3779 = vmatprep.subr.bf16.mxu0 %v3111
    %3780 = vmatpush1.bf16.msra.mxu0 %v3110
    %3781 = vmatprep.subr.bf16.mxu0 %v3127
    %3782 = vmatpush1.bf16.msra.mxu0 %v3126
    %3783 = vmatprep.mubr.bf16.mxu0 %v1599
    %3784 = vmatmul.mubr.bf16.gmra.mrb[0].mxu0 %v1598
    %v3785 = vpop.f32.mrb[0].mxu0
    %v3786 = vadd.f32 %v3745, %v3785
    %v3787 = vpop.f32.mrb[0].mxu0
    %v3788 = vadd.f32 %v3747, %v3787
    %v3789 = vpop.f32.mrb[0].mxu0
    %v3790 = vpop.f32.mrb[0].mxu0
    %3791 = vdwg.mxu0
    %3792 = vmatprep.subr.bf16.mxu0 %v2121
    %3793 = vmatpush1.bf16.msra.mxu0 %v2120
    %3794 = vmatprep.subr.bf16.mxu0 %v2137
    %3795 = vmatpush1.bf16.msra.mxu0 %v2136
    %3796 = vmatprep.subr.bf16.mxu0 %v2153
    %3797 = vmatpush1.bf16.msra.mxu0 %v2152
    %3798 = vmatprep.subr.bf16.mxu0 %v2169
    %3799 = vmatpush1.bf16.msra.mxu0 %v2168
    %3800 = vmatprep.subr.bf16.mxu0 %v2185
    %3801 = vmatpush1.bf16.msra.mxu0 %v2184
    %3802 = vmatprep.subr.bf16.mxu0 %v2201
    %3803 = vmatpush1.bf16.msra.mxu0 %v2200
    %3804 = vmatprep.subr.bf16.mxu0 %v2217
    %3805 = vmatpush1.bf16.msra.mxu0 %v2216
    %3806 = vmatprep.subr.bf16.mxu0 %v2233
    %3807 = vmatpush1.bf16.msra.mxu0 %v2232
    %3808 = vmatprep.subr.bf16.mxu0 %v2249
    %3809 = vmatpush1.bf16.msra.mxu0 %v2248
    %3810 = vmatprep.subr.bf16.mxu0 %v2265
    %3811 = vmatpush1.bf16.msra.mxu0 %v2264
    %3812 = vmatprep.subr.bf16.mxu0 %v2281
    %3813 = vmatpush1.bf16.msra.mxu0 %v2280
    %3814 = vmatprep.subr.bf16.mxu0 %v2297
    %3815 = vmatpush1.bf16.msra.mxu0 %v2296
    %3816 = vmatprep.subr.bf16.mxu0 %v2313
    %3817 = vmatpush1.bf16.msra.mxu0 %v2312
    %3818 = vmatprep.subr.bf16.mxu0 %v2329
    %3819 = vmatpush1.bf16.msra.mxu0 %v2328
    %3820 = vmatprep.subr.bf16.mxu0 %v2345
    %3821 = vmatpush1.bf16.msra.mxu0 %v2344
    %3822 = vmatprep.subr.bf16.mxu0 %v2361
    %3823 = vmatpush1.bf16.msra.mxu0 %v2360
    %3824 = vmatprep.mubr.bf16.mxu0 %v1593
    %3825 = vmatmul.mubr.bf16.gmra.mrb[0].mxu0 %v1592
    %v3826 = vpop.f32.mrb[0].mxu0
    %v3827 = vadd.f32 0.0, %v3826
    %v3828 = vpop.f32.mrb[0].mxu0
    %v3829 = vadd.f32 0.0, %v3828
    %v3830 = vpop.f32.mrb[0].mxu0
    %v3831 = vpop.f32.mrb[0].mxu0
    %3832 = vdwg.mxu0
    %3833 = vmatprep.subr.bf16.mxu0 %v2377
    %3834 = vmatpush1.bf16.msra.mxu0 %v2376
    %3835 = vmatprep.subr.bf16.mxu0 %v2393
    %3836 = vmatpush1.bf16.msra.mxu0 %v2392
    %3837 = vmatprep.subr.bf16.mxu0 %v2409
    %3838 = vmatpush1.bf16.msra.mxu0 %v2408
    %3839 = vmatprep.subr.bf16.mxu0 %v2425
    %3840 = vmatpush1.bf16.msra.mxu0 %v2424
    %3841 = vmatprep.subr.bf16.mxu0 %v2441
    %3842 = vmatpush1.bf16.msra.mxu0 %v2440
    %3843 = vmatprep.subr.bf16.mxu0 %v2457
    %3844 = vmatpush1.bf16.msra.mxu0 %v2456
    %3845 = vmatprep.subr.bf16.mxu0 %v2473
    %3846 = vmatpush1.bf16.msra.mxu0 %v2472
    %3847 = vmatprep.subr.bf16.mxu0 %v2489
    %3848 = vmatpush1.bf16.msra.mxu0 %v2488
    %3849 = vmatprep.subr.bf16.mxu0 %v2505
    %3850 = vmatpush1.bf16.msra.mxu0 %v2504
    %3851 = vmatprep.subr.bf16.mxu0 %v2521
    %3852 = vmatpush1.bf16.msra.mxu0 %v2520
    %3853 = vmatprep.subr.bf16.mxu0 %v2537
    %3854 = vmatpush1.bf16.msra.mxu0 %v2536
    %3855 = vmatprep.subr.bf16.mxu0 %v2553
    %3856 = vmatpush1.bf16.msra.mxu0 %v2552
    %3857 = vmatprep.subr.bf16.mxu0 %v2569
    %3858 = vmatpush1.bf16.msra.mxu0 %v2568
    %3859 = vmatprep.subr.bf16.mxu0 %v2585
    %3860 = vmatpush1.bf16.msra.mxu0 %v2584
    %3861 = vmatprep.subr.bf16.mxu0 %v2601
    %3862 = vmatpush1.bf16.msra.mxu0 %v2600
    %3863 = vmatprep.subr.bf16.mxu0 %v2617
    %3864 = vmatpush1.bf16.msra.mxu0 %v2616
    %3865 = vmatprep.mubr.bf16.mxu0 %v1595
    %3866 = vmatmul.mubr.bf16.gmra.mrb[0].mxu0 %v1594
    %v3867 = vpop.f32.mrb[0].mxu0
    %v3868 = vadd.f32 %v3827, %v3867
    %v3869 = vpop.f32.mrb[0].mxu0
    %v3870 = vadd.f32 %v3829, %v3869
    %v3871 = vpop.f32.mrb[0].mxu0
    %v3872 = vpop.f32.mrb[0].mxu0
    %3873 = vdwg.mxu0
    %3874 = vmatprep.subr.bf16.mxu0 %v2633
    %3875 = vmatpush1.bf16.msra.mxu0 %v2632
    %3876 = vmatprep.subr.bf16.mxu0 %v2649
    %3877 = vmatpush1.bf16.msra.mxu0 %v2648
    %3878 = vmatprep.subr.bf16.mxu0 %v2665
    %3879 = vmatpush1.bf16.msra.mxu0 %v2664
    %3880 = vmatprep.subr.bf16.mxu0 %v2681
    %3881 = vmatpush1.bf16.msra.mxu0 %v2680
    %3882 = vmatprep.subr.bf16.mxu0 %v2697
    %3883 = vmatpush1.bf16.msra.mxu0 %v2696
    %3884 = vmatprep.subr.bf16.mxu0 %v2713
    %3885 = vmatpush1.bf16.msra.mxu0 %v2712
    %3886 = vmatprep.subr.bf16.mxu0 %v2729
    %3887 = vmatpush1.bf16.msra.mxu0 %v2728
    %3888 = vmatprep.subr.bf16.mxu0 %v2745
    %3889 = vmatpush1.bf16.msra.mxu0 %v2744
    %3890 = vmatprep.subr.bf16.mxu0 %v2761
    %3891 = vmatpush1.bf16.msra.mxu0 %v2760
    %3892 = vmatprep.subr.bf16.mxu0 %v2777
    %3893 = vmatpush1.bf16.msra.mxu0 %v2776
    %3894 = vmatprep.subr.bf16.mxu0 %v2793
    %3895 = vmatpush1.bf16.msra.mxu0 %v2792
    %3896 = vmatprep.subr.bf16.mxu0 %v2809
    %3897 = vmatpush1.bf16.msra.mxu0 %v2808
    %3898 = vmatprep.subr.bf16.mxu0 %v2825
    %3899 = vmatpush1.bf16.msra.mxu0 %v2824
    %3900 = vmatprep.subr.bf16.mxu0 %v2841
    %3901 = vmatpush1.bf16.msra.mxu0 %v2840
    %3902 = vmatprep.subr.bf16.mxu0 %v2857
    %3903 = vmatpush1.bf16.msra.mxu0 %v2856
    %3904 = vmatprep.subr.bf16.mxu0 %v2873
    %3905 = vmatpush1.bf16.msra.mxu0 %v2872
    %3906 = vmatprep.mubr.bf16.mxu0 %v1597
    %3907 = vmatmul.mubr.bf16.gmra.mrb[0].mxu0 %v1596
    %v3908 = vpop.f32.mrb[0].mxu0
    %v3909 = vadd.f32 %v3868, %v3908
    %v3910 = vpop.f32.mrb[0].mxu0
    %v3911 = vadd.f32 %v3870, %v3910
    %v3912 = vpop.f32.mrb[0].mxu0
    %v3913 = vpop.f32.mrb[0].mxu0
    %3914 = vdwg.mxu0
    %3915 = vmatprep.subr.bf16.mxu0 %v2889
    %3916 = vmatpush1.bf16.msra.mxu0 %v2888
    %3917 = vmatprep.subr.bf16.mxu0 %v2905
    %3918 = vmatpush1.bf16.msra.mxu0 %v2904
    %3919 = vmatprep.subr.bf16.mxu0 %v2921
    %3920 = vmatpush1.bf16.msra.mxu0 %v2920
    %3921 = vmatprep.subr.bf16.mxu0 %v2937
    %3922 = vmatpush1.bf16.msra.mxu0 %v2936
    %3923 = vmatprep.subr.bf16.mxu0 %v2953
    %3924 = vmatpush1.bf16.msra.mxu0 %v2952
    %3925 = vmatprep.subr.bf16.mxu0 %v2969
    %3926 = vmatpush1.bf16.msra.mxu0 %v2968
    %3927 = vmatprep.subr.bf16.mxu0 %v2985
    %3928 = vmatpush1.bf16.msra.mxu0 %v2984
    %3929 = vmatprep.subr.bf16.mxu0 %v3001
    %3930 = vmatpush1.bf16.msra.mxu0 %v3000
    %3931 = vmatprep.subr.bf16.mxu0 %v3017
    %3932 = vmatpush1.bf16.msra.mxu0 %v3016
    %3933 = vmatprep.subr.bf16.mxu0 %v3033
    %3934 = vmatpush1.bf16.msra.mxu0 %v3032
    %3935 = vmatprep.subr.bf16.mxu0 %v3049
    %3936 = vmatpush1.bf16.msra.mxu0 %v3048
    %3937 = vmatprep.subr.bf16.mxu0 %v3065
    %3938 = vmatpush1.bf16.msra.mxu0 %v3064
    %3939 = vmatprep.subr.bf16.mxu0 %v3081
    %3940 = vmatpush1.bf16.msra.mxu0 %v3080
    %3941 = vmatprep.subr.bf16.mxu0 %v3097
    %3942 = vmatpush1.bf16.msra.mxu0 %v3096
    %3943 = vmatprep.subr.bf16.mxu0 %v3113
    %3944 = vmatpush1.bf16.msra.mxu0 %v3112
    %3945 = vmatprep.subr.bf16.mxu0 %v3129
    %3946 = vmatpush1.bf16.msra.mxu0 %v3128
    %3947 = vmatprep.mubr.bf16.mxu0 %v1599
    %3948 = vmatmul.mubr.bf16.gmra.mrb[0].mxu0 %v1598
    %v3949 = vpop.f32.mrb[0].mxu0
    %v3950 = vadd.f32 %v3909, %v3949
    %v3951 = vpop.f32.mrb[0].mxu0
    %v3952 = vadd.f32 %v3911, %v3951
    %v3953 = vpop.f32.mrb[0].mxu0
    %v3954 = vpop.f32.mrb[0].mxu0
    %3955 = vdwg.mxu0
    %3956 = vmatprep.subr.bf16.mxu0 %v2123
    %3957 = vmatpush1.bf16.msra.mxu0 %v2122
    %3958 = vmatprep.subr.bf16.mxu0 %v2139
    %3959 = vmatpush1.bf16.msra.mxu0 %v2138
    %3960 = vmatprep.subr.bf16.mxu0 %v2155
    %3961 = vmatpush1.bf16.msra.mxu0 %v2154
    %3962 = vmatprep.subr.bf16.mxu0 %v2171
    %3963 = vmatpush1.bf16.msra.mxu0 %v2170
    %3964 = vmatprep.subr.bf16.mxu0 %v2187
    %3965 = vmatpush1.bf16.msra.mxu0 %v2186
    %3966 = vmatprep.subr.bf16.mxu0 %v2203
    %3967 = vmatpush1.bf16.msra.mxu0 %v2202
    %3968 = vmatprep.subr.bf16.mxu0 %v2219
    %3969 = vmatpush1.bf16.msra.mxu0 %v2218
    %3970 = vmatprep.subr.bf16.mxu0 %v2235
    %3971 = vmatpush1.bf16.msra.mxu0 %v2234
    %3972 = vmatprep.subr.bf16.mxu0 %v2251
    %3973 = vmatpush1.bf16.msra.mxu0 %v2250
    %3974 = vmatprep.subr.bf16.mxu0 %v2267
    %3975 = vmatpush1.bf16.msra.mxu0 %v2266
    %3976 = vmatprep.subr.bf16.mxu0 %v2283
    %3977 = vmatpush1.bf16.msra.mxu0 %v2282
    %3978 = vmatprep.subr.bf16.mxu0 %v2299
    %3979 = vmatpush1.bf16.msra.mxu0 %v2298
    %3980 = vmatprep.subr.bf16.mxu0 %v2315
    %3981 = vmatpush1.bf16.msra.mxu0 %v2314
    %3982 = vmatprep.subr.bf16.mxu0 %v2331
    %3983 = vmatpush1.bf16.msra.mxu0 %v2330
    %3984 = vmatprep.subr.bf16.mxu0 %v2347
    %3985 = vmatpush1.bf16.msra.mxu0 %v2346
    %3986 = vmatprep.subr.bf16.mxu0 %v2363
    %3987 = vmatpush1.bf16.msra.mxu0 %v2362
    %3988 = vmatprep.mubr.bf16.mxu0 %v1593
    %3989 = vmatmul.mubr.bf16.gmra.mrb[0].mxu0 %v1592
    %v3990 = vpop.f32.mrb[0].mxu0
    %v3991 = vadd.f32 0.0, %v3990
    %v3992 = vpop.f32.mrb[0].mxu0
    %v3993 = vadd.f32 0.0, %v3992
    %v3994 = vpop.f32.mrb[0].mxu0
    %v3995 = vpop.f32.mrb[0].mxu0
    %3996 = vdwg.mxu0
    %3997 = vmatprep.subr.bf16.mxu0 %v2379
    %3998 = vmatpush1.bf16.msra.mxu0 %v2378
    %3999 = vmatprep.subr.bf16.mxu0 %v2395
    %4000 = vmatpush1.bf16.msra.mxu0 %v2394
    %4001 = vmatprep.subr.bf16.mxu0 %v2411
    %4002 = vmatpush1.bf16.msra.mxu0 %v2410
    %4003 = vmatprep.subr.bf16.mxu0 %v2427
    %4004 = vmatpush1.bf16.msra.mxu0 %v2426
    %4005 = vmatprep.subr.bf16.mxu0 %v2443
    %4006 = vmatpush1.bf16.msra.mxu0 %v2442
    %4007 = vmatprep.subr.bf16.mxu0 %v2459
    %4008 = vmatpush1.bf16.msra.mxu0 %v2458
    %4009 = vmatprep.subr.bf16.mxu0 %v2475
    %4010 = vmatpush1.bf16.msra.mxu0 %v2474
    %4011 = vmatprep.subr.bf16.mxu0 %v2491
    %4012 = vmatpush1.bf16.msra.mxu0 %v2490
    %4013 = vmatprep.subr.bf16.mxu0 %v2507
    %4014 = vmatpush1.bf16.msra.mxu0 %v2506
    %4015 = vmatprep.subr.bf16.mxu0 %v2523
    %4016 = vmatpush1.bf16.msra.mxu0 %v2522
    %4017 = vmatprep.subr.bf16.mxu0 %v2539
    %4018 = vmatpush1.bf16.msra.mxu0 %v2538
    %4019 = vmatprep.subr.bf16.mxu0 %v2555
    %4020 = vmatpush1.bf16.msra.mxu0 %v2554
    %4021 = vmatprep.subr.bf16.mxu0 %v2571
    %4022 = vmatpush1.bf16.msra.mxu0 %v2570
    %4023 = vmatprep.subr.bf16.mxu0 %v2587
    %4024 = vmatpush1.bf16.msra.mxu0 %v2586
    %4025 = vmatprep.subr.bf16.mxu0 %v2603
    %4026 = vmatpush1.bf16.msra.mxu0 %v2602
    %4027 = vmatprep.subr.bf16.mxu0 %v2619
    %4028 = vmatpush1.bf16.msra.mxu0 %v2618
    %4029 = vmatprep.mubr.bf16.mxu0 %v1595
    %4030 = vmatmul.mubr.bf16.gmra.mrb[0].mxu0 %v1594
    %v4031 = vpop.f32.mrb[0].mxu0
    %v4032 = vadd.f32 %v3991, %v4031
    %v4033 = vpop.f32.mrb[0].mxu0
    %v4034 = vadd.f32 %v3993, %v4033
    %v4035 = vpop.f32.mrb[0].mxu0
    %v4036 = vpop.f32.mrb[0].mxu0
    %4037 = vdwg.mxu0
    %4038 = vmatprep.subr.bf16.mxu0 %v2635
    %4039 = vmatpush1.bf16.msra.mxu0 %v2634
    %4040 = vmatprep.subr.bf16.mxu0 %v2651
    %4041 = vmatpush1.bf16.msra.mxu0 %v2650
    %4042 = vmatprep.subr.bf16.mxu0 %v2667
    %4043 = vmatpush1.bf16.msra.mxu0 %v2666
    %4044 = vmatprep.subr.bf16.mxu0 %v2683
    %4045 = vmatpush1.bf16.msra.mxu0 %v2682
    %4046 = vmatprep.subr.bf16.mxu0 %v2699
    %4047 = vmatpush1.bf16.msra.mxu0 %v2698
    %4048 = vmatprep.subr.bf16.mxu0 %v2715
    %4049 = vmatpush1.bf16.msra.mxu0 %v2714
    %4050 = vmatprep.subr.bf16.mxu0 %v2731
    %4051 = vmatpush1.bf16.msra.mxu0 %v2730
    %4052 = vmatprep.subr.bf16.mxu0 %v2747
    %4053 = vmatpush1.bf16.msra.mxu0 %v2746
    %4054 = vmatprep.subr.bf16.mxu0 %v2763
    %4055 = vmatpush1.bf16.msra.mxu0 %v2762
    %4056 = vmatprep.subr.bf16.mxu0 %v2779
    %4057 = vmatpush1.bf16.msra.mxu0 %v2778
    %4058 = vmatprep.subr.bf16.mxu0 %v2795
    %4059 = vmatpush1.bf16.msra.mxu0 %v2794
    %4060 = vmatprep.subr.bf16.mxu0 %v2811
    %4061 = vmatpush1.bf16.msra.mxu0 %v2810
    %4062 = vmatprep.subr.bf16.mxu0 %v2827
    %4063 = vmatpush1.bf16.msra.mxu0 %v2826
    %4064 = vmatprep.subr.bf16.mxu0 %v2843
    %4065 = vmatpush1.bf16.msra.mxu0 %v2842
    %4066 = vmatprep.subr.bf16.mxu0 %v2859
    %4067 = vmatpush1.bf16.msra.mxu0 %v2858
    %4068 = vmatprep.subr.bf16.mxu0 %v2875
    %4069 = vmatpush1.bf16.msra.mxu0 %v2874
    %4070 = vmatprep.mubr.bf16.mxu0 %v1597
    %4071 = vmatmul.mubr.bf16.gmra.mrb[0].mxu0 %v1596
    %v4072 = vpop.f32.mrb[0].mxu0
    %v4073 = vadd.f32 %v4032, %v4072
    %v4074 = vpop.f32.mrb[0].mxu0
    %v4075 = vadd.f32 %v4034, %v4074
    %v4076 = vpop.f32.mrb[0].mxu0
    %v4077 = vpop.f32.mrb[0].mxu0
    %4078 = vdwg.mxu0
    %4079 = vmatprep.subr.bf16.mxu0 %v2891
    %4080 = vmatpush1.bf16.msra.mxu0 %v2890
    %4081 = vmatprep.subr.bf16.mxu0 %v2907
    %4082 = vmatpush1.bf16.msra.mxu0 %v2906
    %4083 = vmatprep.subr.bf16.mxu0 %v2923
    %4084 = vmatpush1.bf16.msra.mxu0 %v2922
    %4085 = vmatprep.subr.bf16.mxu0 %v2939
    %4086 = vmatpush1.bf16.msra.mxu0 %v2938
    %4087 = vmatprep.subr.bf16.mxu0 %v2955
    %4088 = vmatpush1.bf16.msra.mxu0 %v2954
    %4089 = vmatprep.subr.bf16.mxu0 %v2971
    %4090 = vmatpush1.bf16.msra.mxu0 %v2970
    %4091 = vmatprep.subr.bf16.mxu0 %v2987
    %4092 = vmatpush1.bf16.msra.mxu0 %v2986
    %4093 = vmatprep.subr.bf16.mxu0 %v3003
    %4094 = vmatpush1.bf16.msra.mxu0 %v3002
    %4095 = vmatprep.subr.bf16.mxu0 %v3019
    %4096 = vmatpush1.bf16.msra.mxu0 %v3018
    %4097 = vmatprep.subr.bf16.mxu0 %v3035
    %4098 = vmatpush1.bf16.msra.mxu0 %v3034
    %4099 = vmatprep.subr.bf16.mxu0 %v3051
    %4100 = vmatpush1.bf16.msra.mxu0 %v3050
    %4101 = vmatprep.subr.bf16.mxu0 %v3067
    %4102 = vmatpush1.bf16.msra.mxu0 %v3066
    %4103 = vmatprep.subr.bf16.mxu0 %v3083
    %4104 = vmatpush1.bf16.msra.mxu0 %v3082
    %4105 = vmatprep.subr.bf16.mxu0 %v3099
    %4106 = vmatpush1.bf16.msra.mxu0 %v3098
    %4107 = vmatprep.subr.bf16.mxu0 %v3115
    %4108 = vmatpush1.bf16.msra.mxu0 %v3114
    %4109 = vmatprep.subr.bf16.mxu0 %v3131
    %4110 = vmatpush1.bf16.msra.mxu0 %v3130
    %4111 = vmatprep.mubr.bf16.mxu0 %v1599
    %4112 = vmatmul.mubr.bf16.gmra.mrb[0].mxu0 %v1598
    %v4113 = vpop.f32.mrb[0].mxu0
    %v4114 = vadd.f32 %v4073, %v4113
    %v4115 = vpop.f32.mrb[0].mxu0
    %v4116 = vadd.f32 %v4075, %v4115
    %v4117 = vpop.f32.mrb[0].mxu0
    %v4118 = vpop.f32.mrb[0].mxu0
    %4119 = vdwg.mxu0
    %4120 = vmatprep.subr.bf16.mxu0 %v2125
    %4121 = vmatpush1.bf16.msra.mxu0 %v2124
    %4122 = vmatprep.subr.bf16.mxu0 %v2141
    %4123 = vmatpush1.bf16.msra.mxu0 %v2140
    %4124 = vmatprep.subr.bf16.mxu0 %v2157
    %4125 = vmatpush1.bf16.msra.mxu0 %v2156
    %4126 = vmatprep.subr.bf16.mxu0 %v2173
    %4127 = vmatpush1.bf16.msra.mxu0 %v2172
    %4128 = vmatprep.subr.bf16.mxu0 %v2189
    %4129 = vmatpush1.bf16.msra.mxu0 %v2188
    %4130 = vmatprep.subr.bf16.mxu0 %v2205
    %4131 = vmatpush1.bf16.msra.mxu0 %v2204
    %4132 = vmatprep.subr.bf16.mxu0 %v2221
    %4133 = vmatpush1.bf16.msra.mxu0 %v2220
    %4134 = vmatprep.subr.bf16.mxu0 %v2237
    %4135 = vmatpush1.bf16.msra.mxu0 %v2236
    %4136 = vmatprep.subr.bf16.mxu0 %v2253
    %4137 = vmatpush1.bf16.msra.mxu0 %v2252
    %4138 = vmatprep.subr.bf16.mxu0 %v2269
    %4139 = vmatpush1.bf16.msra.mxu0 %v2268
    %4140 = vmatprep.subr.bf16.mxu0 %v2285
    %4141 = vmatpush1.bf16.msra.mxu0 %v2284
    %4142 = vmatprep.subr.bf16.mxu0 %v2301
    %4143 = vmatpush1.bf16.msra.mxu0 %v2300
    %4144 = vmatprep.subr.bf16.mxu0 %v2317
    %4145 = vmatpush1.bf16.msra.mxu0 %v2316
    %4146 = vmatprep.subr.bf16.mxu0 %v2333
    %4147 = vmatpush1.bf16.msra.mxu0 %v2332
    %4148 = vmatprep.subr.bf16.mxu0 %v2349
    %4149 = vmatpush1.bf16.msra.mxu0 %v2348
    %4150 = vmatprep.subr.bf16.mxu0 %v2365
    %4151 = vmatpush1.bf16.msra.mxu0 %v2364
    %4152 = vmatprep.mubr.bf16.mxu0 %v1593
    %4153 = vmatmul.mubr.bf16.gmra.mrb[0].mxu0 %v1592
    %v4154 = vpop.f32.mrb[0].mxu0
    %v4155 = vadd.f32 0.0, %v4154
    %v4156 = vpop.f32.mrb[0].mxu0
    %v4157 = vadd.f32 0.0, %v4156
    %v4158 = vpop.f32.mrb[0].mxu0
    %v4159 = vpop.f32.mrb[0].mxu0
    %4160 = vdwg.mxu0
    %4161 = vmatprep.subr.bf16.mxu0 %v2381
    %4162 = vmatpush1.bf16.msra.mxu0 %v2380
    %4163 = vmatprep.subr.bf16.mxu0 %v2397
    %4164 = vmatpush1.bf16.msra.mxu0 %v2396
    %4165 = vmatprep.subr.bf16.mxu0 %v2413
    %4166 = vmatpush1.bf16.msra.mxu0 %v2412
    %4167 = vmatprep.subr.bf16.mxu0 %v2429
    %4168 = vmatpush1.bf16.msra.mxu0 %v2428
    %4169 = vmatprep.subr.bf16.mxu0 %v2445
    %4170 = vmatpush1.bf16.msra.mxu0 %v2444
    %4171 = vmatprep.subr.bf16.mxu0 %v2461
    %4172 = vmatpush1.bf16.msra.mxu0 %v2460
    %4173 = vmatprep.subr.bf16.mxu0 %v2477
    %4174 = vmatpush1.bf16.msra.mxu0 %v2476
    %4175 = vmatprep.subr.bf16.mxu0 %v2493
    %4176 = vmatpush1.bf16.msra.mxu0 %v2492
    %4177 = vmatprep.subr.bf16.mxu0 %v2509
    %4178 = vmatpush1.bf16.msra.mxu0 %v2508
    %4179 = vmatprep.subr.bf16.mxu0 %v2525
    %4180 = vmatpush1.bf16.msra.mxu0 %v2524
    %4181 = vmatprep.subr.bf16.mxu0 %v2541
    %4182 = vmatpush1.bf16.msra.mxu0 %v2540
    %4183 = vmatprep.subr.bf16.mxu0 %v2557
    %4184 = vmatpush1.bf16.msra.mxu0 %v2556
    %4185 = vmatprep.subr.bf16.mxu0 %v2573
    %4186 = vmatpush1.bf16.msra.mxu0 %v2572
    %4187 = vmatprep.subr.bf16.mxu0 %v2589
    %4188 = vmatpush1.bf16.msra.mxu0 %v2588
    %4189 = vmatprep.subr.bf16.mxu0 %v2605
    %4190 = vmatpush1.bf16.msra.mxu0 %v2604
    %4191 = vmatprep.subr.bf16.mxu0 %v2621
    %4192 = vmatpush1.bf16.msra.mxu0 %v2620
    %4193 = vmatprep.mubr.bf16.mxu0 %v1595
    %4194 = vmatmul.mubr.bf16.gmra.mrb[0].mxu0 %v1594
    %v4195 = vpop.f32.mrb[0].mxu0
    %v4196 = vadd.f32 %v4155, %v4195
    %v4197 = vpop.f32.mrb[0].mxu0
    %v4198 = vadd.f32 %v4157, %v4197
    %v4199 = vpop.f32.mrb[0].mxu0
    %v4200 = vpop.f32.mrb[0].mxu0
    %4201 = vdwg.mxu0
    %4202 = vmatprep.subr.bf16.mxu0 %v2637
    %4203 = vmatpush1.bf16.msra.mxu0 %v2636
    %4204 = vmatprep.subr.bf16.mxu0 %v2653
    %4205 = vmatpush1.bf16.msra.mxu0 %v2652
    %4206 = vmatprep.subr.bf16.mxu0 %v2669
    %4207 = vmatpush1.bf16.msra.mxu0 %v2668
    %4208 = vmatprep.subr.bf16.mxu0 %v2685
    %4209 = vmatpush1.bf16.msra.mxu0 %v2684
    %4210 = vmatprep.subr.bf16.mxu0 %v2701
    %4211 = vmatpush1.bf16.msra.mxu0 %v2700
    %4212 = vmatprep.subr.bf16.mxu0 %v2717
    %4213 = vmatpush1.bf16.msra.mxu0 %v2716
    %4214 = vmatprep.subr.bf16.mxu0 %v2733
    %4215 = vmatpush1.bf16.msra.mxu0 %v2732
    %4216 = vmatprep.subr.bf16.mxu0 %v2749
    %4217 = vmatpush1.bf16.msra.mxu0 %v2748
    %4218 = vmatprep.subr.bf16.mxu0 %v2765
    %4219 = vmatpush1.bf16.msra.mxu0 %v2764
    %4220 = vmatprep.subr.bf16.mxu0 %v2781
    %4221 = vmatpush1.bf16.msra.mxu0 %v2780
    %4222 = vmatprep.subr.bf16.mxu0 %v2797
    %4223 = vmatpush1.bf16.msra.mxu0 %v2796
    %4224 = vmatprep.subr.bf16.mxu0 %v2813
    %4225 = vmatpush1.bf16.msra.mxu0 %v2812
    %4226 = vmatprep.subr.bf16.mxu0 %v2829
    %4227 = vmatpush1.bf16.msra.mxu0 %v2828
    %4228 = vmatprep.subr.bf16.mxu0 %v2845
    %4229 = vmatpush1.bf16.msra.mxu0 %v2844
    %4230 = vmatprep.subr.bf16.mxu0 %v2861
    %4231 = vmatpush1.bf16.msra.mxu0 %v2860
    %4232 = vmatprep.subr.bf16.mxu0 %v2877
    %4233 = vmatpush1.bf16.msra.mxu0 %v2876
    %4234 = vmatprep.mubr.bf16.mxu0 %v1597
    %4235 = vmatmul.mubr.bf16.gmra.mrb[0].mxu0 %v1596
    %v4236 = vpop.f32.mrb[0].mxu0
    %v4237 = vadd.f32 %v4196, %v4236
    %v4238 = vpop.f32.mrb[0].mxu0
    %v4239 = vadd.f32 %v4198, %v4238
    %v4240 = vpop.f32.mrb[0].mxu0
    %v4241 = vpop.f32.mrb[0].mxu0
    %4242 = vdwg.mxu0
    %4243 = vmatprep.subr.bf16.mxu0 %v2893
    %4244 = vmatpush1.bf16.msra.mxu0 %v2892
    %4245 = vmatprep.subr.bf16.mxu0 %v2909
    %4246 = vmatpush1.bf16.msra.mxu0 %v2908
    %4247 = vmatprep.subr.bf16.mxu0 %v2925
    %4248 = vmatpush1.bf16.msra.mxu0 %v2924
    %4249 = vmatprep.subr.bf16.mxu0 %v2941
    %4250 = vmatpush1.bf16.msra.mxu0 %v2940
    %4251 = vmatprep.subr.bf16.mxu0 %v2957
    %4252 = vmatpush1.bf16.msra.mxu0 %v2956
    %4253 = vmatprep.subr.bf16.mxu0 %v2973
    %4254 = vmatpush1.bf16.msra.mxu0 %v2972
    %4255 = vmatprep.subr.bf16.mxu0 %v2989
    %4256 = vmatpush1.bf16.msra.mxu0 %v2988
    %4257 = vmatprep.subr.bf16.mxu0 %v3005
    %4258 = vmatpush1.bf16.msra.mxu0 %v3004
    %4259 = vmatprep.subr.bf16.mxu0 %v3021
    %4260 = vmatpush1.bf16.msra.mxu0 %v3020
    %4261 = vmatprep.subr.bf16.mxu0 %v3037
    %4262 = vmatpush1.bf16.msra.mxu0 %v3036
    %4263 = vmatprep.subr.bf16.mxu0 %v3053
    %4264 = vmatpush1.bf16.msra.mxu0 %v3052
    %4265 = vmatprep.subr.bf16.mxu0 %v3069
    %4266 = vmatpush1.bf16.msra.mxu0 %v3068
    %4267 = vmatprep.subr.bf16.mxu0 %v3085
    %4268 = vmatpush1.bf16.msra.mxu0 %v3084
    %4269 = vmatprep.subr.bf16.mxu0 %v3101
    %4270 = vmatpush1.bf16.msra.mxu0 %v3100
    %4271 = vmatprep.subr.bf16.mxu0 %v3117
    %4272 = vmatpush1.bf16.msra.mxu0 %v3116
    %4273 = vmatprep.subr.bf16.mxu0 %v3133
    %4274 = vmatpush1.bf16.msra.mxu0 %v3132
    %4275 = vmatprep.mubr.bf16.mxu0 %v1599
    %4276 = vmatmul.mubr.bf16.gmra.mrb[0].mxu0 %v1598
    %v4277 = vpop.f32.mrb[0].mxu0
    %v4278 = vadd.f32 %v4237, %v4277
    %v4279 = vpop.f32.mrb[0].mxu0
    %v4280 = vadd.f32 %v4239, %v4279
    %v4281 = vpop.f32.mrb[0].mxu0
    %v4282 = vpop.f32.mrb[0].mxu0
    %4283 = vdwg.mxu0
    %4284 = vmatprep.subr.bf16.mxu0 %v2127
    %4285 = vmatpush1.bf16.msra.mxu0 %v2126
    %4286 = vmatprep.subr.bf16.mxu0 %v2143
    %4287 = vmatpush1.bf16.msra.mxu0 %v2142
    %4288 = vmatprep.subr.bf16.mxu0 %v2159
    %4289 = vmatpush1.bf16.msra.mxu0 %v2158
    %4290 = vmatprep.subr.bf16.mxu0 %v2175
    %4291 = vmatpush1.bf16.msra.mxu0 %v2174
    %4292 = vmatprep.subr.bf16.mxu0 %v2191
    %4293 = vmatpush1.bf16.msra.mxu0 %v2190
    %4294 = vmatprep.subr.bf16.mxu0 %v2207
    %4295 = vmatpush1.bf16.msra.mxu0 %v2206
    %4296 = vmatprep.subr.bf16.mxu0 %v2223
    %4297 = vmatpush1.bf16.msra.mxu0 %v2222
    %4298 = vmatprep.subr.bf16.mxu0 %v2239
    %4299 = vmatpush1.bf16.msra.mxu0 %v2238
    %4300 = vmatprep.subr.bf16.mxu0 %v2255
    %4301 = vmatpush1.bf16.msra.mxu0 %v2254
    %4302 = vmatprep.subr.bf16.mxu0 %v2271
    %4303 = vmatpush1.bf16.msra.mxu0 %v2270
    %4304 = vmatprep.subr.bf16.mxu0 %v2287
    %4305 = vmatpush1.bf16.msra.mxu0 %v2286
    %4306 = vmatprep.subr.bf16.mxu0 %v2303
    %4307 = vmatpush1.bf16.msra.mxu0 %v2302
    %4308 = vmatprep.subr.bf16.mxu0 %v2319
    %4309 = vmatpush1.bf16.msra.mxu0 %v2318
    %4310 = vmatprep.subr.bf16.mxu0 %v2335
    %4311 = vmatpush1.bf16.msra.mxu0 %v2334
    %4312 = vmatprep.subr.bf16.mxu0 %v2351
    %4313 = vmatpush1.bf16.msra.mxu0 %v2350
    %4314 = vmatprep.subr.bf16.mxu0 %v2367
    %4315 = vmatpush1.bf16.msra.mxu0 %v2366
    %4316 = vmatprep.mubr.bf16.mxu0 %v1593
    %4317 = vmatmul.mubr.bf16.gmra.mrb[0].mxu0 %v1592
    %v4318 = vpop.f32.mrb[0].mxu0
    %v4319 = vadd.f32 0.0, %v4318
    %v4320 = vpop.f32.mrb[0].mxu0
    %v4321 = vadd.f32 0.0, %v4320
    %v4322 = vpop.f32.mrb[0].mxu0
    %v4323 = vpop.f32.mrb[0].mxu0
    %4324 = vdwg.mxu0
    %4325 = vmatprep.subr.bf16.mxu0 %v2383
    %4326 = vmatpush1.bf16.msra.mxu0 %v2382
    %4327 = vmatprep.subr.bf16.mxu0 %v2399
    %4328 = vmatpush1.bf16.msra.mxu0 %v2398
    %4329 = vmatprep.subr.bf16.mxu0 %v2415
    %4330 = vmatpush1.bf16.msra.mxu0 %v2414
    %4331 = vmatprep.subr.bf16.mxu0 %v2431
    %4332 = vmatpush1.bf16.msra.mxu0 %v2430
    %4333 = vmatprep.subr.bf16.mxu0 %v2447
    %4334 = vmatpush1.bf16.msra.mxu0 %v2446
    %4335 = vmatprep.subr.bf16.mxu0 %v2463
    %4336 = vmatpush1.bf16.msra.mxu0 %v2462
    %4337 = vmatprep.subr.bf16.mxu0 %v2479
    %4338 = vmatpush1.bf16.msra.mxu0 %v2478
    %4339 = vmatprep.subr.bf16.mxu0 %v2495
    %4340 = vmatpush1.bf16.msra.mxu0 %v2494
    %4341 = vmatprep.subr.bf16.mxu0 %v2511
    %4342 = vmatpush1.bf16.msra.mxu0 %v2510
    %4343 = vmatprep.subr.bf16.mxu0 %v2527
    %4344 = vmatpush1.bf16.msra.mxu0 %v2526
    %4345 = vmatprep.subr.bf16.mxu0 %v2543
    %4346 = vmatpush1.bf16.msra.mxu0 %v2542
    %4347 = vmatprep.subr.bf16.mxu0 %v2559
    %4348 = vmatpush1.bf16.msra.mxu0 %v2558
    %4349 = vmatprep.subr.bf16.mxu0 %v2575
    %4350 = vmatpush1.bf16.msra.mxu0 %v2574
    %4351 = vmatprep.subr.bf16.mxu0 %v2591
    %4352 = vmatpush1.bf16.msra.mxu0 %v2590
    %4353 = vmatprep.subr.bf16.mxu0 %v2607
    %4354 = vmatpush1.bf16.msra.mxu0 %v2606
    %4355 = vmatprep.subr.bf16.mxu0 %v2623
    %4356 = vmatpush1.bf16.msra.mxu0 %v2622
    %4357 = vmatprep.mubr.bf16.mxu0 %v1595
    %4358 = vmatmul.mubr.bf16.gmra.mrb[0].mxu0 %v1594
    %v4359 = vpop.f32.mrb[0].mxu0
    %v4360 = vadd.f32 %v4319, %v4359
    %v4361 = vpop.f32.mrb[0].mxu0
    %v4362 = vadd.f32 %v4321, %v4361
    %v4363 = vpop.f32.mrb[0].mxu0
    %v4364 = vpop.f32.mrb[0].mxu0
    %4365 = vdwg.mxu0
    %4366 = vmatprep.subr.bf16.mxu0 %v2639
    %4367 = vmatpush1.bf16.msra.mxu0 %v2638
    %4368 = vmatprep.subr.bf16.mxu0 %v2655
    %4369 = vmatpush1.bf16.msra.mxu0 %v2654
    %4370 = vmatprep.subr.bf16.mxu0 %v2671
    %4371 = vmatpush1.bf16.msra.mxu0 %v2670
    %4372 = vmatprep.subr.bf16.mxu0 %v2687
    %4373 = vmatpush1.bf16.msra.mxu0 %v2686
    %4374 = vmatprep.subr.bf16.mxu0 %v2703
    %4375 = vmatpush1.bf16.msra.mxu0 %v2702
    %4376 = vmatprep.subr.bf16.mxu0 %v2719
    %4377 = vmatpush1.bf16.msra.mxu0 %v2718
    %4378 = vmatprep.subr.bf16.mxu0 %v2735
    %4379 = vmatpush1.bf16.msra.mxu0 %v2734
    %4380 = vmatprep.subr.bf16.mxu0 %v2751
    %4381 = vmatpush1.bf16.msra.mxu0 %v2750
    %4382 = vmatprep.subr.bf16.mxu0 %v2767
    %4383 = vmatpush1.bf16.msra.mxu0 %v2766
    %4384 = vmatprep.subr.bf16.mxu0 %v2783
    %4385 = vmatpush1.bf16.msra.mxu0 %v2782
    %4386 = vmatprep.subr.bf16.mxu0 %v2799
    %4387 = vmatpush1.bf16.msra.mxu0 %v2798
    %4388 = vmatprep.subr.bf16.mxu0 %v2815
    %4389 = vmatpush1.bf16.msra.mxu0 %v2814
    %4390 = vmatprep.subr.bf16.mxu0 %v2831
    %4391 = vmatpush1.bf16.msra.mxu0 %v2830
    %4392 = vmatprep.subr.bf16.mxu0 %v2847
    %4393 = vmatpush1.bf16.msra.mxu0 %v2846
    %4394 = vmatprep.subr.bf16.mxu0 %v2863
    %4395 = vmatpush1.bf16.msra.mxu0 %v2862
    %4396 = vmatprep.subr.bf16.mxu0 %v2879
    %4397 = vmatpush1.bf16.msra.mxu0 %v2878
    %4398 = vmatprep.mubr.bf16.mxu0 %v1597
    %4399 = vmatmul.mubr.bf16.gmra.mrb[0].mxu0 %v1596
    %v4400 = vpop.f32.mrb[0].mxu0
    %v4401 = vadd.f32 %v4360, %v4400
    %v4402 = vpop.f32.mrb[0].mxu0
    %v4403 = vadd.f32 %v4362, %v4402
    %v4404 = vpop.f32.mrb[0].mxu0
    %v4405 = vpop.f32.mrb[0].mxu0
    %4406 = vdwg.mxu0
    %4407 = vmatprep.subr.bf16.mxu0 %v2895
    %4408 = vmatpush1.bf16.msra.mxu0 %v2894
    %4409 = vmatprep.subr.bf16.mxu0 %v2911
    %4410 = vmatpush1.bf16.msra.mxu0 %v2910
    %4411 = vmatprep.subr.bf16.mxu0 %v2927
    %4412 = vmatpush1.bf16.msra.mxu0 %v2926
    %4413 = vmatprep.subr.bf16.mxu0 %v2943
    %4414 = vmatpush1.bf16.msra.mxu0 %v2942
    %4415 = vmatprep.subr.bf16.mxu0 %v2959
    %4416 = vmatpush1.bf16.msra.mxu0 %v2958
    %4417 = vmatprep.subr.bf16.mxu0 %v2975
    %4418 = vmatpush1.bf16.msra.mxu0 %v2974
    %4419 = vmatprep.subr.bf16.mxu0 %v2991
    %4420 = vmatpush1.bf16.msra.mxu0 %v2990
    %4421 = vmatprep.subr.bf16.mxu0 %v3007
    %4422 = vmatpush1.bf16.msra.mxu0 %v3006
    %4423 = vmatprep.subr.bf16.mxu0 %v3023
    %4424 = vmatpush1.bf16.msra.mxu0 %v3022
    %4425 = vmatprep.subr.bf16.mxu0 %v3039
    %4426 = vmatpush1.bf16.msra.mxu0 %v3038
    %4427 = vmatprep.subr.bf16.mxu0 %v3055
    %4428 = vmatpush1.bf16.msra.mxu0 %v3054
    %4429 = vmatprep.subr.bf16.mxu0 %v3071
    %4430 = vmatpush1.bf16.msra.mxu0 %v3070
    %4431 = vmatprep.subr.bf16.mxu0 %v3087
    %4432 = vmatpush1.bf16.msra.mxu0 %v3086
    %4433 = vmatprep.subr.bf16.mxu0 %v3103
    %4434 = vmatpush1.bf16.msra.mxu0 %v3102
    %4435 = vmatprep.subr.bf16.mxu0 %v3119
    %4436 = vmatpush1.bf16.msra.mxu0 %v3118
    %4437 = vmatprep.subr.bf16.mxu0 %v3135
    %4438 = vmatpush1.bf16.msra.mxu0 %v3134
    %4439 = vmatprep.mubr.bf16.mxu0 %v1599
    %4440 = vmatmul.mubr.bf16.gmra.mrb[0].mxu0 %v1598
    %v4441 = vpop.f32.mrb[0].mxu0
    %v4442 = vadd.f32 %v4401, %v4441
    %v4443 = vpop.f32.mrb[0].mxu0
    %v4444 = vadd.f32 %v4403, %v4443
    %v4445 = vpop.f32.mrb[0].mxu0
    %v4446 = vpop.f32.mrb[0].mxu0
    %4447 = vdwg.mxu0
    %v4448 = vld [vmem:[#allocation23] sm:$0xff]
    %v4449 = vld [vmem:[#allocation23 + $0x8] sm:$0xff]
    %v4452 = vlaneseq
    %v4453 = vshrl.u32 %v4452, 7
    %v4454 = vsub.s32 0, %v4453
    %v4455 = vrot.slane %v4448, %v4454
    %v4456 = vlaneseq
    %v4457 = vshrl.u32 %v4456, 7
    %v4458 = vsub.s32 1, %v4457
    %v4459 = vrot.slane %v4448, %v4458
    %v4460 = vlaneseq
    %v4461 = vshrl.u32 %v4460, 7
    %v4462 = vsub.s32 2, %v4461
    %v4463 = vrot.slane %v4448, %v4462
    %v4464 = vlaneseq
    %v4465 = vshrl.u32 %v4464, 7
    %v4466 = vsub.s32 3, %v4465
    %v4467 = vrot.slane %v4448, %v4466
    %v4468 = vlaneseq
    %v4469 = vshrl.u32 %v4468, 7
    %v4470 = vsub.s32 4, %v4469
    %v4471 = vrot.slane %v4448, %v4470
    %v4472 = vlaneseq
    %v4473 = vshrl.u32 %v4472, 7
    %v4474 = vsub.s32 5, %v4473
    %v4475 = vrot.slane %v4448, %v4474
    %v4476 = vlaneseq
    %v4477 = vshrl.u32 %v4476, 7
    %v4478 = vsub.s32 6, %v4477
    %v4479 = vrot.slane %v4448, %v4478
    %v4480 = vlaneseq
    %v4481 = vshrl.u32 %v4480, 7
    %v4482 = vsub.s32 7, %v4481
    %v4483 = vrot.slane %v4448, %v4482
    %v4484 = vlaneseq
    %v4485 = vshrl.u32 %v4484, 7
    %v4486 = vsub.s32 0, %v4485
    %v4487 = vrot.slane %v4449, %v4486
    %v4488 = vlaneseq
    %v4489 = vshrl.u32 %v4488, 7
    %v4490 = vsub.s32 1, %v4489
    %v4491 = vrot.slane %v4449, %v4490
    %v4492 = vlaneseq
    %v4493 = vshrl.u32 %v4492, 7
    %v4494 = vsub.s32 2, %v4493
    %v4495 = vrot.slane %v4449, %v4494
    %v4496 = vlaneseq
    %v4497 = vshrl.u32 %v4496, 7
    %v4498 = vsub.s32 3, %v4497
    %v4499 = vrot.slane %v4449, %v4498
    %v4500 = vlaneseq
    %v4501 = vshrl.u32 %v4500, 7
    %v4502 = vsub.s32 4, %v4501
    %v4503 = vrot.slane %v4449, %v4502
    %v4504 = vlaneseq
    %v4505 = vshrl.u32 %v4504, 7
    %v4506 = vsub.s32 5, %v4505
    %v4507 = vrot.slane %v4449, %v4506
    %v4508 = vlaneseq
    %v4509 = vshrl.u32 %v4508, 7
    %v4510 = vsub.s32 6, %v4509
    %v4511 = vrot.slane %v4449, %v4510
    %v4512 = vlaneseq
    %v4513 = vshrl.u32 %v4512, 7
    %v4514 = vsub.s32 7, %v4513
    %v4515 = vrot.slane %v4449, %v4514
    %v4532 = vmul.f32 %v3294, %v4455
    %v4533 = vmul.f32 %v3296, %v4459
    %v4534 = vmul.f32 %v3458, %v4463
    %v4535 = vmul.f32 %v3460, %v4467
    %v4536 = vmul.f32 %v3622, %v4471
    %v4537 = vmul.f32 %v3624, %v4475
    %v4538 = vmul.f32 %v3786, %v4479
    %v4539 = vmul.f32 %v3788, %v4483
    %v4540 = vmul.f32 %v3950, %v4487
    %v4541 = vmul.f32 %v3952, %v4491
    %v4542 = vmul.f32 %v4114, %v4495
    %v4543 = vmul.f32 %v4116, %v4499
    %v4544 = vmul.f32 %v4278, %v4503
    %v4545 = vmul.f32 %v4280, %v4507
    %v4546 = vmul.f32 %v4442, %v4511
    %v4547 = vmul.f32 %v4444, %v4515
    %v4548 = vld [vmem:[#allocation25] sm:$0xff]
    %v4549 = vld [vmem:[#allocation25 + $0x8] sm:$0xff]
    %v4552 = vlaneseq
    %v4553 = vshrl.u32 %v4552, 7
    %v4554 = vsub.s32 0, %v4553
    %v4555 = vrot.slane %v4548, %v4554
    %v4556 = vlaneseq
    %v4557 = vshrl.u32 %v4556, 7
    %v4558 = vsub.s32 1, %v4557
    %v4559 = vrot.slane %v4548, %v4558
    %v4560 = vlaneseq
    %v4561 = vshrl.u32 %v4560, 7
    %v4562 = vsub.s32 2, %v4561
    %v4563 = vrot.slane %v4548, %v4562
    %v4564 = vlaneseq
    %v4565 = vshrl.u32 %v4564, 7
    %v4566 = vsub.s32 3, %v4565
    %v4567 = vrot.slane %v4548, %v4566
    %v4568 = vlaneseq
    %v4569 = vshrl.u32 %v4568, 7
    %v4570 = vsub.s32 4, %v4569
    %v4571 = vrot.slane %v4548, %v4570
    %v4572 = vlaneseq
    %v4573 = vshrl.u32 %v4572, 7
    %v4574 = vsub.s32 5, %v4573
    %v4575 = vrot.slane %v4548, %v4574
    %v4576 = vlaneseq
    %v4577 = vshrl.u32 %v4576, 7
    %v4578 = vsub.s32 6, %v4577
    %v4579 = vrot.slane %v4548, %v4578
    %v4580 = vlaneseq
    %v4581 = vshrl.u32 %v4580, 7
    %v4582 = vsub.s32 7, %v4581
    %v4583 = vrot.slane %v4548, %v4582
    %v4584 = vlaneseq
    %v4585 = vshrl.u32 %v4584, 7
    %v4586 = vsub.s32 0, %v4585
    %v4587 = vrot.slane %v4549, %v4586
    %v4588 = vlaneseq
    %v4589 = vshrl.u32 %v4588, 7
    %v4590 = vsub.s32 1, %v4589
    %v4591 = vrot.slane %v4549, %v4590
    %v4592 = vlaneseq
    %v4593 = vshrl.u32 %v4592, 7
    %v4594 = vsub.s32 2, %v4593
    %v4595 = vrot.slane %v4549, %v4594
    %v4596 = vlaneseq
    %v4597 = vshrl.u32 %v4596, 7
    %v4598 = vsub.s32 3, %v4597
    %v4599 = vrot.slane %v4549, %v4598
    %v4600 = vlaneseq
    %v4601 = vshrl.u32 %v4600, 7
    %v4602 = vsub.s32 4, %v4601
    %v4603 = vrot.slane %v4549, %v4602
    %v4604 = vlaneseq
    %v4605 = vshrl.u32 %v4604, 7
    %v4606 = vsub.s32 5, %v4605
    %v4607 = vrot.slane %v4549, %v4606
    %v4608 = vlaneseq
    %v4609 = vshrl.u32 %v4608, 7
    %v4610 = vsub.s32 6, %v4609
    %v4611 = vrot.slane %v4549, %v4610
    %v4612 = vlaneseq
    %v4613 = vshrl.u32 %v4612, 7
    %v4614 = vsub.s32 7, %v4613
    %v4615 = vrot.slane %v4549, %v4614
    %v4632 = vadd.f32 %v4532, %v4555
    %v4633 = vadd.f32 %v4533, %v4559
    %v4634 = vadd.f32 %v4534, %v4563
    %v4635 = vadd.f32 %v4535, %v4567
    %v4636 = vadd.f32 %v4536, %v4571
    %v4637 = vadd.f32 %v4537, %v4575
    %v4638 = vadd.f32 %v4538, %v4579
    %v4639 = vadd.f32 %v4539, %v4583
    %v4640 = vadd.f32 %v4540, %v4587
    %v4641 = vadd.f32 %v4541, %v4591
    %v4642 = vadd.f32 %v4542, %v4595
    %v4643 = vadd.f32 %v4543, %v4599
    %v4644 = vadd.f32 %v4544, %v4603
    %v4645 = vadd.f32 %v4545, %v4607
    %v4646 = vadd.f32 %v4546, %v4611
    %v4647 = vadd.f32 %v4547, %v4615
    %v4648 = vmax.f32 %v4632, 0.0
    %v4649 = vmax.f32 %v4633, 0.0
    %v4650 = vmax.f32 %v4634, 0.0
    %v4651 = vmax.f32 %v4635, 0.0
    %v4652 = vmax.f32 %v4636, 0.0
    %v4653 = vmax.f32 %v4637, 0.0
    %v4654 = vmax.f32 %v4638, 0.0
    %v4655 = vmax.f32 %v4639, 0.0
    %v4656 = vmax.f32 %v4640, 0.0
    %v4657 = vmax.f32 %v4641, 0.0
    %v4658 = vmax.f32 %v4642, 0.0
    %v4659 = vmax.f32 %v4643, 0.0
    %v4660 = vmax.f32 %v4644, 0.0
    %v4661 = vmax.f32 %v4645, 0.0
    %v4662 = vmax.f32 %v4646, 0.0
    %v4663 = vmax.f32 %v4647, 0.0
    %v4664 = vpack.c.bf16 %v4648, %v4648
    %v4665 = vpack.c.bf16 %v4649, %v4649
    %v4666 = vpack.c.bf16 %v4650, %v4650
    %v4667 = vpack.c.bf16 %v4651, %v4651
    %v4668 = vpack.c.bf16 %v4652, %v4652
    %v4669 = vpack.c.bf16 %v4653, %v4653
    %v4670 = vpack.c.bf16 %v4654, %v4654
    %v4671 = vpack.c.bf16 %v4655, %v4655
    %v4672 = vpack.c.bf16 %v4656, %v4656
    %v4673 = vpack.c.bf16 %v4657, %v4657
    %v4674 = vpack.c.bf16 %v4658, %v4658
    %v4675 = vpack.c.bf16 %v4659, %v4659
    %v4676 = vpack.c.bf16 %v4660, %v4660
    %v4677 = vpack.c.bf16 %v4661, %v4661
    %v4678 = vpack.c.bf16 %v4662, %v4662
    %v4679 = vpack.c.bf16 %v4663, %v4663
    %v4680 = vld [vmem:[#allocation26] sm:$0xff]
    %v4681 = vld [vmem:[#allocation26 + $0x8] sm:$0xff]
    %v4682 = vld [vmem:[#allocation26 + $0x10] sm:$0xff]
    %v4683 = vld [vmem:[#allocation26 + $0x18] sm:$0xff]
    %v4684 = vld [vmem:[#allocation26 + $0x20] sm:$0xff]
    %v4685 = vld [vmem:[#allocation26 + $0x28] sm:$0xff]
    %v4686 = vld [vmem:[#allocation26 + $0x30] sm:$0xff]
    %v4687 = vld [vmem:[#allocation26 + $0x38] sm:$0xff]
    %v4688 = vld [vmem:[#allocation26 + $0x40] sm:$0xff]
    %v4689 = vld [vmem:[#allocation26 + $0x48] sm:$0xff]
    %v4690 = vld [vmem:[#allocation26 + $0x50] sm:$0xff]
    %v4691 = vld [vmem:[#allocation26 + $0x58] sm:$0xff]
    %v4692 = vld [vmem:[#allocation26 + $0x60] sm:$0xff]
    %v4693 = vld [vmem:[#allocation26 + $0x68] sm:$0xff]
    %v4694 = vld [vmem:[#allocation26 + $0x70] sm:$0xff]
    %v4695 = vld [vmem:[#allocation26 + $0x78] sm:$0xff]
    %v4696 = vld [vmem:[#allocation26 + $0x80] sm:$0xff]
    %v4697 = vld [vmem:[#allocation26 + $0x88] sm:$0xff]
    %v4698 = vld [vmem:[#allocation26 + $0x90] sm:$0xff]
    %v4699 = vld [vmem:[#allocation26 + $0x98] sm:$0xff]
    %v4700 = vld [vmem:[#allocation26 + $0xa0] sm:$0xff]
    %v4701 = vld [vmem:[#allocation26 + $0xa8] sm:$0xff]
    %v4702 = vld [vmem:[#allocation26 + $0xb0] sm:$0xff]
    %v4703 = vld [vmem:[#allocation26 + $0xb8] sm:$0xff]
    %v4704 = vld [vmem:[#allocation26 + $0xc0] sm:$0xff]
    %v4705 = vld [vmem:[#allocation26 + $0xc8] sm:$0xff]
    %v4706 = vld [vmem:[#allocation26 + $0xd0] sm:$0xff]
    %v4707 = vld [vmem:[#allocation26 + $0xd8] sm:$0xff]
    %v4708 = vld [vmem:[#allocation26 + $0xe0] sm:$0xff]
    %v4709 = vld [vmem:[#allocation26 + $0xe8] sm:$0xff]
    %v4710 = vld [vmem:[#allocation26 + $0xf0] sm:$0xff]
    %v4711 = vld [vmem:[#allocation26 + $0xf8] sm:$0xff]
    %v4712 = vld [vmem:[#allocation26 + $0x100] sm:$0xff]
    %v4713 = vld [vmem:[#allocation26 + $0x108] sm:$0xff]
    %v4714 = vld [vmem:[#allocation26 + $0x110] sm:$0xff]
    %v4715 = vld [vmem:[#allocation26 + $0x118] sm:$0xff]
    %v4716 = vld [vmem:[#allocation26 + $0x120] sm:$0xff]
    %v4717 = vld [vmem:[#allocation26 + $0x128] sm:$0xff]
    %v4718 = vld [vmem:[#allocation26 + $0x130] sm:$0xff]
    %v4719 = vld [vmem:[#allocation26 + $0x138] sm:$0xff]
    %v4720 = vld [vmem:[#allocation26 + $0x140] sm:$0xff]
    %v4721 = vld [vmem:[#allocation26 + $0x148] sm:$0xff]
    %v4722 = vld [vmem:[#allocation26 + $0x150] sm:$0xff]
    %v4723 = vld [vmem:[#allocation26 + $0x158] sm:$0xff]
    %v4724 = vld [vmem:[#allocation26 + $0x160] sm:$0xff]
    %v4725 = vld [vmem:[#allocation26 + $0x168] sm:$0xff]
    %v4726 = vld [vmem:[#allocation26 + $0x170] sm:$0xff]
    %v4727 = vld [vmem:[#allocation26 + $0x178] sm:$0xff]
    %v4728 = vld [vmem:[#allocation26 + $0x180] sm:$0xff]
    %v4729 = vld [vmem:[#allocation26 + $0x188] sm:$0xff]
    %v4730 = vld [vmem:[#allocation26 + $0x190] sm:$0xff]
    %v4731 = vld [vmem:[#allocation26 + $0x198] sm:$0xff]
    %v4732 = vld [vmem:[#allocation26 + $0x1a0] sm:$0xff]
    %v4733 = vld [vmem:[#allocation26 + $0x1a8] sm:$0xff]
    %v4734 = vld [vmem:[#allocation26 + $0x1b0] sm:$0xff]
    %v4735 = vld [vmem:[#allocation26 + $0x1b8] sm:$0xff]
    %v4736 = vld [vmem:[#allocation26 + $0x1c0] sm:$0xff]
    %v4737 = vld [vmem:[#allocation26 + $0x1c8] sm:$0xff]
    %v4738 = vld [vmem:[#allocation26 + $0x1d0] sm:$0xff]
    %v4739 = vld [vmem:[#allocation26 + $0x1d8] sm:$0xff]
    %v4740 = vld [vmem:[#allocation26 + $0x1e0] sm:$0xff]
    %v4741 = vld [vmem:[#allocation26 + $0x1e8] sm:$0xff]
    %v4742 = vld [vmem:[#allocation26 + $0x1f0] sm:$0xff]
    %v4743 = vld [vmem:[#allocation26 + $0x1f8] sm:$0xff]
    %v4744 = vunpack.c.l.s8.bf16 %v4680
    %v4745 = vunpack.c.h.s8.bf16 %v4680
    %v4746 = vunpack.c.l.s8.bf16 %v4681
    %v4747 = vunpack.c.h.s8.bf16 %v4681
    %v4748 = vunpack.c.l.s8.bf16 %v4682
    %v4749 = vunpack.c.h.s8.bf16 %v4682
    %v4750 = vunpack.c.l.s8.bf16 %v4683
    %v4751 = vunpack.c.h.s8.bf16 %v4683
    %v4752 = vunpack.c.l.s8.bf16 %v4684
    %v4753 = vunpack.c.h.s8.bf16 %v4684
    %v4754 = vunpack.c.l.s8.bf16 %v4685
    %v4755 = vunpack.c.h.s8.bf16 %v4685
    %v4756 = vunpack.c.l.s8.bf16 %v4686
    %v4757 = vunpack.c.h.s8.bf16 %v4686
    %v4758 = vunpack.c.l.s8.bf16 %v4687
    %v4759 = vunpack.c.h.s8.bf16 %v4687
    %v4760 = vunpack.c.l.s8.bf16 %v4688
    %v4761 = vunpack.c.h.s8.bf16 %v4688
    %v4762 = vunpack.c.l.s8.bf16 %v4689
    %v4763 = vunpack.c.h.s8.bf16 %v4689
    %v4764 = vunpack.c.l.s8.bf16 %v4690
    %v4765 = vunpack.c.h.s8.bf16 %v4690
    %v4766 = vunpack.c.l.s8.bf16 %v4691
    %v4767 = vunpack.c.h.s8.bf16 %v4691
    %v4768 = vunpack.c.l.s8.bf16 %v4692
    %v4769 = vunpack.c.h.s8.bf16 %v4692
    %v4770 = vunpack.c.l.s8.bf16 %v4693
    %v4771 = vunpack.c.h.s8.bf16 %v4693
    %v4772 = vunpack.c.l.s8.bf16 %v4694
    %v4773 = vunpack.c.h.s8.bf16 %v4694
    %v4774 = vunpack.c.l.s8.bf16 %v4695
    %v4775 = vunpack.c.h.s8.bf16 %v4695
    %v4776 = vunpack.c.l.s8.bf16 %v4696
    %v4777 = vunpack.c.h.s8.bf16 %v4696
    %v4778 = vunpack.c.l.s8.bf16 %v4697
    %v4779 = vunpack.c.h.s8.bf16 %v4697
    %v4780 = vunpack.c.l.s8.bf16 %v4698
    %v4781 = vunpack.c.h.s8.bf16 %v4698
    %v4782 = vunpack.c.l.s8.bf16 %v4699
    %v4783 = vunpack.c.h.s8.bf16 %v4699
    %v4784 = vunpack.c.l.s8.bf16 %v4700
    %v4785 = vunpack.c.h.s8.bf16 %v4700
    %v4786 = vunpack.c.l.s8.bf16 %v4701
    %v4787 = vunpack.c.h.s8.bf16 %v4701
    %v4788 = vunpack.c.l.s8.bf16 %v4702
    %v4789 = vunpack.c.h.s8.bf16 %v4702
    %v4790 = vunpack.c.l.s8.bf16 %v4703
    %v4791 = vunpack.c.h.s8.bf16 %v4703
    %v4792 = vunpack.c.l.s8.bf16 %v4704
    %v4793 = vunpack.c.h.s8.bf16 %v4704
    %v4794 = vunpack.c.l.s8.bf16 %v4705
    %v4795 = vunpack.c.h.s8.bf16 %v4705
    %v4796 = vunpack.c.l.s8.bf16 %v4706
    %v4797 = vunpack.c.h.s8.bf16 %v4706
    %v4798 = vunpack.c.l.s8.bf16 %v4707
    %v4799 = vunpack.c.h.s8.bf16 %v4707
    %v4800 = vunpack.c.l.s8.bf16 %v4708
    %v4801 = vunpack.c.h.s8.bf16 %v4708
    %v4802 = vunpack.c.l.s8.bf16 %v4709
    %v4803 = vunpack.c.h.s8.bf16 %v4709
    %v4804 = vunpack.c.l.s8.bf16 %v4710
    %v4805 = vunpack.c.h.s8.bf16 %v4710
    %v4806 = vunpack.c.l.s8.bf16 %v4711
    %v4807 = vunpack.c.h.s8.bf16 %v4711
    %v4808 = vunpack.c.l.s8.bf16 %v4712
    %v4809 = vunpack.c.h.s8.bf16 %v4712
    %v4810 = vunpack.c.l.s8.bf16 %v4713
    %v4811 = vunpack.c.h.s8.bf16 %v4713
    %v4812 = vunpack.c.l.s8.bf16 %v4714
    %v4813 = vunpack.c.h.s8.bf16 %v4714
    %v4814 = vunpack.c.l.s8.bf16 %v4715
    %v4815 = vunpack.c.h.s8.bf16 %v4715
    %v4816 = vunpack.c.l.s8.bf16 %v4716
    %v4817 = vunpack.c.h.s8.bf16 %v4716
    %v4818 = vunpack.c.l.s8.bf16 %v4717
    %v4819 = vunpack.c.h.s8.bf16 %v4717
    %v4820 = vunpack.c.l.s8.bf16 %v4718
    %v4821 = vunpack.c.h.s8.bf16 %v4718
    %v4822 = vunpack.c.l.s8.bf16 %v4719
    %v4823 = vunpack.c.h.s8.bf16 %v4719
    %v4824 = vunpack.c.l.s8.bf16 %v4720
    %v4825 = vunpack.c.h.s8.bf16 %v4720
    %v4826 = vunpack.c.l.s8.bf16 %v4721
    %v4827 = vunpack.c.h.s8.bf16 %v4721
    %v4828 = vunpack.c.l.s8.bf16 %v4722
    %v4829 = vunpack.c.h.s8.bf16 %v4722
    %v4830 = vunpack.c.l.s8.bf16 %v4723
    %v4831 = vunpack.c.h.s8.bf16 %v4723
    %v4832 = vunpack.c.l.s8.bf16 %v4724
    %v4833 = vunpack.c.h.s8.bf16 %v4724
    %v4834 = vunpack.c.l.s8.bf16 %v4725
    %v4835 = vunpack.c.h.s8.bf16 %v4725
    %v4836 = vunpack.c.l.s8.bf16 %v4726
    %v4837 = vunpack.c.h.s8.bf16 %v4726
    %v4838 = vunpack.c.l.s8.bf16 %v4727
    %v4839 = vunpack.c.h.s8.bf16 %v4727
    %v4840 = vunpack.c.l.s8.bf16 %v4728
    %v4841 = vunpack.c.h.s8.bf16 %v4728
    %v4842 = vunpack.c.l.s8.bf16 %v4729
    %v4843 = vunpack.c.h.s8.bf16 %v4729
    %v4844 = vunpack.c.l.s8.bf16 %v4730
    %v4845 = vunpack.c.h.s8.bf16 %v4730
    %v4846 = vunpack.c.l.s8.bf16 %v4731
    %v4847 = vunpack.c.h.s8.bf16 %v4731
    %v4848 = vunpack.c.l.s8.bf16 %v4732
    %v4849 = vunpack.c.h.s8.bf16 %v4732
    %v4850 = vunpack.c.l.s8.bf16 %v4733
    %v4851 = vunpack.c.h.s8.bf16 %v4733
    %v4852 = vunpack.c.l.s8.bf16 %v4734
    %v4853 = vunpack.c.h.s8.bf16 %v4734
    %v4854 = vunpack.c.l.s8.bf16 %v4735
    %v4855 = vunpack.c.h.s8.bf16 %v4735
    %v4856 = vunpack.c.l.s8.bf16 %v4736
    %v4857 = vunpack.c.h.s8.bf16 %v4736
    %v4858 = vunpack.c.l.s8.bf16 %v4737
    %v4859 = vunpack.c.h.s8.bf16 %v4737
    %v4860 = vunpack.c.l.s8.bf16 %v4738
    %v4861 = vunpack.c.h.s8.bf16 %v4738
    %v4862 = vunpack.c.l.s8.bf16 %v4739
    %v4863 = vunpack.c.h.s8.bf16 %v4739
    %v4864 = vunpack.c.l.s8.bf16 %v4740
    %v4865 = vunpack.c.h.s8.bf16 %v4740
    %v4866 = vunpack.c.l.s8.bf16 %v4741
    %v4867 = vunpack.c.h.s8.bf16 %v4741
    %v4868 = vunpack.c.l.s8.bf16 %v4742
    %v4869 = vunpack.c.h.s8.bf16 %v4742
    %v4870 = vunpack.c.l.s8.bf16 %v4743
    %v4871 = vunpack.c.h.s8.bf16 %v4743
    %4872 = vmatprep.subr.bf16.mxu0 0
    %4873 = vmatpush1.bf16.msra.mxu0 %v4744
    %4874 = vmatprep.subr.bf16.mxu0 0
    %4875 = vmatpush1.bf16.msra.mxu0 %v4745
    %4876 = vmatprep.subr.bf16.mxu0 0
    %4877 = vmatpush1.bf16.msra.mxu0 %v4746
    %4878 = vmatprep.subr.bf16.mxu0 0
    %4879 = vmatpush1.bf16.msra.mxu0 %v4747
    %4880 = vmatprep.subr.bf16.mxu0 0
    %4881 = vmatpush1.bf16.msra.mxu0 %v4748
    %4882 = vmatprep.subr.bf16.mxu0 0
    %4883 = vmatpush1.bf16.msra.mxu0 %v4749
    %4884 = vmatprep.subr.bf16.mxu0 0
    %4885 = vmatpush1.bf16.msra.mxu0 %v4750
    %4886 = vmatprep.subr.bf16.mxu0 0
    %4887 = vmatpush1.bf16.msra.mxu0 %v4751
    %4888 = vmatprep.subr.bf16.mxu0 0
    %4889 = vmatpush1.bf16.msra.mxu0 %v4752
    %4890 = vmatprep.subr.bf16.mxu0 0
    %4891 = vmatpush1.bf16.msra.mxu0 %v4753
    %4892 = vmatprep.subr.bf16.mxu0 0
    %4893 = vmatpush1.bf16.msra.mxu0 %v4754
    %4894 = vmatprep.subr.bf16.mxu0 0
    %4895 = vmatpush1.bf16.msra.mxu0 %v4755
    %4896 = vmatprep.subr.bf16.mxu0 0
    %4897 = vmatpush1.bf16.msra.mxu0 %v4756
    %4898 = vmatprep.subr.bf16.mxu0 0
    %4899 = vmatpush1.bf16.msra.mxu0 %v4757
    %4900 = vmatprep.subr.bf16.mxu0 0
    %4901 = vmatpush1.bf16.msra.mxu0 %v4758
    %4902 = vmatprep.subr.bf16.mxu0 0
    %4903 = vmatpush1.bf16.msra.mxu0 %v4759
    %4904 = vmatprep.mubr.bf16.mxu0 %v4665
    %4905 = vmatmul.mubr.bf16.gmra.mrb[0].mxu0 %v4664
    %v4906 = vpop.f32.mrb[0].mxu0
    %v4907 = vadd.f32 0.0, %v4906
    %v4908 = vpop.f32.mrb[0].mxu0
    %v4909 = vpop.f32.mrb[0].mxu0
    %v4910 = vpop.f32.mrb[0].mxu0
    %4911 = vdwg.mxu0
    %4912 = vmatprep.subr.bf16.mxu0 0
    %4913 = vmatpush1.bf16.msra.mxu0 %v4760
    %4914 = vmatprep.subr.bf16.mxu0 0
    %4915 = vmatpush1.bf16.msra.mxu0 %v4761
    %4916 = vmatprep.subr.bf16.mxu0 0
    %4917 = vmatpush1.bf16.msra.mxu0 %v4762
    %4918 = vmatprep.subr.bf16.mxu0 0
    %4919 = vmatpush1.bf16.msra.mxu0 %v4763
    %4920 = vmatprep.subr.bf16.mxu0 0
    %4921 = vmatpush1.bf16.msra.mxu0 %v4764
    %4922 = vmatprep.subr.bf16.mxu0 0
    %4923 = vmatpush1.bf16.msra.mxu0 %v4765
    %4924 = vmatprep.subr.bf16.mxu0 0
    %4925 = vmatpush1.bf16.msra.mxu0 %v4766
    %4926 = vmatprep.subr.bf16.mxu0 0
    %4927 = vmatpush1.bf16.msra.mxu0 %v4767
    %4928 = vmatprep.subr.bf16.mxu0 0
    %4929 = vmatpush1.bf16.msra.mxu0 %v4768
    %4930 = vmatprep.subr.bf16.mxu0 0
    %4931 = vmatpush1.bf16.msra.mxu0 %v4769
    %4932 = vmatprep.subr.bf16.mxu0 0
    %4933 = vmatpush1.bf16.msra.mxu0 %v4770
    %4934 = vmatprep.subr.bf16.mxu0 0
    %4935 = vmatpush1.bf16.msra.mxu0 %v4771
    %4936 = vmatprep.subr.bf16.mxu0 0
    %4937 = vmatpush1.bf16.msra.mxu0 %v4772
    %4938 = vmatprep.subr.bf16.mxu0 0
    %4939 = vmatpush1.bf16.msra.mxu0 %v4773
    %4940 = vmatprep.subr.bf16.mxu0 0
    %4941 = vmatpush1.bf16.msra.mxu0 %v4774
    %4942 = vmatprep.subr.bf16.mxu0 0
    %4943 = vmatpush1.bf16.msra.mxu0 %v4775
    %4944 = vmatprep.mubr.bf16.mxu0 %v4667
    %4945 = vmatmul.mubr.bf16.gmra.mrb[0].mxu0 %v4666
    %v4946 = vpop.f32.mrb[0].mxu0
    %v4947 = vadd.f32 %v4907, %v4946
    %v4948 = vpop.f32.mrb[0].mxu0
    %v4949 = vpop.f32.mrb[0].mxu0
    %v4950 = vpop.f32.mrb[0].mxu0
    %4951 = vdwg.mxu0
    %4952 = vmatprep.subr.bf16.mxu0 0
    %4953 = vmatpush1.bf16.msra.mxu0 %v4776
    %4954 = vmatprep.subr.bf16.mxu0 0
    %4955 = vmatpush1.bf16.msra.mxu0 %v4777
    %4956 = vmatprep.subr.bf16.mxu0 0
    %4957 = vmatpush1.bf16.msra.mxu0 %v4778
    %4958 = vmatprep.subr.bf16.mxu0 0
    %4959 = vmatpush1.bf16.msra.mxu0 %v4779
    %4960 = vmatprep.subr.bf16.mxu0 0
    %4961 = vmatpush1.bf16.msra.mxu0 %v4780
    %4962 = vmatprep.subr.bf16.mxu0 0
    %4963 = vmatpush1.bf16.msra.mxu0 %v4781
    %4964 = vmatprep.subr.bf16.mxu0 0
    %4965 = vmatpush1.bf16.msra.mxu0 %v4782
    %4966 = vmatprep.subr.bf16.mxu0 0
    %4967 = vmatpush1.bf16.msra.mxu0 %v4783
    %4968 = vmatprep.subr.bf16.mxu0 0
    %4969 = vmatpush1.bf16.msra.mxu0 %v4784
    %4970 = vmatprep.subr.bf16.mxu0 0
    %4971 = vmatpush1.bf16.msra.mxu0 %v4785
    %4972 = vmatprep.subr.bf16.mxu0 0
    %4973 = vmatpush1.bf16.msra.mxu0 %v4786
    %4974 = vmatprep.subr.bf16.mxu0 0
    %4975 = vmatpush1.bf16.msra.mxu0 %v4787
    %4976 = vmatprep.subr.bf16.mxu0 0
    %4977 = vmatpush1.bf16.msra.mxu0 %v4788
    %4978 = vmatprep.subr.bf16.mxu0 0
    %4979 = vmatpush1.bf16.msra.mxu0 %v4789
    %4980 = vmatprep.subr.bf16.mxu0 0
    %4981 = vmatpush1.bf16.msra.mxu0 %v4790
    %4982 = vmatprep.subr.bf16.mxu0 0
    %4983 = vmatpush1.bf16.msra.mxu0 %v4791
    %4984 = vmatprep.mubr.bf16.mxu0 %v4669
    %4985 = vmatmul.mubr.bf16.gmra.mrb[0].mxu0 %v4668
    %v4986 = vpop.f32.mrb[0].mxu0
    %v4987 = vadd.f32 %v4947, %v4986
    %v4988 = vpop.f32.mrb[0].mxu0
    %v4989 = vpop.f32.mrb[0].mxu0
    %v4990 = vpop.f32.mrb[0].mxu0
    %4991 = vdwg.mxu0
    %4992 = vmatprep.subr.bf16.mxu0 0
    %4993 = vmatpush1.bf16.msra.mxu0 %v4792
    %4994 = vmatprep.subr.bf16.mxu0 0
    %4995 = vmatpush1.bf16.msra.mxu0 %v4793
    %4996 = vmatprep.subr.bf16.mxu0 0
    %4997 = vmatpush1.bf16.msra.mxu0 %v4794
    %4998 = vmatprep.subr.bf16.mxu0 0
    %4999 = vmatpush1.bf16.msra.mxu0 %v4795
    %5000 = vmatprep.subr.bf16.mxu0 0
    %5001 = vmatpush1.bf16.msra.mxu0 %v4796
    %5002 = vmatprep.subr.bf16.mxu0 0
    %5003 = vmatpush1.bf16.msra.mxu0 %v4797
    %5004 = vmatprep.subr.bf16.mxu0 0
    %5005 = vmatpush1.bf16.msra.mxu0 %v4798
    %5006 = vmatprep.subr.bf16.mxu0 0
    %5007 = vmatpush1.bf16.msra.mxu0 %v4799
    %5008 = vmatprep.subr.bf16.mxu0 0
    %5009 = vmatpush1.bf16.msra.mxu0 %v4800
    %5010 = vmatprep.subr.bf16.mxu0 0
    %5011 = vmatpush1.bf16.msra.mxu0 %v4801
    %5012 = vmatprep.subr.bf16.mxu0 0
    %5013 = vmatpush1.bf16.msra.mxu0 %v4802
    %5014 = vmatprep.subr.bf16.mxu0 0
    %5015 = vmatpush1.bf16.msra.mxu0 %v4803
    %5016 = vmatprep.subr.bf16.mxu0 0
    %5017 = vmatpush1.bf16.msra.mxu0 %v4804
    %5018 = vmatprep.subr.bf16.mxu0 0
    %5019 = vmatpush1.bf16.msra.mxu0 %v4805
    %5020 = vmatprep.subr.bf16.mxu0 0
    %5021 = vmatpush1.bf16.msra.mxu0 %v4806
    %5022 = vmatprep.subr.bf16.mxu0 0
    %5023 = vmatpush1.bf16.msra.mxu0 %v4807
    %5024 = vmatprep.mubr.bf16.mxu0 %v4671
    %5025 = vmatmul.mubr.bf16.gmra.mrb[0].mxu0 %v4670
    %v5026 = vpop.f32.mrb[0].mxu0
    %v5027 = vadd.f32 %v4987, %v5026
    %v5028 = vpop.f32.mrb[0].mxu0
    %v5029 = vpop.f32.mrb[0].mxu0
    %v5030 = vpop.f32.mrb[0].mxu0
    %5031 = vdwg.mxu0
    %5032 = vmatprep.subr.bf16.mxu0 0
    %5033 = vmatpush1.bf16.msra.mxu0 %v4808
    %5034 = vmatprep.subr.bf16.mxu0 0
    %5035 = vmatpush1.bf16.msra.mxu0 %v4809
    %5036 = vmatprep.subr.bf16.mxu0 0
    %5037 = vmatpush1.bf16.msra.mxu0 %v4810
    %5038 = vmatprep.subr.bf16.mxu0 0
    %5039 = vmatpush1.bf16.msra.mxu0 %v4811
    %5040 = vmatprep.subr.bf16.mxu0 0
    %5041 = vmatpush1.bf16.msra.mxu0 %v4812
    %5042 = vmatprep.subr.bf16.mxu0 0
    %5043 = vmatpush1.bf16.msra.mxu0 %v4813
    %5044 = vmatprep.subr.bf16.mxu0 0
    %5045 = vmatpush1.bf16.msra.mxu0 %v4814
    %5046 = vmatprep.subr.bf16.mxu0 0
    %5047 = vmatpush1.bf16.msra.mxu0 %v4815
    %5048 = vmatprep.subr.bf16.mxu0 0
    %5049 = vmatpush1.bf16.msra.mxu0 %v4816
    %5050 = vmatprep.subr.bf16.mxu0 0
    %5051 = vmatpush1.bf16.msra.mxu0 %v4817
    %5052 = vmatprep.subr.bf16.mxu0 0
    %5053 = vmatpush1.bf16.msra.mxu0 %v4818
    %5054 = vmatprep.subr.bf16.mxu0 0
    %5055 = vmatpush1.bf16.msra.mxu0 %v4819
    %5056 = vmatprep.subr.bf16.mxu0 0
    %5057 = vmatpush1.bf16.msra.mxu0 %v4820
    %5058 = vmatprep.subr.bf16.mxu0 0
    %5059 = vmatpush1.bf16.msra.mxu0 %v4821
    %5060 = vmatprep.subr.bf16.mxu0 0
    %5061 = vmatpush1.bf16.msra.mxu0 %v4822
    %5062 = vmatprep.subr.bf16.mxu0 0
    %5063 = vmatpush1.bf16.msra.mxu0 %v4823
    %5064 = vmatprep.mubr.bf16.mxu0 %v4673
    %5065 = vmatmul.mubr.bf16.gmra.mrb[0].mxu0 %v4672
    %v5066 = vpop.f32.mrb[0].mxu0
    %v5067 = vadd.f32 %v5027, %v5066
    %v5068 = vpop.f32.mrb[0].mxu0
    %v5069 = vpop.f32.mrb[0].mxu0
    %v5070 = vpop.f32.mrb[0].mxu0
    %5071 = vdwg.mxu0
    %5072 = vmatprep.subr.bf16.mxu0 0
    %5073 = vmatpush1.bf16.msra.mxu0 %v4824
    %5074 = vmatprep.subr.bf16.mxu0 0
    %5075 = vmatpush1.bf16.msra.mxu0 %v4825
    %5076 = vmatprep.subr.bf16.mxu0 0
    %5077 = vmatpush1.bf16.msra.mxu0 %v4826
    %5078 = vmatprep.subr.bf16.mxu0 0
    %5079 = vmatpush1.bf16.msra.mxu0 %v4827
    %5080 = vmatprep.subr.bf16.mxu0 0
    %5081 = vmatpush1.bf16.msra.mxu0 %v4828
    %5082 = vmatprep.subr.bf16.mxu0 0
    %5083 = vmatpush1.bf16.msra.mxu0 %v4829
    %5084 = vmatprep.subr.bf16.mxu0 0
    %5085 = vmatpush1.bf16.msra.mxu0 %v4830
    %5086 = vmatprep.subr.bf16.mxu0 0
    %5087 = vmatpush1.bf16.msra.mxu0 %v4831
    %5088 = vmatprep.subr.bf16.mxu0 0
    %5089 = vmatpush1.bf16.msra.mxu0 %v4832
    %5090 = vmatprep.subr.bf16.mxu0 0
    %5091 = vmatpush1.bf16.msra.mxu0 %v4833
    %5092 = vmatprep.subr.bf16.mxu0 0
    %5093 = vmatpush1.bf16.msra.mxu0 %v4834
    %5094 = vmatprep.subr.bf16.mxu0 0
    %5095 = vmatpush1.bf16.msra.mxu0 %v4835
    %5096 = vmatprep.subr.bf16.mxu0 0
    %5097 = vmatpush1.bf16.msra.mxu0 %v4836
    %5098 = vmatprep.subr.bf16.mxu0 0
    %5099 = vmatpush1.bf16.msra.mxu0 %v4837
    %5100 = vmatprep.subr.bf16.mxu0 0
    %5101 = vmatpush1.bf16.msra.mxu0 %v4838
    %5102 = vmatprep.subr.bf16.mxu0 0
    %5103 = vmatpush1.bf16.msra.mxu0 %v4839
    %5104 = vmatprep.mubr.bf16.mxu0 %v4675
    %5105 = vmatmul.mubr.bf16.gmra.mrb[0].mxu0 %v4674
    %v5106 = vpop.f32.mrb[0].mxu0
    %v5107 = vadd.f32 %v5067, %v5106
    %v5108 = vpop.f32.mrb[0].mxu0
    %v5109 = vpop.f32.mrb[0].mxu0
    %v5110 = vpop.f32.mrb[0].mxu0
    %5111 = vdwg.mxu0
    %5112 = vmatprep.subr.bf16.mxu0 0
    %5113 = vmatpush1.bf16.msra.mxu0 %v4840
    %5114 = vmatprep.subr.bf16.mxu0 0
    %5115 = vmatpush1.bf16.msra.mxu0 %v4841
    %5116 = vmatprep.subr.bf16.mxu0 0
    %5117 = vmatpush1.bf16.msra.mxu0 %v4842
    %5118 = vmatprep.subr.bf16.mxu0 0
    %5119 = vmatpush1.bf16.msra.mxu0 %v4843
    %5120 = vmatprep.subr.bf16.mxu0 0
    %5121 = vmatpush1.bf16.msra.mxu0 %v4844
    %5122 = vmatprep.subr.bf16.mxu0 0
    %5123 = vmatpush1.bf16.msra.mxu0 %v4845
    %5124 = vmatprep.subr.bf16.mxu0 0
    %5125 = vmatpush1.bf16.msra.mxu0 %v4846
    %5126 = vmatprep.subr.bf16.mxu0 0
    %5127 = vmatpush1.bf16.msra.mxu0 %v4847
    %5128 = vmatprep.subr.bf16.mxu0 0
    %5129 = vmatpush1.bf16.msra.mxu0 %v4848
    %5130 = vmatprep.subr.bf16.mxu0 0
    %5131 = vmatpush1.bf16.msra.mxu0 %v4849
    %5132 = vmatprep.subr.bf16.mxu0 0
    %5133 = vmatpush1.bf16.msra.mxu0 %v4850
    %5134 = vmatprep.subr.bf16.mxu0 0
    %5135 = vmatpush1.bf16.msra.mxu0 %v4851
    %5136 = vmatprep.subr.bf16.mxu0 0
    %5137 = vmatpush1.bf16.msra.mxu0 %v4852
    %5138 = vmatprep.subr.bf16.mxu0 0
    %5139 = vmatpush1.bf16.msra.mxu0 %v4853
    %5140 = vmatprep.subr.bf16.mxu0 0
    %5141 = vmatpush1.bf16.msra.mxu0 %v4854
    %5142 = vmatprep.subr.bf16.mxu0 0
    %5143 = vmatpush1.bf16.msra.mxu0 %v4855
    %5144 = vmatprep.mubr.bf16.mxu0 %v4677
    %5145 = vmatmul.mubr.bf16.gmra.mrb[0].mxu0 %v4676
    %v5146 = vpop.f32.mrb[0].mxu0
    %v5147 = vadd.f32 %v5107, %v5146
    %v5148 = vpop.f32.mrb[0].mxu0
    %v5149 = vpop.f32.mrb[0].mxu0
    %v5150 = vpop.f32.mrb[0].mxu0
    %5151 = vdwg.mxu0
    %5152 = vmatprep.subr.bf16.mxu0 0
    %5153 = vmatpush1.bf16.msra.mxu0 %v4856
    %5154 = vmatprep.subr.bf16.mxu0 0
    %5155 = vmatpush1.bf16.msra.mxu0 %v4857
    %5156 = vmatprep.subr.bf16.mxu0 0
    %5157 = vmatpush1.bf16.msra.mxu0 %v4858
    %5158 = vmatprep.subr.bf16.mxu0 0
    %5159 = vmatpush1.bf16.msra.mxu0 %v4859
    %5160 = vmatprep.subr.bf16.mxu0 0
    %5161 = vmatpush1.bf16.msra.mxu0 %v4860
    %5162 = vmatprep.subr.bf16.mxu0 0
    %5163 = vmatpush1.bf16.msra.mxu0 %v4861
    %5164 = vmatprep.subr.bf16.mxu0 0
    %5165 = vmatpush1.bf16.msra.mxu0 %v4862
    %5166 = vmatprep.subr.bf16.mxu0 0
    %5167 = vmatpush1.bf16.msra.mxu0 %v4863
    %5168 = vmatprep.subr.bf16.mxu0 0
    %5169 = vmatpush1.bf16.msra.mxu0 %v4864
    %5170 = vmatprep.subr.bf16.mxu0 0
    %5171 = vmatpush1.bf16.msra.mxu0 %v4865
    %5172 = vmatprep.subr.bf16.mxu0 0
    %5173 = vmatpush1.bf16.msra.mxu0 %v4866
    %5174 = vmatprep.subr.bf16.mxu0 0
    %5175 = vmatpush1.bf16.msra.mxu0 %v4867
    %5176 = vmatprep.subr.bf16.mxu0 0
    %5177 = vmatpush1.bf16.msra.mxu0 %v4868
    %5178 = vmatprep.subr.bf16.mxu0 0
    %5179 = vmatpush1.bf16.msra.mxu0 %v4869
    %5180 = vmatprep.subr.bf16.mxu0 0
    %5181 = vmatpush1.bf16.msra.mxu0 %v4870
    %5182 = vmatprep.subr.bf16.mxu0 0
    %5183 = vmatpush1.bf16.msra.mxu0 %v4871
    %5184 = vmatprep.mubr.bf16.mxu0 %v4679
    %5185 = vmatmul.mubr.bf16.gmra.mrb[0].mxu0 %v4678
    %v5186 = vpop.f32.mrb[0].mxu0
    %v5187 = vadd.f32 %v5147, %v5186
    %v5188 = vpop.f32.mrb[0].mxu0
    %v5189 = vpop.f32.mrb[0].mxu0
    %v5190 = vpop.f32.mrb[0].mxu0
    %5191 = vdwg.mxu0
    %v5192 = vld [vmem:[#allocation28] sm:$0x1]
    %v5194 = vlaneseq
    %v5195 = vshrl.u32 %v5194, 7
    %v5196 = vsub.s32 0, %v5195
    %v5197 = vrot.slane %v5192, %v5196
    %v5199 = vmul.f32 %v5187, %v5197
    %v5200 = vld [vmem:[#allocation29] sm:$0x1]
    %v5202 = vlaneseq
    %v5203 = vshrl.u32 %v5202, 7
    %v5204 = vsub.s32 0, %v5203
    %v5205 = vrot.slane %v5200, %v5204
    %v5207 = vadd.f32 %v5199, %v5205
    %v5208 = vtanh.pop %v5207
    %5209 = vst [vmem:[#allocation31] sm:$0xff] %v5208
    // Predicated region
    $region146: #{binary2latent_forward.1} parent=1 // pred_check
      _
    $region147: #{binary2latent_forward.1} parent=1 // pred_check_branch
      %5211 = sbr.rel (0) target = $region149
    $region148: #{binary2latent_forward.1} parent=1 // pred_region
      %s5213 = ssub.s32 128, 128
      %5214 = vsyncadd [#allocation4], %s5213
      %s5216 = sshll.u32 [#allocation31], 4
      %s5217 = int_to_ptr.vmem [resolvable:$true] %s5216
      %5219 = dma.vmem_to_hbm [thread:$0]  %s5217, 128, %s18, [#allocation4]
    $region149: #{binary2latent_forward.1} parent=1 // pred_fallthru
      _
    // Predicated region
    $region150: #{binary2latent_forward.1} parent=1 // pred_check
      _
    $region151: #{binary2latent_forward.1} parent=1 // pred_check_branch
      %5221 = sbr.rel (0) target = $region153
    $region152: #{binary2latent_forward.1} parent=1 // pred_region
      %5222 = dma.done [#allocation4], 128
    $region153: #{binary2latent_forward.1} parent=1 // pred_fallthru
      _
    %5223 = vsyncpa [#allocation3], 1
    %5224 = vsyncpa [#allocation6], 1
    %5225 = vsyncpa [#allocation9], 1
    %5226 = vsyncpa [#allocation12], 1
    %5227 = vsyncpa [#allocation15], 1
    %5228 = vsyncpa [#allocation18], 1
    %5229 = vsyncpa [#allocation21], 1
    %5230 = vsyncpa [#allocation24], 1
    %5231 = vsyncpa [#allocation27], 1
    %5232 = vsyncpa [#allocation30], 1
    %5233 = vsyncpa [#allocation4], 1

</llo_original>
